<compile_context>
chip_gen: v7x
topology: tpu7x:2x2x1
jax: 0.10.0
libtpu: 0.0.40
codegen_flags: <defaults>
</compile_context>

<pallas_src>
import functools

import numpy as np
import jax
import jax.numpy as jnp
from jax import lax
from jax.experimental import pallas as pl
from jax.experimental.pallas import tpu as pltpu


def _round_up(x, m):
    return ((x + m - 1) // m) * m


# ----------------------------------------------------------------------------
# Fused Pallas kernel: one batch tile per grid step, weights resident in VMEM,
# per-tile partial sum-of-squares written to a lane-dense (8, act_dim) tile.
# ----------------------------------------------------------------------------
def _bc_mse_partial_kernel(obs_ref, act_ref, w1_ref, b1_ref, w2_ref, b2_ref,
                           part_ref, *, n_valid_rows, compute_dtype):
    i = pl.program_id(0)

    # MXU operands in compute_dtype (no-op cast when inputs are already bf16
    # at rest); accumulation stays f32 on the MXU.
    obs = obs_ref[...].astype(compute_dtype)
    h = jnp.dot(obs, w1_ref[...], preferred_element_type=jnp.float32)
    h = jnp.maximum(h + b1_ref[...], 0.0)            # f32 bias + ReLU (VPU)

    pred = jnp.dot(h.astype(compute_dtype), w2_ref[...],
                   preferred_element_type=jnp.float32)
    pred = pred + b2_ref[...]                         # f32 bias broadcast

    diff = pred - act_ref[...].astype(jnp.float32)

    # Mask rows beyond the true batch size (partial last block reads
    # unspecified data; a SELECT keeps any NaN/Inf from leaking).
    block_b, act_dim = diff.shape
    row_ids = lax.broadcasted_iota(jnp.int32, diff.shape, 0) + i * block_b
    diff = jnp.where(row_ids < n_valid_rows, diff, 0.0)

    # Per-lane partial sum over the rows of this tile -> (1, act_dim), placed
    # in row 0 of the (8, act_dim) output tile (rows 1..7 are zero filler so
    # the output block stays (8, 128)-aligned and lane dense).
    col = jnp.sum(diff * diff, axis=0, keepdims=True)           # (1, act_dim)
    out_rows = lax.broadcasted_iota(jnp.int32, (8, act_dim), 0)
    part_ref[...] = jnp.where(out_rows == 0, col, 0.0)


def _bc_mse_loss(obs, action, w1, b1, w2, b2, *, block_b=None,
                 compute_dtype=jnp.bfloat16):
    """Fused BC-MSE loss: tiled batch, resident weights, parallel grid."""
    B, obs_dim = obs.shape
    act_dim = action.shape[1]
    hid = w1.shape[1]

    if block_b is None:
        # 512-1024 row tiles: near HBM roofline, tiny VMEM footprint even with
        # double buffering (~2 MiB bf16 inputs + ~1 MiB f32 h at 1024 rows),
        # safe on v7x's smaller VMEM as well as v5e/v6e.
        block_b = min(1024, _round_up(B, 128))
    block_b = max(8, _round_up(block_b, 8))

    # No jnp.pad: partial last block is masked inside the kernel.
    grid_b = pl.cdiv(B, block_b)

    kernel = functools.partial(
        _bc_mse_partial_kernel,
        n_valid_rows=B,
        compute_dtype=compute_dtype,
    )

    flops = 2 * B * (obs_dim * hid + hid * act_dim)
    bytes_accessed = sum(int(a.size) * a.dtype.itemsize
                         for a in (obs, action, w1, b1, w2, b2))
    bytes_accessed += grid_b * 8 * act_dim * 4        # partial-sum output

    partials = pl.pallas_call(
        kernel,
        out_shape=jax.ShapeDtypeStruct((grid_b * 8, act_dim), jnp.float32),
        grid_spec=pltpu.PrefetchScalarGridSpec(
            num_scalar_prefetch=0,
            grid=(grid_b,),
            in_specs=[
                pl.BlockSpec((block_b, obs_dim), lambda i: (i, 0)),   # obs tile
                pl.BlockSpec((block_b, act_dim), lambda i: (i, 0)),   # action tile
                pl.BlockSpec((obs_dim, hid), lambda i: (0, 0)),       # W1 resident
                pl.BlockSpec((1, hid), lambda i: (0, 0)),             # b1 resident
                pl.BlockSpec((hid, act_dim), lambda i: (0, 0)),       # W2 resident
                pl.BlockSpec((1, act_dim), lambda i: (0, 0)),         # b2 resident
            ],
            out_specs=pl.BlockSpec((8, act_dim), lambda i: (i, 0)),   # partials
        ),
        compiler_params=pltpu.CompilerParams(
            # Independent per-tile partial sums -> batch axis is truly
            # parallel (v7x shards it across both TensorCores).
            dimension_semantics=("parallel",),
            vmem_limit_bytes=32 * 1024 * 1024,
        ),
        cost_estimate=pl.CostEstimate(
            flops=flops, transcendentals=0, bytes_accessed=bytes_accessed),
    )(obs, action, w1, b1, w2, b2)

    # Tiny XLA reduction of the (grid_b*8, act_dim) partials + mean scaling.
    return jnp.sum(partials) * (1.0 / float(B * act_dim))


# ----------------------------------------------------------------------------
# Inner "robot model": 2-layer MLP behavior-cloning head, MSE loss.
# Weights stored bf16 (MXU operands), biases f32 (elementwise path).
# ----------------------------------------------------------------------------
class TinyRoboPolicy:
    def __init__(self, obs_dim, hidden_dim, act_dim,
                 compute_dtype=jnp.bfloat16, seed=0):
        key = jax.random.PRNGKey(seed)
        k1, k2, k3, k4 = jax.random.split(key, 4)
        self.w1 = (jax.random.normal(k1, (obs_dim, hidden_dim)) * 0.02).astype(compute_dtype)
        self.b1 = (jax.random.normal(k2, (1, hidden_dim)) * 0.02).astype(jnp.float32)
        self.w2 = (jax.random.normal(k3, (hidden_dim, act_dim)) * 0.02).astype(compute_dtype)
        self.b2 = (jax.random.normal(k4, (1, act_dim)) * 0.02).astype(jnp.float32)
        self.compute_dtype = compute_dtype

    def __call__(self, obs, action):
        loss = _bc_mse_loss(obs, action, self.w1, self.b1, self.w2, self.b2,
                            compute_dtype=self.compute_dtype)
        return loss, {"mse_loss": loss}


# ----------------------------------------------------------------------------
# RoboModelWrapper equivalent (forward path).
# ----------------------------------------------------------------------------
class RoboModelWrapper:
    def __init__(self, model):
        self.model = model

    def unwrap(self):
        return self.model

    def process_inputs(self, **inputs):
        # Mirrors the PyTorch shim's recursive handling. The dtype cast itself
        # is FUSED INTO THE KERNEL (loaded vregs are cast to the model's
        # compute dtype), so no extra HBM round trip is materialized here;
        # for best bandwidth the producer should hand us bf16 arrays at rest.
        def process(x):
            if isinstance(x, (jnp.ndarray, np.ndarray)):
                return jnp.asarray(x)
            if isinstance(x, (list, tuple)):
                return type(x)(process(v) for v in x)
            if isinstance(x, dict):
                return {k: process(v) for k, v in x.items()}
            return x
        return {k: process(v) for k, v in inputs.items()}

    def forward(self, **inputs):
        # PyTorch calls self.train() here — stateless inner model, no-op.
        processed = self.process_inputs(**inputs)
        loss, loss_dict = self.model(**processed)
        return loss, loss_dict

    # TODO(synk): `generate` delegates to model.generate() (inference path with
    # host offload via process_outputs); the wrapped model defines no generate,
    # so only the forward (loss) path is implemented.


# ----------------------------------------------------------------------------
if __name__ == "__main__":
    # Lane-aligned feature dims; batch chosen to exercise the tiled grid with a
    # PARTIAL last block (1200 = 1024 + 176) while staying small (~0.6 MB).
    B, OBS, HID, ACT = 1200, 128, 256, 128

    key = jax.random.PRNGKey(0)
    k_obs, k_act = jax.random.split(key)
    # bf16 AT REST (producer-side), halving the streamed HBM bytes.
    obs = jax.random.normal(k_obs, (B, OBS), dtype=jnp.float32).astype(jnp.bfloat16)
    action = jax.random.normal(k_act, (B, ACT), dtype=jnp.float32).astype(jnp.bfloat16)

    model = TinyRoboPolicy(OBS, HID, ACT, compute_dtype=jnp.bfloat16, seed=0)
    wrapper = RoboModelWrapper(model)

    loss, loss_dict = wrapper.forward(obs=obs, action=action)
    jax.block_until_ready(loss)

    # Pure-JAX reference with the same mixed-precision recipe
    # (bf16 MXU operands, f32 accumulation / elementwise / loss math).
    h = jnp.dot(obs.astype(jnp.bfloat16), model.w1,
                preferred_element_type=jnp.float32) + model.b1
    h = jnp.maximum(h, 0.0)
    pred = jnp.dot(h.astype(jnp.bfloat16), model.w2,
                   preferred_element_type=jnp.float32) + model.b2
    ref = jnp.mean((pred - action.astype(jnp.float32)) ** 2)

    assert jnp.allclose(loss, ref, rtol=1e-3, atol=1e-4), (loss, ref)
    assert jnp.allclose(loss_dict["mse_loss"], ref, rtol=1e-3, atol=1e-4)

    print("KERNEL_OK")
</pallas_src>

<mosaic_0001>
module attributes {stable_mosaic.version = 11 : i64} {
  func.func @_bc_mse_partial_kernel(%arg0: i32, %arg1: memref<1024x128xbf16, #tpu.memory_space<vmem>>, %arg2: memref<1024x128xbf16, #tpu.memory_space<vmem>>, %arg3: memref<128x256xbf16, #tpu.memory_space<vmem>>, %arg4: memref<1x256xf32, #tpu.memory_space<vmem>>, %arg5: memref<256x128xbf16, #tpu.memory_space<vmem>>, %arg6: memref<1x128xf32, #tpu.memory_space<vmem>>, %arg7: memref<8x128xf32, #tpu.memory_space<vmem>>) attributes {dimension_semantics = [#tpu.dimension_semantics<parallel>], iteration_bounds = array<i64: 2>, scalar_prefetch = 0 : i64, scratch_operands = 0 : i64, tpu.core_type = #tpu.core_type<tc>, window_params = [{transform_indices = @transform_0, window_bounds = array<i64: 1024, 128>}, {transform_indices = @transform_1, window_bounds = array<i64: 1024, 128>}, {pipeline_mode = #tpu.pipeline_mode<synchronous>, transform_indices = @transform_2, window_bounds = array<i64: 128, 256>}, {pipeline_mode = #tpu.pipeline_mode<synchronous>, transform_indices = @transform_3, window_bounds = array<i64: 1, 256>}, {pipeline_mode = #tpu.pipeline_mode<synchronous>, transform_indices = @transform_4, window_bounds = array<i64: 256, 128>}, {pipeline_mode = #tpu.pipeline_mode<synchronous>, transform_indices = @transform_5, window_bounds = array<i64: 1, 128>}, {transform_indices = @transform_6, window_bounds = array<i64: 8, 128>}]} {
    %c0 = arith.constant 0 : index
    %c0_0 = arith.constant 0 : index
    %0 = vector.load %arg1[%c0, %c0_0] : memref<1024x128xbf16, #tpu.memory_space<vmem>>, vector<1024x128xbf16>
    %c0_1 = arith.constant 0 : index
    %c0_2 = arith.constant 0 : index
    %1 = vector.load %arg3[%c0_1, %c0_2] : memref<128x256xbf16, #tpu.memory_space<vmem>>, vector<128x256xbf16>
    %cst = arith.constant dense<0.000000e+00> : vector<1024x256xf32>
    %2 = tpu.matmul %0, %1, %cst {dimension_numbers = #tpu.dot_dimension_numbers<[1], [0], [0], [1], [0, 0, 1, 1], [], []>} : vector<1024x128xbf16>, vector<128x256xbf16>, vector<1024x256xf32> -> vector<1024x256xf32>
    %c0_3 = arith.constant 0 : index
    %c0_4 = arith.constant 0 : index
    %3 = vector.load %arg4[%c0_3, %c0_4] : memref<1x256xf32, #tpu.memory_space<vmem>>, vector<1x256xf32>
    %4 = vector.broadcast %3 : vector<1x256xf32> to vector<1024x256xf32>
    %5 = arith.addf %2, %4 : vector<1024x256xf32>
    %cst_5 = arith.constant 0.000000e+00 : f32
    %6 = vector.broadcast %cst_5 : f32 to vector<1024x256xf32>
    %7 = arith.maximumf %5, %6 : vector<1024x256xf32>
    %8 = arith.truncf %7 : vector<1024x256xf32> to vector<1024x256xbf16>
    %c0_6 = arith.constant 0 : index
    %c0_7 = arith.constant 0 : index
    %9 = vector.load %arg5[%c0_6, %c0_7] : memref<256x128xbf16, #tpu.memory_space<vmem>>, vector<256x128xbf16>
    %cst_8 = arith.constant dense<0.000000e+00> : vector<1024x128xf32>
    %10 = tpu.matmul %8, %9, %cst_8 {dimension_numbers = #tpu.dot_dimension_numbers<[1], [0], [0], [1], [0, 0, 1, 1], [], []>} : vector<1024x256xbf16>, vector<256x128xbf16>, vector<1024x128xf32> -> vector<1024x128xf32>
    %c0_9 = arith.constant 0 : index
    %c0_10 = arith.constant 0 : index
    %11 = vector.load %arg6[%c0_9, %c0_10] : memref<1x128xf32, #tpu.memory_space<vmem>>, vector<1x128xf32>
    %12 = vector.broadcast %11 : vector<1x128xf32> to vector<1024x128xf32>
    %13 = arith.addf %10, %12 : vector<1024x128xf32>
    %c0_11 = arith.constant 0 : index
    %c0_12 = arith.constant 0 : index
    %14 = vector.load %arg2[%c0_11, %c0_12] : memref<1024x128xbf16, #tpu.memory_space<vmem>>, vector<1024x128xbf16>
    %15 = arith.extf %14 : vector<1024x128xbf16> to vector<1024x128xf32>
    %16 = arith.subf %13, %15 : vector<1024x128xf32>
    %17 = tpu.iota {dimensions = array<i32: 0>} : vector<1024x128xi32>
    %c1024_i32 = arith.constant 1024 : i32
    %18 = arith.muli %arg0, %c1024_i32 : i32
    %19 = vector.broadcast %18 : i32 to vector<1024x128xi32>
    %20 = arith.addi %17, %19 : vector<1024x128xi32>
    %c1200_i32 = arith.constant 1200 : i32
    %21 = vector.broadcast %c1200_i32 : i32 to vector<1024x128xi32>
    %22 = arith.cmpi slt, %20, %21 : vector<1024x128xi32>
    %cst_13 = arith.constant 0.000000e+00 : f32
    %23 = vector.broadcast %cst_13 : f32 to vector<1024x128xf32>
    %24 = arith.select %22, %16, %23 : vector<1024x128xi1>, vector<1024x128xf32>
    %25 = arith.mulf %24, %24 : vector<1024x128xf32>
    %cst_14 = arith.constant dense<0.000000e+00> : vector<128xf32>
    %26 = vector.multi_reduction <add>, %25, %cst_14 [0] : vector<1024x128xf32> to vector<128xf32>
    %27 = vector.shape_cast %26 : vector<128xf32> to vector<1x128xf32>
    %28 = tpu.iota {dimensions = array<i32: 0>} : vector<8x128xi32>
    %c0_i32 = arith.constant 0 : i32
    %29 = vector.broadcast %c0_i32 : i32 to vector<8x128xi32>
    %30 = arith.cmpi eq, %28, %29 : vector<8x128xi32>
    %cst_15 = arith.constant 0.000000e+00 : f32
    %31 = vector.shape_cast %27 : vector<1x128xf32> to vector<1x128xf32>
    %32 = vector.broadcast %31 : vector<1x128xf32> to vector<8x128xf32>
    %33 = vector.broadcast %cst_15 : f32 to vector<8x128xf32>
    %34 = arith.select %30, %32, %33 : vector<8x128xi1>, vector<8x128xf32>
    %c0_16 = arith.constant 0 : index
    %c0_17 = arith.constant 0 : index
    %35 = vector.load %arg7[%c0_16, %c0_17] : memref<8x128xf32, #tpu.memory_space<vmem>>, vector<8x128xf32>
    tpu.vector_store %arg7[%c0_16, %c0_17], %34 {strides = array<i32>} : memref<8x128xf32, #tpu.memory_space<vmem>>, vector<8x128xf32>,
    return
  }
  func.func @transform_0(%arg0: i32) -> (i32, i32) {
    %c0_i32 = arith.constant 0 : i32
    %c0_i32_0 = arith.constant 0 : i32
    return %arg0, %c0_i32 : i32, i32
  }
  func.func @transform_1(%arg0: i32) -> (i32, i32) {
    %c0_i32 = arith.constant 0 : i32
    %c0_i32_0 = arith.constant 0 : i32
    return %arg0, %c0_i32 : i32, i32
  }
  func.func @transform_2(%arg0: i32) -> (i32, i32) {
    %c0_i32 = arith.constant 0 : i32
    %c0_i32_0 = arith.constant 0 : i32
    %c0_i32_1 = arith.constant 0 : i32
    return %c0_i32, %c0_i32_0 : i32, i32
  }
  func.func @transform_3(%arg0: i32) -> (i32, i32) {
    %c0_i32 = arith.constant 0 : i32
    %c0_i32_0 = arith.constant 0 : i32
    %c0_i32_1 = arith.constant 0 : i32
    return %c0_i32, %c0_i32_0 : i32, i32
  }
  func.func @transform_4(%arg0: i32) -> (i32, i32) {
    %c0_i32 = arith.constant 0 : i32
    %c0_i32_0 = arith.constant 0 : i32
    %c0_i32_1 = arith.constant 0 : i32
    return %c0_i32, %c0_i32_0 : i32, i32
  }
  func.func @transform_5(%arg0: i32) -> (i32, i32) {
    %c0_i32 = arith.constant 0 : i32
    %c0_i32_0 = arith.constant 0 : i32
    %c0_i32_1 = arith.constant 0 : i32
    return %c0_i32, %c0_i32_0 : i32, i32
  }
  func.func @transform_6(%arg0: i32) -> (i32, i32) {
    %c0_i32 = arith.constant 0 : i32
    %c0_i32_0 = arith.constant 0 : i32
    return %arg0, %c0_i32 : i32, i32
  }
}

</mosaic_0001>

<llo_original>
// kernel: tpu_custom_call.1
$region0: #{tpu_custom_call.1}
  #allocation0 [shape = 'u32[]', space=smem, size = 0x4, offset = 0x4, fixed_abs, tag = 'smem constant byte address 0x4 - core index']
  #allocation1 [shape = 'u32[144,128]{1,0:T(1,128)}', space=vmem, size = 0x12000, scoped, tag = 'internal scratch']
  %s0 = inlined_call_operand.hbm [shape: bf16[1200,128], index: 0, kind: input, shape index: {}]
  %s1 = inlined_call_operand.hbm [shape: bf16[1200,128], index: 1, kind: input, shape index: {}]
  %s2 = inlined_call_operand.hbm [shape: bf16[128,256], index: 2, kind: input, shape index: {}]
  %s3 = inlined_call_operand.vmem [shape: f32[1,256], index: 3, kind: input, shape index: {}]
  %s4 = inlined_call_operand.hbm [shape: bf16[256,128], index: 4, kind: input, shape index: {}]
  %s5 = inlined_call_operand.vmem [shape: f32[1,128], index: 5, kind: input, shape index: {}]
  %s6 = inlined_call_operand.hbm [shape: f32[16,128], index: 6, kind: output, shape index: {}]
  %s7 = sld [smem:[#allocation0]]
  $region73: #{tpu_custom_call.1} parent=0
    _
  %s9 = ssub.s32 1, %s7
  %s10 = scalar_select 0, %s9, %s7
  $region1: #{tpu_custom_call.1} parent=0
    #allocation2 [shape = 'u8[524288]{0}', space=vmem, size = 0x80000, scoped, tag = 'input window, operand 0']
    #allocation3 [shape = 's32[2]{0}', space=sflag, size = 0x8, scoped, tag = 'scoped memory for tpu_custom_call.1']
    #allocation4 [shape = 's32[2]{0}', space=sflag, size = 0x8, scoped, tag = 'scoped memory for tpu_custom_call.1']
    #allocation5 [shape = 'u8[524288]{0}', space=vmem, size = 0x80000, scoped, tag = 'input window, operand 1']
    #allocation6 [shape = 's32[2]{0}', space=sflag, size = 0x8, scoped, tag = 'scoped memory for tpu_custom_call.1']
    #allocation7 [shape = 'u8[65536]{0}', space=vmem, size = 0x10000, scoped, tag = 'input window, operand 2, single buffered']
    #allocation8 [shape = 'u8[65536]{0}', space=vmem, size = 0x10000, scoped, tag = 'input window, operand 4, single buffered']
    #allocation9 [shape = 's32[1]{0}', space=sflag, size = 0x4, scoped, tag = 'scoped memory for tpu_custom_call.1']
    #allocation10 [shape = 'u8[8192]{0}', space=vmem, size = 0x2000, scoped, tag = 'output window, operand 0']
    %11 = vsyncpa [#allocation3], 0
    %s12 = scalar_lea.sflag [#allocation3], 1
    %13 = vsyncpa %s12, 0
    %14 = vsyncpa [#allocation6], 0
    %s15 = scalar_lea.sflag [#allocation6], 1
    %16 = vsyncpa %s15, 0
    %17 = vsyncpa [#allocation9], 0
    %18 = vsyncpa [#allocation4], 0
    %s19 = scalar_lea.sflag [#allocation4], 1
    %20 = vsyncpa %s19, 0
    loop: start=0, step=1, limit=4
    $region2: #{tpu_custom_call.1} parent=1 // loop_pre_header
      _
    $region3: #{tpu_custom_call.1} parent=1 // loop_header
      %s22 = sphi 0, %s26
      %p23 = scmp.ge.s32.totalorder %s22, 4
      %s32 = sphi 0, %s34
      %s35 = sphi 0, %s32
      %s36 = sphi 0, %s35
      %s52 = sphi 0, %s36
      %s58 = sphi 0, %s60
      %s61 = sphi 0, %s58
      %s62 = sphi 0, %s61
      %s78 = sphi 0, %s62
      %s82 = sphi 0, %s82
      %s84 = sphi 0, %s82
      %s85 = sphi 0, %s84
      %s99 = sphi 0, %s85
      %s103 = sphi 0, %s103
      %s105 = sphi 0, %s103
      %s106 = sphi 0, %s105
      %s120 = sphi 0, %s106
      %s124 = sphi 0, %s124
      %s126 = sphi 0, %s124
      %s127 = sphi 0, %s126
      %s141 = sphi 0, %s127
      %s145 = sphi 0, %s145
      %s147 = sphi 0, %s145
      %s148 = sphi 0, %s147
      %s162 = sphi 0, %s148
      %s168 = sphi 0, %s170
      %s171 = sphi 0, %s168
      %s172 = sphi 0, %s171
      %s188 = sphi 0, %s172
    $region4: #{tpu_custom_call.1} parent=1 // loop_header_branch
      %25 = sbr.rel (%p23) target = $region8
    $region5: #{tpu_custom_call.1} parent=1 // loop_body
      %s27 = ssub.s32 %s22, 1
      %s28 = ssub.s32 %s22, 2
      %s29 = sadd.s32 %s22, 1
      %s30 = ssub.s32 %s22, %s29
      %p31 = scmp.eq.s32.totalorder %s30, 0
      %s33 = sadd.s32 %s32, 1
      %s34 = scalar_select %p31, %s32, %s33
      %p37 = pneg %p31
      %p38 = scmp.eq.s32.totalorder %s22, 1
      %p39 = por %p37, %p38
      %p40 = scmp.ne.s32.totalorder %s32, %s35
      %p41 = scmp.eq.s32.totalorder %s22, 0
      %p42 = por %p40, %p41
      %p43 = scmp.ne.s32.totalorder %s32, %s35
      %p44 = scmp.eq.s32.totalorder %s27, 1
      %p45 = por %p43, %p44
      %p46 = scmp.ne.s32.totalorder %s35, %s36
      %p47 = scmp.eq.s32.totalorder %s27, 0
      %p48 = por %p46, %p47
      %p49 = scmp.ne.s32.totalorder %s35, %s36
      %p50 = scmp.eq.s32.totalorder %s28, 1
      %p51 = por %p49, %p50
      %p53 = scmp.ne.s32.totalorder %s36, %s52
      %p54 = scmp.eq.s32.totalorder %s28, 0
      %p55 = por %p53, %p54
      %s56 = ssub.s32 %s22, %s29
      %p57 = scmp.eq.s32.totalorder %s56, 0
      %s59 = sadd.s32 %s58, 1
      %s60 = scalar_select %p57, %s58, %s59
      %p63 = pneg %p57
      %p64 = scmp.eq.s32.totalorder %s22, 1
      %p65 = por %p63, %p64
      %p66 = scmp.ne.s32.totalorder %s58, %s61
      %p67 = scmp.eq.s32.totalorder %s22, 0
      %p68 = por %p66, %p67
      %p69 = scmp.ne.s32.totalorder %s58, %s61
      %p70 = scmp.eq.s32.totalorder %s27, 1
      %p71 = por %p69, %p70
      %p72 = scmp.ne.s32.totalorder %s61, %s62
      %p73 = scmp.eq.s32.totalorder %s27, 0
      %p74 = por %p72, %p73
      %p75 = scmp.ne.s32.totalorder %s61, %s62
      %p76 = scmp.eq.s32.totalorder %s28, 1
      %p77 = por %p75, %p76
      %p79 = scmp.ne.s32.totalorder %s62, %s78
      %p80 = scmp.eq.s32.totalorder %s28, 0
      %p81 = por %p79, %p80
      %s83 = sadd.s32 %s82, 1
      %p86 = scmp.eq.s32.totalorder %s22, 1
      %p87 = scmp.ne.s32.totalorder %s82, %s84
      %p88 = scmp.eq.s32.totalorder %s22, 0
      %p89 = por %p87, %p88
      %p90 = scmp.ne.s32.totalorder %s82, %s84
      %p91 = scmp.eq.s32.totalorder %s27, 1
      %p92 = por %p90, %p91
      %p93 = scmp.ne.s32.totalorder %s84, %s85
      %p94 = scmp.eq.s32.totalorder %s27, 0
      %p95 = por %p93, %p94
      %p96 = scmp.ne.s32.totalorder %s84, %s85
      %p97 = scmp.eq.s32.totalorder %s28, 1
      %p98 = por %p96, %p97
      %p100 = scmp.ne.s32.totalorder %s85, %s99
      %p101 = scmp.eq.s32.totalorder %s28, 0
      %p102 = por %p100, %p101
      %s104 = sadd.s32 %s103, 1
      %p107 = scmp.eq.s32.totalorder %s22, 1
      %p108 = scmp.ne.s32.totalorder %s103, %s105
      %p109 = scmp.eq.s32.totalorder %s22, 0
      %p110 = por %p108, %p109
      %p111 = scmp.ne.s32.totalorder %s103, %s105
      %p112 = scmp.eq.s32.totalorder %s27, 1
      %p113 = por %p111, %p112
      %p114 = scmp.ne.s32.totalorder %s105, %s106
      %p115 = scmp.eq.s32.totalorder %s27, 0
      %p116 = por %p114, %p115
      %p117 = scmp.ne.s32.totalorder %s105, %s106
      %p118 = scmp.eq.s32.totalorder %s28, 1
      %p119 = por %p117, %p118
      %p121 = scmp.ne.s32.totalorder %s106, %s120
      %p122 = scmp.eq.s32.totalorder %s28, 0
      %p123 = por %p121, %p122
      %s125 = sadd.s32 %s124, 1
      %p128 = scmp.eq.s32.totalorder %s22, 1
      %p129 = scmp.ne.s32.totalorder %s124, %s126
      %p130 = scmp.eq.s32.totalorder %s22, 0
      %p131 = por %p129, %p130
      %p132 = scmp.ne.s32.totalorder %s124, %s126
      %p133 = scmp.eq.s32.totalorder %s27, 1
      %p134 = por %p132, %p133
      %p135 = scmp.ne.s32.totalorder %s126, %s127
      %p136 = scmp.eq.s32.totalorder %s27, 0
      %p137 = por %p135, %p136
      %p138 = scmp.ne.s32.totalorder %s126, %s127
      %p139 = scmp.eq.s32.totalorder %s28, 1
      %p140 = por %p138, %p139
      %p142 = scmp.ne.s32.totalorder %s127, %s141
      %p143 = scmp.eq.s32.totalorder %s28, 0
      %p144 = por %p142, %p143
      %s146 = sadd.s32 %s145, 1
      %p149 = scmp.eq.s32.totalorder %s22, 1
      %p150 = scmp.ne.s32.totalorder %s145, %s147
      %p151 = scmp.eq.s32.totalorder %s22, 0
      %p152 = por %p150, %p151
      %p153 = scmp.ne.s32.totalorder %s145, %s147
      %p154 = scmp.eq.s32.totalorder %s27, 1
      %p155 = por %p153, %p154
      %p156 = scmp.ne.s32.totalorder %s147, %s148
      %p157 = scmp.eq.s32.totalorder %s27, 0
      %p158 = por %p156, %p157
      %p159 = scmp.ne.s32.totalorder %s147, %s148
      %p160 = scmp.eq.s32.totalorder %s28, 1
      %p161 = por %p159, %p160
      %p163 = scmp.ne.s32.totalorder %s148, %s162
      %p164 = scmp.eq.s32.totalorder %s28, 0
      %p165 = por %p163, %p164
      %s166 = ssub.s32 %s22, %s29
      %p167 = scmp.eq.s32.totalorder %s166, 0
      %s169 = sadd.s32 %s168, 1
      %s170 = scalar_select %p167, %s168, %s169
      %p173 = pneg %p167
      %p174 = scmp.eq.s32.totalorder %s22, 1
      %p175 = por %p173, %p174
      %p176 = scmp.ne.s32.totalorder %s168, %s171
      %p177 = scmp.eq.s32.totalorder %s22, 0
      %p178 = por %p176, %p177
      %p179 = scmp.ne.s32.totalorder %s168, %s171
      %p180 = scmp.eq.s32.totalorder %s27, 1
      %p181 = por %p179, %p180
      %p182 = scmp.ne.s32.totalorder %s171, %s172
      %p183 = scmp.eq.s32.totalorder %s27, 0
      %p184 = por %p182, %p183
      %p185 = scmp.ne.s32.totalorder %s171, %s172
      %p186 = scmp.eq.s32.totalorder %s28, 1
      %p187 = por %p185, %p186
      %p189 = scmp.ne.s32.totalorder %s172, %s188
      %p190 = scmp.eq.s32.totalorder %s28, 0
      %p191 = por %p189, %p190
      %p192 = scmp.le.s32.totalorder 1, %s22
      %p193 = scmp.lt.s32.totalorder %s22, 3
      %p194 = pnand %p192, %p193
      %p195 = pneg %p194
      // Predicated region
      $region9: #{tpu_custom_call.1} parent=5 // pred_check
        _
      $region10: #{tpu_custom_call.1} parent=5 // pred_check_branch
        %197 = sbr.rel (%p194) target = $region12
      $region11: #{tpu_custom_call.1} parent=5 // pred_region
        %s198 = ssub.s32 %s22, 1
        // Predicated region
        $region13: #{tpu_custom_call.1} parent=11 // pred_check
          %p199 = pneg %p95
        $region14: #{tpu_custom_call.1} parent=11 // pred_check_branch
          %201 = sbr.rel (%p199) target = $region16
        $region15: #{tpu_custom_call.1} parent=11 // pred_region
          %s203 = ssub.s32 2048, 2048
          %204 = vsyncadd [#allocation6], %s203
          %s205 = sshll.u32 [#allocation7], 4
          %s206 = int_to_ptr.vmem [resolvable:$true] %s205
          %211 = dma.hbm_to_vmem [thread:$0]  %s2, 2048, %s206, [#allocation6], 128, 128, 8
        $region16: #{tpu_custom_call.1} parent=11 // pred_fallthru
          _
        // Predicated region
        $region17: #{tpu_custom_call.1} parent=11 // pred_check
          %p212 = pneg %p116
        $region18: #{tpu_custom_call.1} parent=11 // pred_check_branch
          %214 = sbr.rel (%p212) target = $region20
        $region19: #{tpu_custom_call.1} parent=11 // pred_region
          _
        $region20: #{tpu_custom_call.1} parent=11 // pred_fallthru
          _
        // Predicated region
        $region21: #{tpu_custom_call.1} parent=11 // pred_check
          %p215 = pneg %p137
        $region22: #{tpu_custom_call.1} parent=11 // pred_check_branch
          %217 = sbr.rel (%p215) target = $region24
        $region23: #{tpu_custom_call.1} parent=11 // pred_region
          %s219 = ssub.s32 2048, 2048
          %220 = vsyncadd [#allocation9], %s219
          %s221 = sshll.u32 [#allocation8], 4
          %s222 = int_to_ptr.vmem [resolvable:$true] %s221
          %227 = dma.hbm_to_vmem [thread:$0]  %s4, 2048, %s222, [#allocation9], 64, 64, 4
        $region24: #{tpu_custom_call.1} parent=11 // pred_fallthru
          _
        // Predicated region
        $region25: #{tpu_custom_call.1} parent=11 // pred_check
          %p228 = pneg %p158
        $region26: #{tpu_custom_call.1} parent=11 // pred_check_branch
          %230 = sbr.rel (%p228) target = $region28
        $region27: #{tpu_custom_call.1} parent=11 // pred_region
          _
        $region28: #{tpu_custom_call.1} parent=11 // pred_fallthru
          _
      $region12: #{tpu_custom_call.1} parent=5 // pred_fallthru
        _
      %p231 = scmp.lt.s32.totalorder %s22, 2
      // Predicated region
      $region29: #{tpu_custom_call.1} parent=5 // pred_check
        %p232 = pneg %p231
      $region30: #{tpu_custom_call.1} parent=5 // pred_check_branch
        %234 = sbr.rel (%p232) target = $region32
      $region31: #{tpu_custom_call.1} parent=5 // pred_region
        // Predicated region
        $region33: #{tpu_custom_call.1} parent=31 // pred_check
          %p235 = pneg %p42
        $region34: #{tpu_custom_call.1} parent=31 // pred_check_branch
          %237 = sbr.rel (%p235) target = $region36
        $region35: #{tpu_custom_call.1} parent=31 // pred_region
          %s238 = sand.u32 %s32, 1
          %s239 = scalar_lea.sflag [#allocation3], %s238
          %s240 = sand.u32 %s32, 1
          %s241 = smul.addr %s240, 512
          %s242 = scalar_lea.vmem [#allocation2], %s241
          %s243 = smul.u32 128, %s22
          %s244 = ssub.s32 150, %s243
          %p245 = scmp.lt.s32.totalorder %s244, 128
          %s246 = scalar_select %p245, %s244, 128
          %s247 = smul.u32 64, %s246
          %s249 = ssub.s32 8192, %s247
          %250 = vsyncadd %s239, %s249
          %p251 = scmp.ne.s32.totalorder 0, %s247
          %s252 = smul.addr %s243, 64
          %s253 = scalar_lea.hbm %s0, %s252
          %s254 = smul.u32 4, %s246
          %s255 = sshll.u32 %s242, 4
          %s256 = int_to_ptr.vmem [resolvable:$true] %s255
          %s257 = sshll.u32 %s254, 4
          %261 = dma.hbm_to_vmem [thread:$0]  (%p251), %s253, %s257, %s256, %s239, 64, 64, 4
        $region36: #{tpu_custom_call.1} parent=31 // pred_fallthru
          _
        // Predicated region
        $region37: #{tpu_custom_call.1} parent=31 // pred_check
          %p262 = pneg %p68
        $region38: #{tpu_custom_call.1} parent=31 // pred_check_branch
          %264 = sbr.rel (%p262) target = $region40
        $region39: #{tpu_custom_call.1} parent=31 // pred_region
          %s265 = sand.u32 %s22, 1
          %s266 = scalar_lea.sflag [#allocation6], %s265
          %s267 = sand.u32 %s58, 1
          %s268 = smul.addr %s267, 512
          %s269 = scalar_lea.vmem [#allocation5], %s268
          %s270 = smul.u32 128, %s22
          %s271 = ssub.s32 150, %s270
          %p272 = scmp.lt.s32.totalorder %s271, 128
          %s273 = scalar_select %p272, %s271, 128
          %s274 = smul.u32 64, %s273
          %s276 = ssub.s32 8192, %s274
          %277 = vsyncadd %s266, %s276
          %p278 = scmp.ne.s32.totalorder 0, %s274
          %s279 = smul.addr %s270, 64
          %s280 = scalar_lea.hbm %s1, %s279
          %s281 = smul.u32 4, %s273
          %s282 = sshll.u32 %s269, 4
          %s283 = int_to_ptr.vmem [resolvable:$true] %s282
          %s284 = sshll.u32 %s281, 4
          %288 = dma.hbm_to_vmem [thread:$0]  (%p278), %s280, %s284, %s283, %s266, 64, 64, 4
        $region40: #{tpu_custom_call.1} parent=31 // pred_fallthru
          _
      $region32: #{tpu_custom_call.1} parent=5 // pred_fallthru
        _
      %p289 = scmp.le.s32.totalorder 1, %s22
      %p290 = scmp.lt.s32.totalorder %s22, 3
      %p291 = pnand %p289, %p290
      %p292 = pneg %p291
      // Predicated region
      $region41: #{tpu_custom_call.1} parent=5 // pred_check
        _
      $region42: #{tpu_custom_call.1} parent=5 // pred_check_branch
        %294 = sbr.rel (%p291) target = $region44
      $region43: #{tpu_custom_call.1} parent=5 // pred_region
        %s295 = ssub.s32 %s22, 1
        %s296 = sand.u32 %s35, 1
        %s297 = scalar_lea.sflag [#allocation3], %s296
        %s298 = sand.u32 %s35, 1
        %s299 = smul.addr %s298, 512
        %s300 = scalar_lea.vmem [#allocation2], %s299
        // Predicated region
        $region45: #{tpu_custom_call.1} parent=43 // pred_check
          %p301 = pneg %p48
        $region46: #{tpu_custom_call.1} parent=43 // pred_check_branch
          %303 = sbr.rel (%p301) target = $region48
        $region47: #{tpu_custom_call.1} parent=43 // pred_region
          %304 = dma.done %s297, 8192
        $region48: #{tpu_custom_call.1} parent=43 // pred_fallthru
          _
        %s305 = sand.u32 %s27, 1
        %s306 = scalar_lea.sflag [#allocation6], %s305
        %s307 = sand.u32 %s61, 1
        %s308 = smul.addr %s307, 512
        %s309 = scalar_lea.vmem [#allocation5], %s308
        // Predicated region
        $region49: #{tpu_custom_call.1} parent=43 // pred_check
          %p310 = pneg %p74
        $region50: #{tpu_custom_call.1} parent=43 // pred_check_branch
          %312 = sbr.rel (%p310) target = $region52
        $region51: #{tpu_custom_call.1} parent=43 // pred_region
          %313 = dma.done %s306, 8192
        $region52: #{tpu_custom_call.1} parent=43 // pred_fallthru
          _
        // Predicated region
        $region53: #{tpu_custom_call.1} parent=43 // pred_check
          %p314 = pneg %p95
        $region54: #{tpu_custom_call.1} parent=43 // pred_check_branch
          %316 = sbr.rel (%p314) target = $region56
        $region55: #{tpu_custom_call.1} parent=43 // pred_region
          %317 = dma.done [#allocation6], 2048
        $region56: #{tpu_custom_call.1} parent=43 // pred_fallthru
          _
        // Predicated region
        $region57: #{tpu_custom_call.1} parent=43 // pred_check
          %p318 = pneg %p137
        $region58: #{tpu_custom_call.1} parent=43 // pred_check_branch
          %320 = sbr.rel (%p318) target = $region60
        $region59: #{tpu_custom_call.1} parent=43 // pred_region
          %321 = dma.done [#allocation9], 2048
        $region60: #{tpu_custom_call.1} parent=43 // pred_fallthru
          _
        %s322 = sand.u32 %s35, 1
        %s323 = scalar_lea.sflag [#allocation3], %s322
        %s324 = sand.u32 %s35, 1
        %s325 = smul.addr %s324, 512
        %s326 = scalar_lea.vmem [#allocation2], %s325
        %p327 = pneg %p48
        %p328 = pneg %p45
        %s329 = sand.u32 %s27, 1
        %s330 = scalar_lea.sflag [#allocation6], %s329
        %s331 = sand.u32 %s61, 1
        %s332 = smul.addr %s331, 512
        %s333 = scalar_lea.vmem [#allocation5], %s332
        %p334 = pneg %p74
        %p335 = pneg %p71
        %p336 = pneg %p95
        %p337 = pneg %p92
        %p338 = pneg %p116
        %p339 = pneg %p113
        %p340 = pneg %p137
        %p341 = pneg %p134
        %p342 = pneg %p158
        %p343 = pneg %p155
        %p344 = pneg %p184
        %p345 = pneg %p181
        %s346 = sand.u32 %s171, 1
        %s347 = scalar_lea.sflag [#allocation4], %s346
        %s348 = sand.u32 %s171, 1
        %s349 = smul.addr %s348, 8
        %s350 = scalar_lea.vmem [#allocation10], %s349
        %s351 = smul.u32 128, %s27
        %s352 = ssub.s32 150, %s351
        %p353 = scmp.lt.s32.totalorder %s352, 128
        %s354 = scalar_select %p353, %s352, 128
        %s355 = smul.u32 64, %s354
        %s356 = smul.u32 128, %s27
        %s357 = ssub.s32 150, %s356
        %p358 = scmp.lt.s32.totalorder %s357, 128
        %s359 = scalar_select %p358, %s357, 128
        %s360 = smul.u32 64, %s359
        %v362 = vld [vmem:[%s300] sm:$0xf]
        %v363 = vld [vmem:[%s300 + $0x4] sm:$0xf]
        %v364 = vld [vmem:[%s300 + $0x8] sm:$0xf]
        %v365 = vld [vmem:[%s300 + $0xc] sm:$0xf]
        %v366 = vld [vmem:[%s300 + $0x10] sm:$0xf]
        %v367 = vld [vmem:[%s300 + $0x14] sm:$0xf]
        %v368 = vld [vmem:[%s300 + $0x18] sm:$0xf]
        %v369 = vld [vmem:[%s300 + $0x1c] sm:$0xf]
        %v370 = vld [vmem:[%s300 + $0x20] sm:$0xf]
        %v371 = vld [vmem:[%s300 + $0x24] sm:$0xf]
        %v372 = vld [vmem:[%s300 + $0x28] sm:$0xf]
        %v373 = vld [vmem:[%s300 + $0x2c] sm:$0xf]
        %v374 = vld [vmem:[%s300 + $0x30] sm:$0xf]
        %v375 = vld [vmem:[%s300 + $0x34] sm:$0xf]
        %v376 = vld [vmem:[%s300 + $0x38] sm:$0xf]
        %v377 = vld [vmem:[%s300 + $0x3c] sm:$0xf]
        %v378 = vld [vmem:[%s300 + $0x40] sm:$0xf]
        %v379 = vld [vmem:[%s300 + $0x44] sm:$0xf]
        %v380 = vld [vmem:[%s300 + $0x48] sm:$0xf]
        %v381 = vld [vmem:[%s300 + $0x4c] sm:$0xf]
        %v382 = vld [vmem:[%s300 + $0x50] sm:$0xf]
        %v383 = vld [vmem:[%s300 + $0x54] sm:$0xf]
        %v384 = vld [vmem:[%s300 + $0x58] sm:$0xf]
        %v385 = vld [vmem:[%s300 + $0x5c] sm:$0xf]
        %v386 = vld [vmem:[%s300 + $0x60] sm:$0xf]
        %v387 = vld [vmem:[%s300 + $0x64] sm:$0xf]
        %v388 = vld [vmem:[%s300 + $0x68] sm:$0xf]
        %v389 = vld [vmem:[%s300 + $0x6c] sm:$0xf]
        %v390 = vld [vmem:[%s300 + $0x70] sm:$0xf]
        %v391 = vld [vmem:[%s300 + $0x74] sm:$0xf]
        %v392 = vld [vmem:[%s300 + $0x78] sm:$0xf]
        %v393 = vld [vmem:[%s300 + $0x7c] sm:$0xf]
        %v394 = vld [vmem:[%s300 + $0x80] sm:$0xf]
        %v395 = vld [vmem:[%s300 + $0x84] sm:$0xf]
        %v396 = vld [vmem:[%s300 + $0x88] sm:$0xf]
        %v397 = vld [vmem:[%s300 + $0x8c] sm:$0xf]
        %v398 = vld [vmem:[%s300 + $0x90] sm:$0xf]
        %v399 = vld [vmem:[%s300 + $0x94] sm:$0xf]
        %v400 = vld [vmem:[%s300 + $0x98] sm:$0xf]
        %v401 = vld [vmem:[%s300 + $0x9c] sm:$0xf]
        %v402 = vld [vmem:[%s300 + $0xa0] sm:$0xf]
        %v403 = vld [vmem:[%s300 + $0xa4] sm:$0xf]
        %v404 = vld [vmem:[%s300 + $0xa8] sm:$0xf]
        %v405 = vld [vmem:[%s300 + $0xac] sm:$0xf]
        %v406 = vld [vmem:[%s300 + $0xb0] sm:$0xf]
        %v407 = vld [vmem:[%s300 + $0xb4] sm:$0xf]
        %v408 = vld [vmem:[%s300 + $0xb8] sm:$0xf]
        %v409 = vld [vmem:[%s300 + $0xbc] sm:$0xf]
        %v410 = vld [vmem:[%s300 + $0xc0] sm:$0xf]
        %v411 = vld [vmem:[%s300 + $0xc4] sm:$0xf]
        %v412 = vld [vmem:[%s300 + $0xc8] sm:$0xf]
        %v413 = vld [vmem:[%s300 + $0xcc] sm:$0xf]
        %v414 = vld [vmem:[%s300 + $0xd0] sm:$0xf]
        %v415 = vld [vmem:[%s300 + $0xd4] sm:$0xf]
        %v416 = vld [vmem:[%s300 + $0xd8] sm:$0xf]
        %v417 = vld [vmem:[%s300 + $0xdc] sm:$0xf]
        %v418 = vld [vmem:[%s300 + $0xe0] sm:$0xf]
        %v419 = vld [vmem:[%s300 + $0xe4] sm:$0xf]
        %v420 = vld [vmem:[%s300 + $0xe8] sm:$0xf]
        %v421 = vld [vmem:[%s300 + $0xec] sm:$0xf]
        %v422 = vld [vmem:[%s300 + $0xf0] sm:$0xf]
        %v423 = vld [vmem:[%s300 + $0xf4] sm:$0xf]
        %v424 = vld [vmem:[%s300 + $0xf8] sm:$0xf]
        %v425 = vld [vmem:[%s300 + $0xfc] sm:$0xf]
        %v426 = vld [vmem:[%s300 + $0x100] sm:$0xf]
        %v427 = vld [vmem:[%s300 + $0x104] sm:$0xf]
        %v428 = vld [vmem:[%s300 + $0x108] sm:$0xf]
        %v429 = vld [vmem:[%s300 + $0x10c] sm:$0xf]
        %v430 = vld [vmem:[%s300 + $0x110] sm:$0xf]
        %v431 = vld [vmem:[%s300 + $0x114] sm:$0xf]
        %v432 = vld [vmem:[%s300 + $0x118] sm:$0xf]
        %v433 = vld [vmem:[%s300 + $0x11c] sm:$0xf]
        %v434 = vld [vmem:[%s300 + $0x120] sm:$0xf]
        %v435 = vld [vmem:[%s300 + $0x124] sm:$0xf]
        %v436 = vld [vmem:[%s300 + $0x128] sm:$0xf]
        %v437 = vld [vmem:[%s300 + $0x12c] sm:$0xf]
        %v438 = vld [vmem:[%s300 + $0x130] sm:$0xf]
        %v439 = vld [vmem:[%s300 + $0x134] sm:$0xf]
        %v440 = vld [vmem:[%s300 + $0x138] sm:$0xf]
        %v441 = vld [vmem:[%s300 + $0x13c] sm:$0xf]
        %v442 = vld [vmem:[%s300 + $0x140] sm:$0xf]
        %v443 = vld [vmem:[%s300 + $0x144] sm:$0xf]
        %v444 = vld [vmem:[%s300 + $0x148] sm:$0xf]
        %v445 = vld [vmem:[%s300 + $0x14c] sm:$0xf]
        %v446 = vld [vmem:[%s300 + $0x150] sm:$0xf]
        %v447 = vld [vmem:[%s300 + $0x154] sm:$0xf]
        %v448 = vld [vmem:[%s300 + $0x158] sm:$0xf]
        %v449 = vld [vmem:[%s300 + $0x15c] sm:$0xf]
        %v450 = vld [vmem:[%s300 + $0x160] sm:$0xf]
        %v451 = vld [vmem:[%s300 + $0x164] sm:$0xf]
        %v452 = vld [vmem:[%s300 + $0x168] sm:$0xf]
        %v453 = vld [vmem:[%s300 + $0x16c] sm:$0xf]
        %v454 = vld [vmem:[%s300 + $0x170] sm:$0xf]
        %v455 = vld [vmem:[%s300 + $0x174] sm:$0xf]
        %v456 = vld [vmem:[%s300 + $0x178] sm:$0xf]
        %v457 = vld [vmem:[%s300 + $0x17c] sm:$0xf]
        %v458 = vld [vmem:[%s300 + $0x180] sm:$0xf]
        %v459 = vld [vmem:[%s300 + $0x184] sm:$0xf]
        %v460 = vld [vmem:[%s300 + $0x188] sm:$0xf]
        %v461 = vld [vmem:[%s300 + $0x18c] sm:$0xf]
        %v462 = vld [vmem:[%s300 + $0x190] sm:$0xf]
        %v463 = vld [vmem:[%s300 + $0x194] sm:$0xf]
        %v464 = vld [vmem:[%s300 + $0x198] sm:$0xf]
        %v465 = vld [vmem:[%s300 + $0x19c] sm:$0xf]
        %v466 = vld [vmem:[%s300 + $0x1a0] sm:$0xf]
        %v467 = vld [vmem:[%s300 + $0x1a4] sm:$0xf]
        %v468 = vld [vmem:[%s300 + $0x1a8] sm:$0xf]
        %v469 = vld [vmem:[%s300 + $0x1ac] sm:$0xf]
        %v470 = vld [vmem:[%s300 + $0x1b0] sm:$0xf]
        %v471 = vld [vmem:[%s300 + $0x1b4] sm:$0xf]
        %v472 = vld [vmem:[%s300 + $0x1b8] sm:$0xf]
        %v473 = vld [vmem:[%s300 + $0x1bc] sm:$0xf]
        %v474 = vld [vmem:[%s300 + $0x1c0] sm:$0xf]
        %v475 = vld [vmem:[%s300 + $0x1c4] sm:$0xf]
        %v476 = vld [vmem:[%s300 + $0x1c8] sm:$0xf]
        %v477 = vld [vmem:[%s300 + $0x1cc] sm:$0xf]
        %v478 = vld [vmem:[%s300 + $0x1d0] sm:$0xf]
        %v479 = vld [vmem:[%s300 + $0x1d4] sm:$0xf]
        %v480 = vld [vmem:[%s300 + $0x1d8] sm:$0xf]
        %v481 = vld [vmem:[%s300 + $0x1dc] sm:$0xf]
        %v482 = vld [vmem:[%s300 + $0x1e0] sm:$0xf]
        %v483 = vld [vmem:[%s300 + $0x1e4] sm:$0xf]
        %v484 = vld [vmem:[%s300 + $0x1e8] sm:$0xf]
        %v485 = vld [vmem:[%s300 + $0x1ec] sm:$0xf]
        %v486 = vld [vmem:[%s300 + $0x1f0] sm:$0xf]
        %v487 = vld [vmem:[%s300 + $0x1f4] sm:$0xf]
        %v488 = vld [vmem:[%s300 + $0x1f8] sm:$0xf]
        %v489 = vld [vmem:[%s300 + $0x1fc] sm:$0xf]
        %v490 = vld [vmem:[#allocation7] sm:$0xff]
        %v491 = vld [vmem:[#allocation7 + $0x8] sm:$0xff]
        %v492 = vld [vmem:[#allocation7 + $0x10] sm:$0xff]
        %v493 = vld [vmem:[#allocation7 + $0x18] sm:$0xff]
        %v494 = vld [vmem:[#allocation7 + $0x20] sm:$0xff]
        %v495 = vld [vmem:[#allocation7 + $0x28] sm:$0xff]
        %v496 = vld [vmem:[#allocation7 + $0x30] sm:$0xff]
        %v497 = vld [vmem:[#allocation7 + $0x38] sm:$0xff]
        %v498 = vld [vmem:[#allocation7 + $0x40] sm:$0xff]
        %v499 = vld [vmem:[#allocation7 + $0x48] sm:$0xff]
        %v500 = vld [vmem:[#allocation7 + $0x50] sm:$0xff]
        %v501 = vld [vmem:[#allocation7 + $0x58] sm:$0xff]
        %v502 = vld [vmem:[#allocation7 + $0x60] sm:$0xff]
        %v503 = vld [vmem:[#allocation7 + $0x68] sm:$0xff]
        %v504 = vld [vmem:[#allocation7 + $0x70] sm:$0xff]
        %v505 = vld [vmem:[#allocation7 + $0x78] sm:$0xff]
        %v506 = vld [vmem:[%s3] sm:$0x3]
        %v508 = vlaneseq
        %v509 = vshrl.u32 %v508, 7
        %v510 = vsub.s32 0, %v509
        %v511 = vrot.slane %v506, %v510
        %v512 = vlaneseq
        %v513 = vshrl.u32 %v512, 7
        %v514 = vsub.s32 1, %v513
        %v515 = vrot.slane %v506, %v514
        %v646 = vunpack.c.l.b16 %v362
        %v647 = vunpack.c.l.b16 %v363
        %v648 = vunpack.c.l.b16 %v364
        %v649 = vunpack.c.l.b16 %v365
        %v650 = vunpack.c.l.b16 %v366
        %v651 = vunpack.c.l.b16 %v367
        %v652 = vunpack.c.l.b16 %v368
        %v653 = vunpack.c.l.b16 %v369
        %v654 = vunpack.c.l.b16 %v370
        %v655 = vunpack.c.l.b16 %v371
        %v656 = vunpack.c.l.b16 %v372
        %v657 = vunpack.c.l.b16 %v373
        %v658 = vunpack.c.l.b16 %v374
        %v659 = vunpack.c.l.b16 %v375
        %v660 = vunpack.c.l.b16 %v376
        %v661 = vunpack.c.l.b16 %v377
        %v662 = vunpack.c.l.b16 %v378
        %v663 = vunpack.c.l.b16 %v379
        %v664 = vunpack.c.l.b16 %v380
        %v665 = vunpack.c.l.b16 %v381
        %v666 = vunpack.c.l.b16 %v382
        %v667 = vunpack.c.l.b16 %v383
        %v668 = vunpack.c.l.b16 %v384
        %v669 = vunpack.c.l.b16 %v385
        %v670 = vunpack.c.l.b16 %v386
        %v671 = vunpack.c.l.b16 %v387
        %v672 = vunpack.c.l.b16 %v388
        %v673 = vunpack.c.l.b16 %v389
        %v674 = vunpack.c.l.b16 %v390
        %v675 = vunpack.c.l.b16 %v391
        %v676 = vunpack.c.l.b16 %v392
        %v677 = vunpack.c.l.b16 %v393
        %v678 = vunpack.c.l.b16 %v394
        %v679 = vunpack.c.l.b16 %v395
        %v680 = vunpack.c.l.b16 %v396
        %v681 = vunpack.c.l.b16 %v397
        %v682 = vunpack.c.l.b16 %v398
        %v683 = vunpack.c.l.b16 %v399
        %v684 = vunpack.c.l.b16 %v400
        %v685 = vunpack.c.l.b16 %v401
        %v686 = vunpack.c.l.b16 %v402
        %v687 = vunpack.c.l.b16 %v403
        %v688 = vunpack.c.l.b16 %v404
        %v689 = vunpack.c.l.b16 %v405
        %v690 = vunpack.c.l.b16 %v406
        %v691 = vunpack.c.l.b16 %v407
        %v692 = vunpack.c.l.b16 %v408
        %v693 = vunpack.c.l.b16 %v409
        %v694 = vunpack.c.l.b16 %v410
        %v695 = vunpack.c.l.b16 %v411
        %v696 = vunpack.c.l.b16 %v412
        %v697 = vunpack.c.l.b16 %v413
        %v698 = vunpack.c.l.b16 %v414
        %v699 = vunpack.c.l.b16 %v415
        %v700 = vunpack.c.l.b16 %v416
        %v701 = vunpack.c.l.b16 %v417
        %v702 = vunpack.c.l.b16 %v418
        %v703 = vunpack.c.l.b16 %v419
        %v704 = vunpack.c.l.b16 %v420
        %v705 = vunpack.c.l.b16 %v421
        %v706 = vunpack.c.l.b16 %v422
        %v707 = vunpack.c.l.b16 %v423
        %v708 = vunpack.c.l.b16 %v424
        %v709 = vunpack.c.l.b16 %v425
        %v710 = vunpack.c.l.b16 %v426
        %v711 = vunpack.c.l.b16 %v427
        %v712 = vunpack.c.l.b16 %v428
        %v713 = vunpack.c.l.b16 %v429
        %v714 = vunpack.c.l.b16 %v430
        %v715 = vunpack.c.l.b16 %v431
        %v716 = vunpack.c.l.b16 %v432
        %v717 = vunpack.c.l.b16 %v433
        %v718 = vunpack.c.l.b16 %v434
        %v719 = vunpack.c.l.b16 %v435
        %v720 = vunpack.c.l.b16 %v436
        %v721 = vunpack.c.l.b16 %v437
        %v722 = vunpack.c.l.b16 %v438
        %v723 = vunpack.c.l.b16 %v439
        %v724 = vunpack.c.l.b16 %v440
        %v725 = vunpack.c.l.b16 %v441
        %v726 = vunpack.c.l.b16 %v442
        %v727 = vunpack.c.l.b16 %v443
        %v728 = vunpack.c.l.b16 %v444
        %v729 = vunpack.c.l.b16 %v445
        %v730 = vunpack.c.l.b16 %v446
        %v731 = vunpack.c.l.b16 %v447
        %v732 = vunpack.c.l.b16 %v448
        %v733 = vunpack.c.l.b16 %v449
        %v734 = vunpack.c.l.b16 %v450
        %v735 = vunpack.c.l.b16 %v451
        %v736 = vunpack.c.l.b16 %v452
        %v737 = vunpack.c.l.b16 %v453
        %v738 = vunpack.c.l.b16 %v454
        %v739 = vunpack.c.l.b16 %v455
        %v740 = vunpack.c.l.b16 %v456
        %v741 = vunpack.c.l.b16 %v457
        %v742 = vunpack.c.l.b16 %v458
        %v743 = vunpack.c.l.b16 %v459
        %v744 = vunpack.c.l.b16 %v460
        %v745 = vunpack.c.l.b16 %v461
        %v746 = vunpack.c.l.b16 %v462
        %v747 = vunpack.c.l.b16 %v463
        %v748 = vunpack.c.l.b16 %v464
        %v749 = vunpack.c.l.b16 %v465
        %v750 = vunpack.c.l.b16 %v466
        %v751 = vunpack.c.l.b16 %v467
        %v752 = vunpack.c.l.b16 %v468
        %v753 = vunpack.c.l.b16 %v469
        %v754 = vunpack.c.l.b16 %v470
        %v755 = vunpack.c.l.b16 %v471
        %v756 = vunpack.c.l.b16 %v472
        %v757 = vunpack.c.l.b16 %v473
        %v758 = vunpack.c.l.b16 %v474
        %v759 = vunpack.c.l.b16 %v475
        %v760 = vunpack.c.l.b16 %v476
        %v761 = vunpack.c.l.b16 %v477
        %v762 = vunpack.c.l.b16 %v478
        %v763 = vunpack.c.l.b16 %v479
        %v764 = vunpack.c.l.b16 %v480
        %v765 = vunpack.c.l.b16 %v481
        %v766 = vunpack.c.l.b16 %v482
        %v767 = vunpack.c.l.b16 %v483
        %v768 = vunpack.c.l.b16 %v484
        %v769 = vunpack.c.l.b16 %v485
        %v770 = vunpack.c.l.b16 %v486
        %v771 = vunpack.c.l.b16 %v487
        %v772 = vunpack.c.l.b16 %v488
        %v773 = vunpack.c.l.b16 %v489
        %v774 = vpack.c.b16 %v647, %v646
        %v775 = vpack.c.b16 %v649, %v648
        %v776 = vpack.c.b16 %v651, %v650
        %v777 = vpack.c.b16 %v653, %v652
        %v778 = vpack.c.b16 %v655, %v654
        %v779 = vpack.c.b16 %v657, %v656
        %v780 = vpack.c.b16 %v659, %v658
        %v781 = vpack.c.b16 %v661, %v660
        %v782 = vpack.c.b16 %v663, %v662
        %v783 = vpack.c.b16 %v665, %v664
        %v784 = vpack.c.b16 %v667, %v666
        %v785 = vpack.c.b16 %v669, %v668
        %v786 = vpack.c.b16 %v671, %v670
        %v787 = vpack.c.b16 %v673, %v672
        %v788 = vpack.c.b16 %v675, %v674
        %v789 = vpack.c.b16 %v677, %v676
        %v790 = vpack.c.b16 %v679, %v678
        %v791 = vpack.c.b16 %v681, %v680
        %v792 = vpack.c.b16 %v683, %v682
        %v793 = vpack.c.b16 %v685, %v684
        %v794 = vpack.c.b16 %v687, %v686
        %v795 = vpack.c.b16 %v689, %v688
        %v796 = vpack.c.b16 %v691, %v690
        %v797 = vpack.c.b16 %v693, %v692
        %v798 = vpack.c.b16 %v695, %v694
        %v799 = vpack.c.b16 %v697, %v696
        %v800 = vpack.c.b16 %v699, %v698
        %v801 = vpack.c.b16 %v701, %v700
        %v802 = vpack.c.b16 %v703, %v702
        %v803 = vpack.c.b16 %v705, %v704
        %v804 = vpack.c.b16 %v707, %v706
        %v805 = vpack.c.b16 %v709, %v708
        %v806 = vpack.c.b16 %v711, %v710
        %v807 = vpack.c.b16 %v713, %v712
        %v808 = vpack.c.b16 %v715, %v714
        %v809 = vpack.c.b16 %v717, %v716
        %v810 = vpack.c.b16 %v719, %v718
        %v811 = vpack.c.b16 %v721, %v720
        %v812 = vpack.c.b16 %v723, %v722
        %v813 = vpack.c.b16 %v725, %v724
        %v814 = vpack.c.b16 %v727, %v726
        %v815 = vpack.c.b16 %v729, %v728
        %v816 = vpack.c.b16 %v731, %v730
        %v817 = vpack.c.b16 %v733, %v732
        %v818 = vpack.c.b16 %v735, %v734
        %v819 = vpack.c.b16 %v737, %v736
        %v820 = vpack.c.b16 %v739, %v738
        %v821 = vpack.c.b16 %v741, %v740
        %v822 = vpack.c.b16 %v743, %v742
        %v823 = vpack.c.b16 %v745, %v744
        %v824 = vpack.c.b16 %v747, %v746
        %v825 = vpack.c.b16 %v749, %v748
        %v826 = vpack.c.b16 %v751, %v750
        %v827 = vpack.c.b16 %v753, %v752
        %v828 = vpack.c.b16 %v755, %v754
        %v829 = vpack.c.b16 %v757, %v756
        %v830 = vpack.c.b16 %v759, %v758
        %v831 = vpack.c.b16 %v761, %v760
        %v832 = vpack.c.b16 %v763, %v762
        %v833 = vpack.c.b16 %v765, %v764
        %v834 = vpack.c.b16 %v767, %v766
        %v835 = vpack.c.b16 %v769, %v768
        %v836 = vpack.c.b16 %v771, %v770
        %v837 = vpack.c.b16 %v773, %v772
        %v918 = vunpack.c.l.b16 %v490
        %v919 = vunpack.c.h.b16 %v490
        %v920 = vunpack.c.l.b16 %v491
        %v921 = vunpack.c.h.b16 %v491
        %v922 = vunpack.c.l.b16 %v492
        %v923 = vunpack.c.h.b16 %v492
        %v924 = vunpack.c.l.b16 %v493
        %v925 = vunpack.c.h.b16 %v493
        %v926 = vunpack.c.l.b16 %v494
        %v927 = vunpack.c.h.b16 %v494
        %v928 = vunpack.c.l.b16 %v495
        %v929 = vunpack.c.h.b16 %v495
        %v930 = vunpack.c.l.b16 %v496
        %v931 = vunpack.c.h.b16 %v496
        %v932 = vunpack.c.l.b16 %v497
        %v933 = vunpack.c.h.b16 %v497
        %v934 = vunpack.c.l.b16 %v498
        %v935 = vunpack.c.h.b16 %v498
        %v936 = vunpack.c.l.b16 %v499
        %v937 = vunpack.c.h.b16 %v499
        %v938 = vunpack.c.l.b16 %v500
        %v939 = vunpack.c.h.b16 %v500
        %v940 = vunpack.c.l.b16 %v501
        %v941 = vunpack.c.h.b16 %v501
        %v942 = vunpack.c.l.b16 %v502
        %v943 = vunpack.c.h.b16 %v502
        %v944 = vunpack.c.l.b16 %v503
        %v945 = vunpack.c.h.b16 %v503
        %v946 = vunpack.c.l.b16 %v504
        %v947 = vunpack.c.h.b16 %v504
        %v948 = vunpack.c.l.b16 %v505
        %v949 = vunpack.c.h.b16 %v505
        %v950 = vpack.c.b16 %v920, %v918
        %v951 = vpack.c.b16 %v921, %v919
        %v952 = vpack.c.b16 %v924, %v922
        %v953 = vpack.c.b16 %v925, %v923
        %v954 = vpack.c.b16 %v928, %v926
        %v955 = vpack.c.b16 %v929, %v927
        %v956 = vpack.c.b16 %v932, %v930
        %v957 = vpack.c.b16 %v933, %v931
        %v958 = vpack.c.b16 %v936, %v934
        %v959 = vpack.c.b16 %v937, %v935
        %v960 = vpack.c.b16 %v940, %v938
        %v961 = vpack.c.b16 %v941, %v939
        %v962 = vpack.c.b16 %v944, %v942
        %v963 = vpack.c.b16 %v945, %v943
        %v964 = vpack.c.b16 %v948, %v946
        %v965 = vpack.c.b16 %v949, %v947
        %982 = vmatprep.subr.bf16.mxu0 %v951
        %983 = vmatpush1.bf16.msra.mxu0 %v950
        %984 = vmatprep.subr.bf16.mxu0 %v953
        %985 = vmatpush1.bf16.msra.mxu0 %v952
        %986 = vmatprep.subr.bf16.mxu0 %v955
        %987 = vmatpush1.bf16.msra.mxu0 %v954
        %988 = vmatprep.subr.bf16.mxu0 %v957
        %989 = vmatpush1.bf16.msra.mxu0 %v956
        %990 = vmatprep.subr.bf16.mxu0 %v959
        %991 = vmatpush1.bf16.msra.mxu0 %v958
        %992 = vmatprep.subr.bf16.mxu0 %v961
        %993 = vmatpush1.bf16.msra.mxu0 %v960
        %994 = vmatprep.subr.bf16.mxu0 %v963
        %995 = vmatpush1.bf16.msra.mxu0 %v962
        %996 = vmatprep.subr.bf16.mxu0 %v965
        %997 = vmatpush1.bf16.msra.mxu0 %v964
        %998 = vmatprep.subr.bf16.mxu0 0
        %999 = vmatpush1.bf16.msra.mxu0 0
        %1000 = vmatprep.subr.bf16.mxu0 0
        %1001 = vmatpush1.bf16.msra.mxu0 0
        %1002 = vmatprep.subr.bf16.mxu0 0
        %1003 = vmatpush1.bf16.msra.mxu0 0
        %1004 = vmatprep.subr.bf16.mxu0 0
        %1005 = vmatpush1.bf16.msra.mxu0 0
        %1006 = vmatprep.subr.bf16.mxu0 0
        %1007 = vmatpush1.bf16.msra.mxu0 0
        %1008 = vmatprep.subr.bf16.mxu0 0
        %1009 = vmatpush1.bf16.msra.mxu0 0
        %1010 = vmatprep.subr.bf16.mxu0 0
        %1011 = vmatpush1.bf16.msra.mxu0 0
        %1012 = vmatprep.subr.bf16.mxu0 0
        %1013 = vmatpush1.bf16.msra.mxu0 0
        %1014 = vmatprep.mubr.bf16.mxu0 0
        %1015 = vmatmul.mubr.bf16.gmra.mrb[0].mxu0 %v774
        %v1016 = vpop.f32.mrb[0].mxu0
        %v1017 = vadd.f32 %v511, %v1016
        %v1018 = vpop.f32.mrb[0].mxu0
        %v1019 = vadd.f32 %v515, %v1018
        %v1020 = vpop.f32.mrb[0].mxu0
        %v1021 = vadd.f32 %v511, %v1020
        %v1022 = vpop.f32.mrb[0].mxu0
        %v1023 = vadd.f32 %v515, %v1022
        %1024 = vmatprep.mubr.bf16.mxu0 0
        %1025 = vmatmul.mubr.bf16.gmra.mrb[0].mxu0 %v775
        %v1026 = vpop.f32.mrb[0].mxu0
        %v1027 = vadd.f32 %v511, %v1026
        %v1028 = vpop.f32.mrb[0].mxu0
        %v1029 = vadd.f32 %v515, %v1028
        %v1030 = vpop.f32.mrb[0].mxu0
        %v1031 = vadd.f32 %v511, %v1030
        %v1032 = vpop.f32.mrb[0].mxu0
        %v1033 = vadd.f32 %v515, %v1032
        %1034 = vmatprep.mubr.bf16.mxu0 0
        %1035 = vmatmul.mubr.bf16.gmra.mrb[0].mxu0 %v776
        %v1036 = vpop.f32.mrb[0].mxu0
        %v1037 = vadd.f32 %v511, %v1036
        %v1038 = vpop.f32.mrb[0].mxu0
        %v1039 = vadd.f32 %v515, %v1038
        %v1040 = vpop.f32.mrb[0].mxu0
        %v1041 = vadd.f32 %v511, %v1040
        %v1042 = vpop.f32.mrb[0].mxu0
        %v1043 = vadd.f32 %v515, %v1042
        %1044 = vmatprep.mubr.bf16.mxu0 0
        %1045 = vmatmul.mubr.bf16.gmra.mrb[0].mxu0 %v777
        %v1046 = vpop.f32.mrb[0].mxu0
        %v1047 = vadd.f32 %v511, %v1046
        %v1048 = vpop.f32.mrb[0].mxu0
        %v1049 = vadd.f32 %v515, %v1048
        %v1050 = vpop.f32.mrb[0].mxu0
        %v1051 = vadd.f32 %v511, %v1050
        %v1052 = vpop.f32.mrb[0].mxu0
        %v1053 = vadd.f32 %v515, %v1052
        %1054 = vmatprep.mubr.bf16.mxu0 0
        %1055 = vmatmul.mubr.bf16.gmra.mrb[0].mxu0 %v778
        %v1056 = vpop.f32.mrb[0].mxu0
        %v1057 = vadd.f32 %v511, %v1056
        %v1058 = vpop.f32.mrb[0].mxu0
        %v1059 = vadd.f32 %v515, %v1058
        %v1060 = vpop.f32.mrb[0].mxu0
        %v1061 = vadd.f32 %v511, %v1060
        %v1062 = vpop.f32.mrb[0].mxu0
        %v1063 = vadd.f32 %v515, %v1062
        %1064 = vmatprep.mubr.bf16.mxu0 0
        %1065 = vmatmul.mubr.bf16.gmra.mrb[0].mxu0 %v779
        %v1066 = vpop.f32.mrb[0].mxu0
        %v1067 = vadd.f32 %v511, %v1066
        %v1068 = vpop.f32.mrb[0].mxu0
        %v1069 = vadd.f32 %v515, %v1068
        %v1070 = vpop.f32.mrb[0].mxu0
        %v1071 = vadd.f32 %v511, %v1070
        %v1072 = vpop.f32.mrb[0].mxu0
        %v1073 = vadd.f32 %v515, %v1072
        %1074 = vmatprep.mubr.bf16.mxu0 0
        %1075 = vmatmul.mubr.bf16.gmra.mrb[0].mxu0 %v780
        %v1076 = vpop.f32.mrb[0].mxu0
        %v1077 = vadd.f32 %v511, %v1076
        %v1078 = vpop.f32.mrb[0].mxu0
        %v1079 = vadd.f32 %v515, %v1078
        %v1080 = vpop.f32.mrb[0].mxu0
        %v1081 = vadd.f32 %v511, %v1080
        %v1082 = vpop.f32.mrb[0].mxu0
        %v1083 = vadd.f32 %v515, %v1082
        %1084 = vmatprep.mubr.bf16.mxu0 0
        %1085 = vmatmul.mubr.bf16.gmra.mrb[0].mxu0 %v781
        %v1086 = vpop.f32.mrb[0].mxu0
        %v1087 = vadd.f32 %v511, %v1086
        %v1088 = vpop.f32.mrb[0].mxu0
        %v1089 = vadd.f32 %v515, %v1088
        %v1090 = vpop.f32.mrb[0].mxu0
        %v1091 = vadd.f32 %v511, %v1090
        %v1092 = vpop.f32.mrb[0].mxu0
        %v1093 = vadd.f32 %v515, %v1092
        %1094 = vmatprep.mubr.bf16.mxu0 0
        %1095 = vmatmul.mubr.bf16.gmra.mrb[0].mxu0 %v782
        %v1096 = vpop.f32.mrb[0].mxu0
        %v1097 = vadd.f32 %v511, %v1096
        %v1098 = vpop.f32.mrb[0].mxu0
        %v1099 = vadd.f32 %v515, %v1098
        %v1100 = vpop.f32.mrb[0].mxu0
        %v1101 = vadd.f32 %v511, %v1100
        %v1102 = vpop.f32.mrb[0].mxu0
        %v1103 = vadd.f32 %v515, %v1102
        %1104 = vmatprep.mubr.bf16.mxu0 0
        %1105 = vmatmul.mubr.bf16.gmra.mrb[0].mxu0 %v783
        %v1106 = vpop.f32.mrb[0].mxu0
        %v1107 = vadd.f32 %v511, %v1106
        %v1108 = vpop.f32.mrb[0].mxu0
        %v1109 = vadd.f32 %v515, %v1108
        %v1110 = vpop.f32.mrb[0].mxu0
        %v1111 = vadd.f32 %v511, %v1110
        %v1112 = vpop.f32.mrb[0].mxu0
        %v1113 = vadd.f32 %v515, %v1112
        %1114 = vmatprep.mubr.bf16.mxu0 0
        %1115 = vmatmul.mubr.bf16.gmra.mrb[0].mxu0 %v784
        %v1116 = vpop.f32.mrb[0].mxu0
        %v1117 = vadd.f32 %v511, %v1116
        %v1118 = vpop.f32.mrb[0].mxu0
        %v1119 = vadd.f32 %v515, %v1118
        %v1120 = vpop.f32.mrb[0].mxu0
        %v1121 = vadd.f32 %v511, %v1120
        %v1122 = vpop.f32.mrb[0].mxu0
        %v1123 = vadd.f32 %v515, %v1122
        %1124 = vmatprep.mubr.bf16.mxu0 0
        %1125 = vmatmul.mubr.bf16.gmra.mrb[0].mxu0 %v785
        %v1126 = vpop.f32.mrb[0].mxu0
        %v1127 = vadd.f32 %v511, %v1126
        %v1128 = vpop.f32.mrb[0].mxu0
        %v1129 = vadd.f32 %v515, %v1128
        %v1130 = vpop.f32.mrb[0].mxu0
        %v1131 = vadd.f32 %v511, %v1130
        %v1132 = vpop.f32.mrb[0].mxu0
        %v1133 = vadd.f32 %v515, %v1132
        %1134 = vmatprep.mubr.bf16.mxu0 0
        %1135 = vmatmul.mubr.bf16.gmra.mrb[0].mxu0 %v786
        %v1136 = vpop.f32.mrb[0].mxu0
        %v1137 = vadd.f32 %v511, %v1136
        %v1138 = vpop.f32.mrb[0].mxu0
        %v1139 = vadd.f32 %v515, %v1138
        %v1140 = vpop.f32.mrb[0].mxu0
        %v1141 = vadd.f32 %v511, %v1140
        %v1142 = vpop.f32.mrb[0].mxu0
        %v1143 = vadd.f32 %v515, %v1142
        %1144 = vmatprep.mubr.bf16.mxu0 0
        %1145 = vmatmul.mubr.bf16.gmra.mrb[0].mxu0 %v787
        %v1146 = vpop.f32.mrb[0].mxu0
        %v1147 = vadd.f32 %v511, %v1146
        %v1148 = vpop.f32.mrb[0].mxu0
        %v1149 = vadd.f32 %v515, %v1148
        %v1150 = vpop.f32.mrb[0].mxu0
        %v1151 = vadd.f32 %v511, %v1150
        %v1152 = vpop.f32.mrb[0].mxu0
        %v1153 = vadd.f32 %v515, %v1152
        %1154 = vmatprep.mubr.bf16.mxu0 0
        %1155 = vmatmul.mubr.bf16.gmra.mrb[0].mxu0 %v788
        %v1156 = vpop.f32.mrb[0].mxu0
        %v1157 = vadd.f32 %v511, %v1156
        %v1158 = vpop.f32.mrb[0].mxu0
        %v1159 = vadd.f32 %v515, %v1158
        %v1160 = vpop.f32.mrb[0].mxu0
        %v1161 = vadd.f32 %v511, %v1160
        %v1162 = vpop.f32.mrb[0].mxu0
        %v1163 = vadd.f32 %v515, %v1162
        %1164 = vmatprep.mubr.bf16.mxu0 0
        %1165 = vmatmul.mubr.bf16.gmra.mrb[0].mxu0 %v789
        %v1166 = vpop.f32.mrb[0].mxu0
        %v1167 = vadd.f32 %v511, %v1166
        %v1168 = vpop.f32.mrb[0].mxu0
        %v1169 = vadd.f32 %v515, %v1168
        %v1170 = vpop.f32.mrb[0].mxu0
        %v1171 = vadd.f32 %v511, %v1170
        %v1172 = vpop.f32.mrb[0].mxu0
        %v1173 = vadd.f32 %v515, %v1172
        %1174 = vmatprep.mubr.bf16.mxu0 0
        %1175 = vmatmul.mubr.bf16.gmra.mrb[0].mxu0 %v790
        %v1176 = vpop.f32.mrb[0].mxu0
        %v1177 = vadd.f32 %v511, %v1176
        %v1178 = vpop.f32.mrb[0].mxu0
        %v1179 = vadd.f32 %v515, %v1178
        %v1180 = vpop.f32.mrb[0].mxu0
        %v1181 = vadd.f32 %v511, %v1180
        %v1182 = vpop.f32.mrb[0].mxu0
        %v1183 = vadd.f32 %v515, %v1182
        %1184 = vmatprep.mubr.bf16.mxu0 0
        %1185 = vmatmul.mubr.bf16.gmra.mrb[0].mxu0 %v791
        %v1186 = vpop.f32.mrb[0].mxu0
        %v1187 = vadd.f32 %v511, %v1186
        %v1188 = vpop.f32.mrb[0].mxu0
        %v1189 = vadd.f32 %v515, %v1188
        %v1190 = vpop.f32.mrb[0].mxu0
        %v1191 = vadd.f32 %v511, %v1190
        %v1192 = vpop.f32.mrb[0].mxu0
        %v1193 = vadd.f32 %v515, %v1192
        %1194 = vmatprep.mubr.bf16.mxu0 0
        %1195 = vmatmul.mubr.bf16.gmra.mrb[0].mxu0 %v792
        %v1196 = vpop.f32.mrb[0].mxu0
        %v1197 = vadd.f32 %v511, %v1196
        %v1198 = vpop.f32.mrb[0].mxu0
        %v1199 = vadd.f32 %v515, %v1198
        %v1200 = vpop.f32.mrb[0].mxu0
        %v1201 = vadd.f32 %v511, %v1200
        %v1202 = vpop.f32.mrb[0].mxu0
        %v1203 = vadd.f32 %v515, %v1202
        %1204 = vmatprep.mubr.bf16.mxu0 0
        %1205 = vmatmul.mubr.bf16.gmra.mrb[0].mxu0 %v793
        %v1206 = vpop.f32.mrb[0].mxu0
        %v1207 = vadd.f32 %v511, %v1206
        %v1208 = vpop.f32.mrb[0].mxu0
        %v1209 = vadd.f32 %v515, %v1208
        %v1210 = vpop.f32.mrb[0].mxu0
        %v1211 = vadd.f32 %v511, %v1210
        %v1212 = vpop.f32.mrb[0].mxu0
        %v1213 = vadd.f32 %v515, %v1212
        %1214 = vmatprep.mubr.bf16.mxu0 0
        %1215 = vmatmul.mubr.bf16.gmra.mrb[0].mxu0 %v794
        %v1216 = vpop.f32.mrb[0].mxu0
        %v1217 = vadd.f32 %v511, %v1216
        %v1218 = vpop.f32.mrb[0].mxu0
        %v1219 = vadd.f32 %v515, %v1218
        %v1220 = vpop.f32.mrb[0].mxu0
        %v1221 = vadd.f32 %v511, %v1220
        %v1222 = vpop.f32.mrb[0].mxu0
        %v1223 = vadd.f32 %v515, %v1222
        %1224 = vmatprep.mubr.bf16.mxu0 0
        %1225 = vmatmul.mubr.bf16.gmra.mrb[0].mxu0 %v795
        %v1226 = vpop.f32.mrb[0].mxu0
        %v1227 = vadd.f32 %v511, %v1226
        %v1228 = vpop.f32.mrb[0].mxu0
        %v1229 = vadd.f32 %v515, %v1228
        %v1230 = vpop.f32.mrb[0].mxu0
        %v1231 = vadd.f32 %v511, %v1230
        %v1232 = vpop.f32.mrb[0].mxu0
        %v1233 = vadd.f32 %v515, %v1232
        %1234 = vmatprep.mubr.bf16.mxu0 0
        %1235 = vmatmul.mubr.bf16.gmra.mrb[0].mxu0 %v796
        %v1236 = vpop.f32.mrb[0].mxu0
        %v1237 = vadd.f32 %v511, %v1236
        %v1238 = vpop.f32.mrb[0].mxu0
        %v1239 = vadd.f32 %v515, %v1238
        %v1240 = vpop.f32.mrb[0].mxu0
        %v1241 = vadd.f32 %v511, %v1240
        %v1242 = vpop.f32.mrb[0].mxu0
        %v1243 = vadd.f32 %v515, %v1242
        %1244 = vmatprep.mubr.bf16.mxu0 0
        %1245 = vmatmul.mubr.bf16.gmra.mrb[0].mxu0 %v797
        %v1246 = vpop.f32.mrb[0].mxu0
        %v1247 = vadd.f32 %v511, %v1246
        %v1248 = vpop.f32.mrb[0].mxu0
        %v1249 = vadd.f32 %v515, %v1248
        %v1250 = vpop.f32.mrb[0].mxu0
        %v1251 = vadd.f32 %v511, %v1250
        %v1252 = vpop.f32.mrb[0].mxu0
        %v1253 = vadd.f32 %v515, %v1252
        %1254 = vmatprep.mubr.bf16.mxu0 0
        %1255 = vmatmul.mubr.bf16.gmra.mrb[0].mxu0 %v798
        %v1256 = vpop.f32.mrb[0].mxu0
        %v1257 = vadd.f32 %v511, %v1256
        %v1258 = vpop.f32.mrb[0].mxu0
        %v1259 = vadd.f32 %v515, %v1258
        %v1260 = vpop.f32.mrb[0].mxu0
        %v1261 = vadd.f32 %v511, %v1260
        %v1262 = vpop.f32.mrb[0].mxu0
        %v1263 = vadd.f32 %v515, %v1262
        %1264 = vmatprep.mubr.bf16.mxu0 0
        %1265 = vmatmul.mubr.bf16.gmra.mrb[0].mxu0 %v799
        %v1266 = vpop.f32.mrb[0].mxu0
        %v1267 = vadd.f32 %v511, %v1266
        %v1268 = vpop.f32.mrb[0].mxu0
        %v1269 = vadd.f32 %v515, %v1268
        %v1270 = vpop.f32.mrb[0].mxu0
        %v1271 = vadd.f32 %v511, %v1270
        %v1272 = vpop.f32.mrb[0].mxu0
        %v1273 = vadd.f32 %v515, %v1272
        %1274 = vmatprep.mubr.bf16.mxu0 0
        %1275 = vmatmul.mubr.bf16.gmra.mrb[0].mxu0 %v800
        %v1276 = vpop.f32.mrb[0].mxu0
        %v1277 = vadd.f32 %v511, %v1276
        %v1278 = vpop.f32.mrb[0].mxu0
        %v1279 = vadd.f32 %v515, %v1278
        %v1280 = vpop.f32.mrb[0].mxu0
        %v1281 = vadd.f32 %v511, %v1280
        %v1282 = vpop.f32.mrb[0].mxu0
        %v1283 = vadd.f32 %v515, %v1282
        %1284 = vmatprep.mubr.bf16.mxu0 0
        %1285 = vmatmul.mubr.bf16.gmra.mrb[0].mxu0 %v801
        %v1286 = vpop.f32.mrb[0].mxu0
        %v1287 = vadd.f32 %v511, %v1286
        %v1288 = vpop.f32.mrb[0].mxu0
        %v1289 = vadd.f32 %v515, %v1288
        %v1290 = vpop.f32.mrb[0].mxu0
        %v1291 = vadd.f32 %v511, %v1290
        %v1292 = vpop.f32.mrb[0].mxu0
        %v1293 = vadd.f32 %v515, %v1292
        %1294 = vmatprep.mubr.bf16.mxu0 0
        %1295 = vmatmul.mubr.bf16.gmra.mrb[0].mxu0 %v802
        %v1296 = vpop.f32.mrb[0].mxu0
        %v1297 = vadd.f32 %v511, %v1296
        %v1298 = vpop.f32.mrb[0].mxu0
        %v1299 = vadd.f32 %v515, %v1298
        %v1300 = vpop.f32.mrb[0].mxu0
        %v1301 = vadd.f32 %v511, %v1300
        %v1302 = vpop.f32.mrb[0].mxu0
        %v1303 = vadd.f32 %v515, %v1302
        %1304 = vmatprep.mubr.bf16.mxu0 0
        %1305 = vmatmul.mubr.bf16.gmra.mrb[0].mxu0 %v803
        %v1306 = vpop.f32.mrb[0].mxu0
        %v1307 = vadd.f32 %v511, %v1306
        %v1308 = vpop.f32.mrb[0].mxu0
        %v1309 = vadd.f32 %v515, %v1308
        %v1310 = vpop.f32.mrb[0].mxu0
        %v1311 = vadd.f32 %v511, %v1310
        %v1312 = vpop.f32.mrb[0].mxu0
        %v1313 = vadd.f32 %v515, %v1312
        %1314 = vmatprep.mubr.bf16.mxu0 0
        %1315 = vmatmul.mubr.bf16.gmra.mrb[0].mxu0 %v804
        %v1316 = vpop.f32.mrb[0].mxu0
        %v1317 = vadd.f32 %v511, %v1316
        %v1318 = vpop.f32.mrb[0].mxu0
        %v1319 = vadd.f32 %v515, %v1318
        %v1320 = vpop.f32.mrb[0].mxu0
        %v1321 = vadd.f32 %v511, %v1320
        %v1322 = vpop.f32.mrb[0].mxu0
        %v1323 = vadd.f32 %v515, %v1322
        %1324 = vmatprep.mubr.bf16.mxu0 0
        %1325 = vmatmul.mubr.bf16.gmra.mrb[0].mxu0 %v805
        %v1326 = vpop.f32.mrb[0].mxu0
        %v1327 = vadd.f32 %v511, %v1326
        %v1328 = vpop.f32.mrb[0].mxu0
        %v1329 = vadd.f32 %v515, %v1328
        %v1330 = vpop.f32.mrb[0].mxu0
        %v1331 = vadd.f32 %v511, %v1330
        %v1332 = vpop.f32.mrb[0].mxu0
        %v1333 = vadd.f32 %v515, %v1332
        %1334 = vmatprep.mubr.bf16.mxu0 0
        %1335 = vmatmul.mubr.bf16.gmra.mrb[0].mxu0 %v806
        %v1336 = vpop.f32.mrb[0].mxu0
        %v1337 = vadd.f32 %v511, %v1336
        %v1338 = vpop.f32.mrb[0].mxu0
        %v1339 = vadd.f32 %v515, %v1338
        %v1340 = vpop.f32.mrb[0].mxu0
        %v1341 = vadd.f32 %v511, %v1340
        %v1342 = vpop.f32.mrb[0].mxu0
        %v1343 = vadd.f32 %v515, %v1342
        %1344 = vmatprep.mubr.bf16.mxu0 0
        %1345 = vmatmul.mubr.bf16.gmra.mrb[0].mxu0 %v807
        %v1346 = vpop.f32.mrb[0].mxu0
        %v1347 = vadd.f32 %v511, %v1346
        %v1348 = vpop.f32.mrb[0].mxu0
        %v1349 = vadd.f32 %v515, %v1348
        %v1350 = vpop.f32.mrb[0].mxu0
        %v1351 = vadd.f32 %v511, %v1350
        %v1352 = vpop.f32.mrb[0].mxu0
        %v1353 = vadd.f32 %v515, %v1352
        %1354 = vmatprep.mubr.bf16.mxu0 0
        %1355 = vmatmul.mubr.bf16.gmra.mrb[0].mxu0 %v808
        %v1356 = vpop.f32.mrb[0].mxu0
        %v1357 = vadd.f32 %v511, %v1356
        %v1358 = vpop.f32.mrb[0].mxu0
        %v1359 = vadd.f32 %v515, %v1358
        %v1360 = vpop.f32.mrb[0].mxu0
        %v1361 = vadd.f32 %v511, %v1360
        %v1362 = vpop.f32.mrb[0].mxu0
        %v1363 = vadd.f32 %v515, %v1362
        %1364 = vmatprep.mubr.bf16.mxu0 0
        %1365 = vmatmul.mubr.bf16.gmra.mrb[0].mxu0 %v809
        %v1366 = vpop.f32.mrb[0].mxu0
        %v1367 = vadd.f32 %v511, %v1366
        %v1368 = vpop.f32.mrb[0].mxu0
        %v1369 = vadd.f32 %v515, %v1368
        %v1370 = vpop.f32.mrb[0].mxu0
        %v1371 = vadd.f32 %v511, %v1370
        %v1372 = vpop.f32.mrb[0].mxu0
        %v1373 = vadd.f32 %v515, %v1372
        %1374 = vmatprep.mubr.bf16.mxu0 0
        %1375 = vmatmul.mubr.bf16.gmra.mrb[0].mxu0 %v810
        %v1376 = vpop.f32.mrb[0].mxu0
        %v1377 = vadd.f32 %v511, %v1376
        %v1378 = vpop.f32.mrb[0].mxu0
        %v1379 = vadd.f32 %v515, %v1378
        %v1380 = vpop.f32.mrb[0].mxu0
        %v1381 = vadd.f32 %v511, %v1380
        %v1382 = vpop.f32.mrb[0].mxu0
        %v1383 = vadd.f32 %v515, %v1382
        %1384 = vmatprep.mubr.bf16.mxu0 0
        %1385 = vmatmul.mubr.bf16.gmra.mrb[0].mxu0 %v811
        %v1386 = vpop.f32.mrb[0].mxu0
        %v1387 = vadd.f32 %v511, %v1386
        %v1388 = vpop.f32.mrb[0].mxu0
        %v1389 = vadd.f32 %v515, %v1388
        %v1390 = vpop.f32.mrb[0].mxu0
        %v1391 = vadd.f32 %v511, %v1390
        %v1392 = vpop.f32.mrb[0].mxu0
        %v1393 = vadd.f32 %v515, %v1392
        %1394 = vmatprep.mubr.bf16.mxu0 0
        %1395 = vmatmul.mubr.bf16.gmra.mrb[0].mxu0 %v812
        %v1396 = vpop.f32.mrb[0].mxu0
        %v1397 = vadd.f32 %v511, %v1396
        %v1398 = vpop.f32.mrb[0].mxu0
        %v1399 = vadd.f32 %v515, %v1398
        %v1400 = vpop.f32.mrb[0].mxu0
        %v1401 = vadd.f32 %v511, %v1400
        %v1402 = vpop.f32.mrb[0].mxu0
        %v1403 = vadd.f32 %v515, %v1402
        %1404 = vmatprep.mubr.bf16.mxu0 0
        %1405 = vmatmul.mubr.bf16.gmra.mrb[0].mxu0 %v813
        %v1406 = vpop.f32.mrb[0].mxu0
        %v1407 = vadd.f32 %v511, %v1406
        %v1408 = vpop.f32.mrb[0].mxu0
        %v1409 = vadd.f32 %v515, %v1408
        %v1410 = vpop.f32.mrb[0].mxu0
        %v1411 = vadd.f32 %v511, %v1410
        %v1412 = vpop.f32.mrb[0].mxu0
        %v1413 = vadd.f32 %v515, %v1412
        %1414 = vmatprep.mubr.bf16.mxu0 0
        %1415 = vmatmul.mubr.bf16.gmra.mrb[0].mxu0 %v814
        %v1416 = vpop.f32.mrb[0].mxu0
        %v1417 = vadd.f32 %v511, %v1416
        %v1418 = vpop.f32.mrb[0].mxu0
        %v1419 = vadd.f32 %v515, %v1418
        %v1420 = vpop.f32.mrb[0].mxu0
        %v1421 = vadd.f32 %v511, %v1420
        %v1422 = vpop.f32.mrb[0].mxu0
        %v1423 = vadd.f32 %v515, %v1422
        %1424 = vmatprep.mubr.bf16.mxu0 0
        %1425 = vmatmul.mubr.bf16.gmra.mrb[0].mxu0 %v815
        %v1426 = vpop.f32.mrb[0].mxu0
        %v1427 = vadd.f32 %v511, %v1426
        %v1428 = vpop.f32.mrb[0].mxu0
        %v1429 = vadd.f32 %v515, %v1428
        %v1430 = vpop.f32.mrb[0].mxu0
        %v1431 = vadd.f32 %v511, %v1430
        %v1432 = vpop.f32.mrb[0].mxu0
        %v1433 = vadd.f32 %v515, %v1432
        %1434 = vmatprep.mubr.bf16.mxu0 0
        %1435 = vmatmul.mubr.bf16.gmra.mrb[0].mxu0 %v816
        %v1436 = vpop.f32.mrb[0].mxu0
        %v1437 = vadd.f32 %v511, %v1436
        %v1438 = vpop.f32.mrb[0].mxu0
        %v1439 = vadd.f32 %v515, %v1438
        %v1440 = vpop.f32.mrb[0].mxu0
        %v1441 = vadd.f32 %v511, %v1440
        %v1442 = vpop.f32.mrb[0].mxu0
        %v1443 = vadd.f32 %v515, %v1442
        %1444 = vmatprep.mubr.bf16.mxu0 0
        %1445 = vmatmul.mubr.bf16.gmra.mrb[0].mxu0 %v817
        %v1446 = vpop.f32.mrb[0].mxu0
        %v1447 = vadd.f32 %v511, %v1446
        %v1448 = vpop.f32.mrb[0].mxu0
        %v1449 = vadd.f32 %v515, %v1448
        %v1450 = vpop.f32.mrb[0].mxu0
        %v1451 = vadd.f32 %v511, %v1450
        %v1452 = vpop.f32.mrb[0].mxu0
        %v1453 = vadd.f32 %v515, %v1452
        %1454 = vmatprep.mubr.bf16.mxu0 0
        %1455 = vmatmul.mubr.bf16.gmra.mrb[0].mxu0 %v818
        %v1456 = vpop.f32.mrb[0].mxu0
        %v1457 = vadd.f32 %v511, %v1456
        %v1458 = vpop.f32.mrb[0].mxu0
        %v1459 = vadd.f32 %v515, %v1458
        %v1460 = vpop.f32.mrb[0].mxu0
        %v1461 = vadd.f32 %v511, %v1460
        %v1462 = vpop.f32.mrb[0].mxu0
        %v1463 = vadd.f32 %v515, %v1462
        %1464 = vmatprep.mubr.bf16.mxu0 0
        %1465 = vmatmul.mubr.bf16.gmra.mrb[0].mxu0 %v819
        %v1466 = vpop.f32.mrb[0].mxu0
        %v1467 = vadd.f32 %v511, %v1466
        %v1468 = vpop.f32.mrb[0].mxu0
        %v1469 = vadd.f32 %v515, %v1468
        %v1470 = vpop.f32.mrb[0].mxu0
        %v1471 = vadd.f32 %v511, %v1470
        %v1472 = vpop.f32.mrb[0].mxu0
        %v1473 = vadd.f32 %v515, %v1472
        %1474 = vmatprep.mubr.bf16.mxu0 0
        %1475 = vmatmul.mubr.bf16.gmra.mrb[0].mxu0 %v820
        %v1476 = vpop.f32.mrb[0].mxu0
        %v1477 = vadd.f32 %v511, %v1476
        %v1478 = vpop.f32.mrb[0].mxu0
        %v1479 = vadd.f32 %v515, %v1478
        %v1480 = vpop.f32.mrb[0].mxu0
        %v1481 = vadd.f32 %v511, %v1480
        %v1482 = vpop.f32.mrb[0].mxu0
        %v1483 = vadd.f32 %v515, %v1482
        %1484 = vmatprep.mubr.bf16.mxu0 0
        %1485 = vmatmul.mubr.bf16.gmra.mrb[0].mxu0 %v821
        %v1486 = vpop.f32.mrb[0].mxu0
        %v1487 = vadd.f32 %v511, %v1486
        %v1488 = vpop.f32.mrb[0].mxu0
        %v1489 = vadd.f32 %v515, %v1488
        %v1490 = vpop.f32.mrb[0].mxu0
        %v1491 = vadd.f32 %v511, %v1490
        %v1492 = vpop.f32.mrb[0].mxu0
        %v1493 = vadd.f32 %v515, %v1492
        %1494 = vmatprep.mubr.bf16.mxu0 0
        %1495 = vmatmul.mubr.bf16.gmra.mrb[0].mxu0 %v822
        %v1496 = vpop.f32.mrb[0].mxu0
        %v1497 = vadd.f32 %v511, %v1496
        %v1498 = vpop.f32.mrb[0].mxu0
        %v1499 = vadd.f32 %v515, %v1498
        %v1500 = vpop.f32.mrb[0].mxu0
        %v1501 = vadd.f32 %v511, %v1500
        %v1502 = vpop.f32.mrb[0].mxu0
        %v1503 = vadd.f32 %v515, %v1502
        %1504 = vmatprep.mubr.bf16.mxu0 0
        %1505 = vmatmul.mubr.bf16.gmra.mrb[0].mxu0 %v823
        %v1506 = vpop.f32.mrb[0].mxu0
        %v1507 = vadd.f32 %v511, %v1506
        %v1508 = vpop.f32.mrb[0].mxu0
        %v1509 = vadd.f32 %v515, %v1508
        %v1510 = vpop.f32.mrb[0].mxu0
        %v1511 = vadd.f32 %v511, %v1510
        %v1512 = vpop.f32.mrb[0].mxu0
        %v1513 = vadd.f32 %v515, %v1512
        %1514 = vmatprep.mubr.bf16.mxu0 0
        %1515 = vmatmul.mubr.bf16.gmra.mrb[0].mxu0 %v824
        %v1516 = vpop.f32.mrb[0].mxu0
        %v1517 = vadd.f32 %v511, %v1516
        %v1518 = vpop.f32.mrb[0].mxu0
        %v1519 = vadd.f32 %v515, %v1518
        %v1520 = vpop.f32.mrb[0].mxu0
        %v1521 = vadd.f32 %v511, %v1520
        %v1522 = vpop.f32.mrb[0].mxu0
        %v1523 = vadd.f32 %v515, %v1522
        %1524 = vmatprep.mubr.bf16.mxu0 0
        %1525 = vmatmul.mubr.bf16.gmra.mrb[0].mxu0 %v825
        %v1526 = vpop.f32.mrb[0].mxu0
        %v1527 = vadd.f32 %v511, %v1526
        %v1528 = vpop.f32.mrb[0].mxu0
        %v1529 = vadd.f32 %v515, %v1528
        %v1530 = vpop.f32.mrb[0].mxu0
        %v1531 = vadd.f32 %v511, %v1530
        %v1532 = vpop.f32.mrb[0].mxu0
        %v1533 = vadd.f32 %v515, %v1532
        %1534 = vmatprep.mubr.bf16.mxu0 0
        %1535 = vmatmul.mubr.bf16.gmra.mrb[0].mxu0 %v826
        %v1536 = vpop.f32.mrb[0].mxu0
        %v1537 = vadd.f32 %v511, %v1536
        %v1538 = vpop.f32.mrb[0].mxu0
        %v1539 = vadd.f32 %v515, %v1538
        %v1540 = vpop.f32.mrb[0].mxu0
        %v1541 = vadd.f32 %v511, %v1540
        %v1542 = vpop.f32.mrb[0].mxu0
        %v1543 = vadd.f32 %v515, %v1542
        %1544 = vmatprep.mubr.bf16.mxu0 0
        %1545 = vmatmul.mubr.bf16.gmra.mrb[0].mxu0 %v827
        %v1546 = vpop.f32.mrb[0].mxu0
        %v1547 = vadd.f32 %v511, %v1546
        %v1548 = vpop.f32.mrb[0].mxu0
        %v1549 = vadd.f32 %v515, %v1548
        %v1550 = vpop.f32.mrb[0].mxu0
        %v1551 = vadd.f32 %v511, %v1550
        %v1552 = vpop.f32.mrb[0].mxu0
        %v1553 = vadd.f32 %v515, %v1552
        %1554 = vmatprep.mubr.bf16.mxu0 0
        %1555 = vmatmul.mubr.bf16.gmra.mrb[0].mxu0 %v828
        %v1556 = vpop.f32.mrb[0].mxu0
        %v1557 = vadd.f32 %v511, %v1556
        %v1558 = vpop.f32.mrb[0].mxu0
        %v1559 = vadd.f32 %v515, %v1558
        %v1560 = vpop.f32.mrb[0].mxu0
        %v1561 = vadd.f32 %v511, %v1560
        %v1562 = vpop.f32.mrb[0].mxu0
        %v1563 = vadd.f32 %v515, %v1562
        %1564 = vmatprep.mubr.bf16.mxu0 0
        %1565 = vmatmul.mubr.bf16.gmra.mrb[0].mxu0 %v829
        %v1566 = vpop.f32.mrb[0].mxu0
        %v1567 = vadd.f32 %v511, %v1566
        %v1568 = vpop.f32.mrb[0].mxu0
        %v1569 = vadd.f32 %v515, %v1568
        %v1570 = vpop.f32.mrb[0].mxu0
        %v1571 = vadd.f32 %v511, %v1570
        %v1572 = vpop.f32.mrb[0].mxu0
        %v1573 = vadd.f32 %v515, %v1572
        %1574 = vmatprep.mubr.bf16.mxu0 0
        %1575 = vmatmul.mubr.bf16.gmra.mrb[0].mxu0 %v830
        %v1576 = vpop.f32.mrb[0].mxu0
        %v1577 = vadd.f32 %v511, %v1576
        %v1578 = vpop.f32.mrb[0].mxu0
        %v1579 = vadd.f32 %v515, %v1578
        %v1580 = vpop.f32.mrb[0].mxu0
        %v1581 = vadd.f32 %v511, %v1580
        %v1582 = vpop.f32.mrb[0].mxu0
        %v1583 = vadd.f32 %v515, %v1582
        %1584 = vmatprep.mubr.bf16.mxu0 0
        %1585 = vmatmul.mubr.bf16.gmra.mrb[0].mxu0 %v831
        %v1586 = vpop.f32.mrb[0].mxu0
        %v1587 = vadd.f32 %v511, %v1586
        %v1588 = vpop.f32.mrb[0].mxu0
        %v1589 = vadd.f32 %v515, %v1588
        %v1590 = vpop.f32.mrb[0].mxu0
        %v1591 = vadd.f32 %v511, %v1590
        %v1592 = vpop.f32.mrb[0].mxu0
        %v1593 = vadd.f32 %v515, %v1592
        %1594 = vmatprep.mubr.bf16.mxu0 0
        %1595 = vmatmul.mubr.bf16.gmra.mrb[0].mxu0 %v832
        %v1596 = vpop.f32.mrb[0].mxu0
        %v1597 = vadd.f32 %v511, %v1596
        %v1598 = vpop.f32.mrb[0].mxu0
        %v1599 = vadd.f32 %v515, %v1598
        %v1600 = vpop.f32.mrb[0].mxu0
        %v1601 = vadd.f32 %v511, %v1600
        %v1602 = vpop.f32.mrb[0].mxu0
        %v1603 = vadd.f32 %v515, %v1602
        %1604 = vmatprep.mubr.bf16.mxu0 0
        %1605 = vmatmul.mubr.bf16.gmra.mrb[0].mxu0 %v833
        %v1606 = vpop.f32.mrb[0].mxu0
        %v1607 = vadd.f32 %v511, %v1606
        %v1608 = vpop.f32.mrb[0].mxu0
        %v1609 = vadd.f32 %v515, %v1608
        %v1610 = vpop.f32.mrb[0].mxu0
        %v1611 = vadd.f32 %v511, %v1610
        %v1612 = vpop.f32.mrb[0].mxu0
        %v1613 = vadd.f32 %v515, %v1612
        %1614 = vmatprep.mubr.bf16.mxu0 0
        %1615 = vmatmul.mubr.bf16.gmra.mrb[0].mxu0 %v834
        %v1616 = vpop.f32.mrb[0].mxu0
        %v1617 = vadd.f32 %v511, %v1616
        %v1618 = vpop.f32.mrb[0].mxu0
        %v1619 = vadd.f32 %v515, %v1618
        %v1620 = vpop.f32.mrb[0].mxu0
        %v1621 = vadd.f32 %v511, %v1620
        %v1622 = vpop.f32.mrb[0].mxu0
        %v1623 = vadd.f32 %v515, %v1622
        %1624 = vmatprep.mubr.bf16.mxu0 0
        %1625 = vmatmul.mubr.bf16.gmra.mrb[0].mxu0 %v835
        %v1626 = vpop.f32.mrb[0].mxu0
        %v1627 = vadd.f32 %v511, %v1626
        %v1628 = vpop.f32.mrb[0].mxu0
        %v1629 = vadd.f32 %v515, %v1628
        %v1630 = vpop.f32.mrb[0].mxu0
        %v1631 = vadd.f32 %v511, %v1630
        %v1632 = vpop.f32.mrb[0].mxu0
        %v1633 = vadd.f32 %v515, %v1632
        %1634 = vmatprep.mubr.bf16.mxu0 0
        %1635 = vmatmul.mubr.bf16.gmra.mrb[0].mxu0 %v836
        %v1636 = vpop.f32.mrb[0].mxu0
        %v1637 = vadd.f32 %v511, %v1636
        %v1638 = vpop.f32.mrb[0].mxu0
        %v1639 = vadd.f32 %v515, %v1638
        %v1640 = vpop.f32.mrb[0].mxu0
        %v1641 = vadd.f32 %v511, %v1640
        %v1642 = vpop.f32.mrb[0].mxu0
        %v1643 = vadd.f32 %v515, %v1642
        %1644 = vmatprep.mubr.bf16.mxu0 0
        %1645 = vmatmul.mubr.bf16.gmra.mrb[0].mxu0 %v837
        %v1646 = vpop.f32.mrb[0].mxu0
        %v1647 = vadd.f32 %v511, %v1646
        %v1648 = vpop.f32.mrb[0].mxu0
        %v1649 = vadd.f32 %v515, %v1648
        %v1650 = vpop.f32.mrb[0].mxu0
        %v1651 = vadd.f32 %v511, %v1650
        %v1652 = vpop.f32.mrb[0].mxu0
        %v1653 = vadd.f32 %v515, %v1652
        %1654 = vdwg.mxu0
        %v1655 = vmax.f32 %v1017, 0.0
        %v1656 = vmax.f32 %v1019, 0.0
        %v1657 = vmax.f32 %v1021, 0.0
        %v1658 = vmax.f32 %v1023, 0.0
        %v1659 = vmax.f32 %v1027, 0.0
        %v1660 = vmax.f32 %v1029, 0.0
        %v1661 = vmax.f32 %v1031, 0.0
        %v1662 = vmax.f32 %v1033, 0.0
        %v1663 = vmax.f32 %v1037, 0.0
        %v1664 = vmax.f32 %v1039, 0.0
        %v1665 = vmax.f32 %v1041, 0.0
        %v1666 = vmax.f32 %v1043, 0.0
        %v1667 = vmax.f32 %v1047, 0.0
        %v1668 = vmax.f32 %v1049, 0.0
        %v1669 = vmax.f32 %v1051, 0.0
        %v1670 = vmax.f32 %v1053, 0.0
        %v1671 = vmax.f32 %v1057, 0.0
        %v1672 = vmax.f32 %v1059, 0.0
        %v1673 = vmax.f32 %v1061, 0.0
        %v1674 = vmax.f32 %v1063, 0.0
        %v1675 = vmax.f32 %v1067, 0.0
        %v1676 = vmax.f32 %v1069, 0.0
        %v1677 = vmax.f32 %v1071, 0.0
        %v1678 = vmax.f32 %v1073, 0.0
        %v1679 = vmax.f32 %v1077, 0.0
        %v1680 = vmax.f32 %v1079, 0.0
        %v1681 = vmax.f32 %v1081, 0.0
        %v1682 = vmax.f32 %v1083, 0.0
        %v1683 = vmax.f32 %v1087, 0.0
        %v1684 = vmax.f32 %v1089, 0.0
        %v1685 = vmax.f32 %v1091, 0.0
        %v1686 = vmax.f32 %v1093, 0.0
        %v1687 = vmax.f32 %v1097, 0.0
        %v1688 = vmax.f32 %v1099, 0.0
        %v1689 = vmax.f32 %v1101, 0.0
        %v1690 = vmax.f32 %v1103, 0.0
        %v1691 = vmax.f32 %v1107, 0.0
        %v1692 = vmax.f32 %v1109, 0.0
        %v1693 = vmax.f32 %v1111, 0.0
        %v1694 = vmax.f32 %v1113, 0.0
        %v1695 = vmax.f32 %v1117, 0.0
        %v1696 = vmax.f32 %v1119, 0.0
        %v1697 = vmax.f32 %v1121, 0.0
        %v1698 = vmax.f32 %v1123, 0.0
        %v1699 = vmax.f32 %v1127, 0.0
        %v1700 = vmax.f32 %v1129, 0.0
        %v1701 = vmax.f32 %v1131, 0.0
        %v1702 = vmax.f32 %v1133, 0.0
        %v1703 = vmax.f32 %v1137, 0.0
        %v1704 = vmax.f32 %v1139, 0.0
        %v1705 = vmax.f32 %v1141, 0.0
        %v1706 = vmax.f32 %v1143, 0.0
        %v1707 = vmax.f32 %v1147, 0.0
        %v1708 = vmax.f32 %v1149, 0.0
        %v1709 = vmax.f32 %v1151, 0.0
        %v1710 = vmax.f32 %v1153, 0.0
        %v1711 = vmax.f32 %v1157, 0.0
        %v1712 = vmax.f32 %v1159, 0.0
        %v1713 = vmax.f32 %v1161, 0.0
        %v1714 = vmax.f32 %v1163, 0.0
        %v1715 = vmax.f32 %v1167, 0.0
        %v1716 = vmax.f32 %v1169, 0.0
        %v1717 = vmax.f32 %v1171, 0.0
        %v1718 = vmax.f32 %v1173, 0.0
        %v1719 = vmax.f32 %v1177, 0.0
        %v1720 = vmax.f32 %v1179, 0.0
        %v1721 = vmax.f32 %v1181, 0.0
        %v1722 = vmax.f32 %v1183, 0.0
        %v1723 = vmax.f32 %v1187, 0.0
        %v1724 = vmax.f32 %v1189, 0.0
        %v1725 = vmax.f32 %v1191, 0.0
        %v1726 = vmax.f32 %v1193, 0.0
        %v1727 = vmax.f32 %v1197, 0.0
        %v1728 = vmax.f32 %v1199, 0.0
        %v1729 = vmax.f32 %v1201, 0.0
        %v1730 = vmax.f32 %v1203, 0.0
        %v1731 = vmax.f32 %v1207, 0.0
        %v1732 = vmax.f32 %v1209, 0.0
        %v1733 = vmax.f32 %v1211, 0.0
        %v1734 = vmax.f32 %v1213, 0.0
        %v1735 = vmax.f32 %v1217, 0.0
        %v1736 = vmax.f32 %v1219, 0.0
        %v1737 = vmax.f32 %v1221, 0.0
        %v1738 = vmax.f32 %v1223, 0.0
        %v1739 = vmax.f32 %v1227, 0.0
        %v1740 = vmax.f32 %v1229, 0.0
        %v1741 = vmax.f32 %v1231, 0.0
        %v1742 = vmax.f32 %v1233, 0.0
        %v1743 = vmax.f32 %v1237, 0.0
        %v1744 = vmax.f32 %v1239, 0.0
        %v1745 = vmax.f32 %v1241, 0.0
        %v1746 = vmax.f32 %v1243, 0.0
        %v1747 = vmax.f32 %v1247, 0.0
        %v1748 = vmax.f32 %v1249, 0.0
        %v1749 = vmax.f32 %v1251, 0.0
        %v1750 = vmax.f32 %v1253, 0.0
        %v1751 = vmax.f32 %v1257, 0.0
        %v1752 = vmax.f32 %v1259, 0.0
        %v1753 = vmax.f32 %v1261, 0.0
        %v1754 = vmax.f32 %v1263, 0.0
        %v1755 = vmax.f32 %v1267, 0.0
        %v1756 = vmax.f32 %v1269, 0.0
        %v1757 = vmax.f32 %v1271, 0.0
        %v1758 = vmax.f32 %v1273, 0.0
        %v1759 = vmax.f32 %v1277, 0.0
        %v1760 = vmax.f32 %v1279, 0.0
        %v1761 = vmax.f32 %v1281, 0.0
        %v1762 = vmax.f32 %v1283, 0.0
        %v1763 = vmax.f32 %v1287, 0.0
        %v1764 = vmax.f32 %v1289, 0.0
        %v1765 = vmax.f32 %v1291, 0.0
        %v1766 = vmax.f32 %v1293, 0.0
        %v1767 = vmax.f32 %v1297, 0.0
        %v1768 = vmax.f32 %v1299, 0.0
        %v1769 = vmax.f32 %v1301, 0.0
        %v1770 = vmax.f32 %v1303, 0.0
        %v1771 = vmax.f32 %v1307, 0.0
        %v1772 = vmax.f32 %v1309, 0.0
        %v1773 = vmax.f32 %v1311, 0.0
        %v1774 = vmax.f32 %v1313, 0.0
        %v1775 = vmax.f32 %v1317, 0.0
        %v1776 = vmax.f32 %v1319, 0.0
        %v1777 = vmax.f32 %v1321, 0.0
        %v1778 = vmax.f32 %v1323, 0.0
        %v1779 = vmax.f32 %v1327, 0.0
        %v1780 = vmax.f32 %v1329, 0.0
        %v1781 = vmax.f32 %v1331, 0.0
        %v1782 = vmax.f32 %v1333, 0.0
        %v1783 = vmax.f32 %v1337, 0.0
        %v1784 = vmax.f32 %v1339, 0.0
        %v1785 = vmax.f32 %v1341, 0.0
        %v1786 = vmax.f32 %v1343, 0.0
        %v1787 = vmax.f32 %v1347, 0.0
        %v1788 = vmax.f32 %v1349, 0.0
        %v1789 = vmax.f32 %v1351, 0.0
        %v1790 = vmax.f32 %v1353, 0.0
        %v1791 = vmax.f32 %v1357, 0.0
        %v1792 = vmax.f32 %v1359, 0.0
        %v1793 = vmax.f32 %v1361, 0.0
        %v1794 = vmax.f32 %v1363, 0.0
        %v1795 = vmax.f32 %v1367, 0.0
        %v1796 = vmax.f32 %v1369, 0.0
        %v1797 = vmax.f32 %v1371, 0.0
        %v1798 = vmax.f32 %v1373, 0.0
        %v1799 = vmax.f32 %v1377, 0.0
        %v1800 = vmax.f32 %v1379, 0.0
        %v1801 = vmax.f32 %v1381, 0.0
        %v1802 = vmax.f32 %v1383, 0.0
        %v1803 = vmax.f32 %v1387, 0.0
        %v1804 = vmax.f32 %v1389, 0.0
        %v1805 = vmax.f32 %v1391, 0.0
        %v1806 = vmax.f32 %v1393, 0.0
        %v1807 = vmax.f32 %v1397, 0.0
        %v1808 = vmax.f32 %v1399, 0.0
        %v1809 = vmax.f32 %v1401, 0.0
        %v1810 = vmax.f32 %v1403, 0.0
        %v1811 = vmax.f32 %v1407, 0.0
        %v1812 = vmax.f32 %v1409, 0.0
        %v1813 = vmax.f32 %v1411, 0.0
        %v1814 = vmax.f32 %v1413, 0.0
        %v1815 = vmax.f32 %v1417, 0.0
        %v1816 = vmax.f32 %v1419, 0.0
        %v1817 = vmax.f32 %v1421, 0.0
        %v1818 = vmax.f32 %v1423, 0.0
        %v1819 = vmax.f32 %v1427, 0.0
        %v1820 = vmax.f32 %v1429, 0.0
        %v1821 = vmax.f32 %v1431, 0.0
        %v1822 = vmax.f32 %v1433, 0.0
        %v1823 = vmax.f32 %v1437, 0.0
        %v1824 = vmax.f32 %v1439, 0.0
        %v1825 = vmax.f32 %v1441, 0.0
        %v1826 = vmax.f32 %v1443, 0.0
        %v1827 = vmax.f32 %v1447, 0.0
        %v1828 = vmax.f32 %v1449, 0.0
        %v1829 = vmax.f32 %v1451, 0.0
        %v1830 = vmax.f32 %v1453, 0.0
        %v1831 = vmax.f32 %v1457, 0.0
        %v1832 = vmax.f32 %v1459, 0.0
        %v1833 = vmax.f32 %v1461, 0.0
        %v1834 = vmax.f32 %v1463, 0.0
        %v1835 = vmax.f32 %v1467, 0.0
        %v1836 = vmax.f32 %v1469, 0.0
        %v1837 = vmax.f32 %v1471, 0.0
        %v1838 = vmax.f32 %v1473, 0.0
        %v1839 = vmax.f32 %v1477, 0.0
        %v1840 = vmax.f32 %v1479, 0.0
        %v1841 = vmax.f32 %v1481, 0.0
        %v1842 = vmax.f32 %v1483, 0.0
        %v1843 = vmax.f32 %v1487, 0.0
        %v1844 = vmax.f32 %v1489, 0.0
        %v1845 = vmax.f32 %v1491, 0.0
        %v1846 = vmax.f32 %v1493, 0.0
        %v1847 = vmax.f32 %v1497, 0.0
        %v1848 = vmax.f32 %v1499, 0.0
        %v1849 = vmax.f32 %v1501, 0.0
        %v1850 = vmax.f32 %v1503, 0.0
        %v1851 = vmax.f32 %v1507, 0.0
        %v1852 = vmax.f32 %v1509, 0.0
        %v1853 = vmax.f32 %v1511, 0.0
        %v1854 = vmax.f32 %v1513, 0.0
        %v1855 = vmax.f32 %v1517, 0.0
        %v1856 = vmax.f32 %v1519, 0.0
        %v1857 = vmax.f32 %v1521, 0.0
        %v1858 = vmax.f32 %v1523, 0.0
        %v1859 = vmax.f32 %v1527, 0.0
        %v1860 = vmax.f32 %v1529, 0.0
        %v1861 = vmax.f32 %v1531, 0.0
        %v1862 = vmax.f32 %v1533, 0.0
        %v1863 = vmax.f32 %v1537, 0.0
        %v1864 = vmax.f32 %v1539, 0.0
        %v1865 = vmax.f32 %v1541, 0.0
        %v1866 = vmax.f32 %v1543, 0.0
        %v1867 = vmax.f32 %v1547, 0.0
        %v1868 = vmax.f32 %v1549, 0.0
        %v1869 = vmax.f32 %v1551, 0.0
        %v1870 = vmax.f32 %v1553, 0.0
        %v1871 = vmax.f32 %v1557, 0.0
        %v1872 = vmax.f32 %v1559, 0.0
        %v1873 = vmax.f32 %v1561, 0.0
        %v1874 = vmax.f32 %v1563, 0.0
        %v1875 = vmax.f32 %v1567, 0.0
        %v1876 = vmax.f32 %v1569, 0.0
        %v1877 = vmax.f32 %v1571, 0.0
        %v1878 = vmax.f32 %v1573, 0.0
        %v1879 = vmax.f32 %v1577, 0.0
        %v1880 = vmax.f32 %v1579, 0.0
        %v1881 = vmax.f32 %v1581, 0.0
        %v1882 = vmax.f32 %v1583, 0.0
        %v1883 = vmax.f32 %v1587, 0.0
        %v1884 = vmax.f32 %v1589, 0.0
        %v1885 = vmax.f32 %v1591, 0.0
        %v1886 = vmax.f32 %v1593, 0.0
        %v1887 = vmax.f32 %v1597, 0.0
        %v1888 = vmax.f32 %v1599, 0.0
        %v1889 = vmax.f32 %v1601, 0.0
        %v1890 = vmax.f32 %v1603, 0.0
        %v1891 = vmax.f32 %v1607, 0.0
        %v1892 = vmax.f32 %v1609, 0.0
        %v1893 = vmax.f32 %v1611, 0.0
        %v1894 = vmax.f32 %v1613, 0.0
        %v1895 = vmax.f32 %v1617, 0.0
        %v1896 = vmax.f32 %v1619, 0.0
        %v1897 = vmax.f32 %v1621, 0.0
        %v1898 = vmax.f32 %v1623, 0.0
        %v1899 = vmax.f32 %v1627, 0.0
        %v1900 = vmax.f32 %v1629, 0.0
        %v1901 = vmax.f32 %v1631, 0.0
        %v1902 = vmax.f32 %v1633, 0.0
        %v1903 = vmax.f32 %v1637, 0.0
        %v1904 = vmax.f32 %v1639, 0.0
        %v1905 = vmax.f32 %v1641, 0.0
        %v1906 = vmax.f32 %v1643, 0.0
        %v1907 = vmax.f32 %v1647, 0.0
        %v1908 = vmax.f32 %v1649, 0.0
        %v1909 = vmax.f32 %v1651, 0.0
        %v1910 = vmax.f32 %v1653, 0.0
        %v1911 = vpack.c.bf16 %v1657, %v1655
        %v1912 = vpack.c.bf16 %v1658, %v1656
        %v1913 = vpack.c.bf16 %v1661, %v1659
        %v1914 = vpack.c.bf16 %v1662, %v1660
        %v1915 = vpack.c.bf16 %v1665, %v1663
        %v1916 = vpack.c.bf16 %v1666, %v1664
        %v1917 = vpack.c.bf16 %v1669, %v1667
        %v1918 = vpack.c.bf16 %v1670, %v1668
        %v1919 = vpack.c.bf16 %v1673, %v1671
        %v1920 = vpack.c.bf16 %v1674, %v1672
        %v1921 = vpack.c.bf16 %v1677, %v1675
        %v1922 = vpack.c.bf16 %v1678, %v1676
        %v1923 = vpack.c.bf16 %v1681, %v1679
        %v1924 = vpack.c.bf16 %v1682, %v1680
        %v1925 = vpack.c.bf16 %v1685, %v1683
        %v1926 = vpack.c.bf16 %v1686, %v1684
        %v1927 = vpack.c.bf16 %v1689, %v1687
        %v1928 = vpack.c.bf16 %v1690, %v1688
        %v1929 = vpack.c.bf16 %v1693, %v1691
        %v1930 = vpack.c.bf16 %v1694, %v1692
        %v1931 = vpack.c.bf16 %v1697, %v1695
        %v1932 = vpack.c.bf16 %v1698, %v1696
        %v1933 = vpack.c.bf16 %v1701, %v1699
        %v1934 = vpack.c.bf16 %v1702, %v1700
        %v1935 = vpack.c.bf16 %v1705, %v1703
        %v1936 = vpack.c.bf16 %v1706, %v1704
        %v1937 = vpack.c.bf16 %v1709, %v1707
        %v1938 = vpack.c.bf16 %v1710, %v1708
        %v1939 = vpack.c.bf16 %v1713, %v1711
        %v1940 = vpack.c.bf16 %v1714, %v1712
        %v1941 = vpack.c.bf16 %v1717, %v1715
        %v1942 = vpack.c.bf16 %v1718, %v1716
        %v1943 = vpack.c.bf16 %v1721, %v1719
        %v1944 = vpack.c.bf16 %v1722, %v1720
        %v1945 = vpack.c.bf16 %v1725, %v1723
        %v1946 = vpack.c.bf16 %v1726, %v1724
        %v1947 = vpack.c.bf16 %v1729, %v1727
        %v1948 = vpack.c.bf16 %v1730, %v1728
        %v1949 = vpack.c.bf16 %v1733, %v1731
        %v1950 = vpack.c.bf16 %v1734, %v1732
        %v1951 = vpack.c.bf16 %v1737, %v1735
        %v1952 = vpack.c.bf16 %v1738, %v1736
        %v1953 = vpack.c.bf16 %v1741, %v1739
        %v1954 = vpack.c.bf16 %v1742, %v1740
        %v1955 = vpack.c.bf16 %v1745, %v1743
        %v1956 = vpack.c.bf16 %v1746, %v1744
        %v1957 = vpack.c.bf16 %v1749, %v1747
        %v1958 = vpack.c.bf16 %v1750, %v1748
        %v1959 = vpack.c.bf16 %v1753, %v1751
        %v1960 = vpack.c.bf16 %v1754, %v1752
        %v1961 = vpack.c.bf16 %v1757, %v1755
        %v1962 = vpack.c.bf16 %v1758, %v1756
        %v1963 = vpack.c.bf16 %v1761, %v1759
        %v1964 = vpack.c.bf16 %v1762, %v1760
        %v1965 = vpack.c.bf16 %v1765, %v1763
        %v1966 = vpack.c.bf16 %v1766, %v1764
        %v1967 = vpack.c.bf16 %v1769, %v1767
        %v1968 = vpack.c.bf16 %v1770, %v1768
        %v1969 = vpack.c.bf16 %v1773, %v1771
        %v1970 = vpack.c.bf16 %v1774, %v1772
        %v1971 = vpack.c.bf16 %v1777, %v1775
        %v1972 = vpack.c.bf16 %v1778, %v1776
        %v1973 = vpack.c.bf16 %v1781, %v1779
        %v1974 = vpack.c.bf16 %v1782, %v1780
        %v1975 = vpack.c.bf16 %v1785, %v1783
        %v1976 = vpack.c.bf16 %v1786, %v1784
        %v1977 = vpack.c.bf16 %v1789, %v1787
        %v1978 = vpack.c.bf16 %v1790, %v1788
        %v1979 = vpack.c.bf16 %v1793, %v1791
        %v1980 = vpack.c.bf16 %v1794, %v1792
        %v1981 = vpack.c.bf16 %v1797, %v1795
        %v1982 = vpack.c.bf16 %v1798, %v1796
        %v1983 = vpack.c.bf16 %v1801, %v1799
        %v1984 = vpack.c.bf16 %v1802, %v1800
        %v1985 = vpack.c.bf16 %v1805, %v1803
        %v1986 = vpack.c.bf16 %v1806, %v1804
        %v1987 = vpack.c.bf16 %v1809, %v1807
        %v1988 = vpack.c.bf16 %v1810, %v1808
        %v1989 = vpack.c.bf16 %v1813, %v1811
        %v1990 = vpack.c.bf16 %v1814, %v1812
        %v1991 = vpack.c.bf16 %v1817, %v1815
        %v1992 = vpack.c.bf16 %v1818, %v1816
        %v1993 = vpack.c.bf16 %v1821, %v1819
        %v1994 = vpack.c.bf16 %v1822, %v1820
        %v1995 = vpack.c.bf16 %v1825, %v1823
        %v1996 = vpack.c.bf16 %v1826, %v1824
        %v1997 = vpack.c.bf16 %v1829, %v1827
        %v1998 = vpack.c.bf16 %v1830, %v1828
        %v1999 = vpack.c.bf16 %v1833, %v1831
        %v2000 = vpack.c.bf16 %v1834, %v1832
        %v2001 = vpack.c.bf16 %v1837, %v1835
        %v2002 = vpack.c.bf16 %v1838, %v1836
        %v2003 = vpack.c.bf16 %v1841, %v1839
        %v2004 = vpack.c.bf16 %v1842, %v1840
        %v2005 = vpack.c.bf16 %v1845, %v1843
        %v2006 = vpack.c.bf16 %v1846, %v1844
        %v2007 = vpack.c.bf16 %v1849, %v1847
        %v2008 = vpack.c.bf16 %v1850, %v1848
        %v2009 = vpack.c.bf16 %v1853, %v1851
        %v2010 = vpack.c.bf16 %v1854, %v1852
        %v2011 = vpack.c.bf16 %v1857, %v1855
        %v2012 = vpack.c.bf16 %v1858, %v1856
        %v2013 = vpack.c.bf16 %v1861, %v1859
        %v2014 = vpack.c.bf16 %v1862, %v1860
        %v2015 = vpack.c.bf16 %v1865, %v1863
        %v2016 = vpack.c.bf16 %v1866, %v1864
        %v2017 = vpack.c.bf16 %v1869, %v1867
        %v2018 = vpack.c.bf16 %v1870, %v1868
        %v2019 = vpack.c.bf16 %v1873, %v1871
        %v2020 = vpack.c.bf16 %v1874, %v1872
        %v2021 = vpack.c.bf16 %v1877, %v1875
        %v2022 = vpack.c.bf16 %v1878, %v1876
        %v2023 = vpack.c.bf16 %v1881, %v1879
        %v2024 = vpack.c.bf16 %v1882, %v1880
        %v2025 = vpack.c.bf16 %v1885, %v1883
        %v2026 = vpack.c.bf16 %v1886, %v1884
        %v2027 = vpack.c.bf16 %v1889, %v1887
        %v2028 = vpack.c.bf16 %v1890, %v1888
        %v2029 = vpack.c.bf16 %v1893, %v1891
        %v2030 = vpack.c.bf16 %v1894, %v1892
        %v2031 = vpack.c.bf16 %v1897, %v1895
        %v2032 = vpack.c.bf16 %v1898, %v1896
        %v2033 = vpack.c.bf16 %v1901, %v1899
        %v2034 = vpack.c.bf16 %v1902, %v1900
        %v2035 = vpack.c.bf16 %v1905, %v1903
        %v2036 = vpack.c.bf16 %v1906, %v1904
        %v2037 = vpack.c.bf16 %v1909, %v1907
        %v2038 = vpack.c.bf16 %v1910, %v1908
        %v2039 = vld [vmem:[#allocation8] sm:$0xf]
        %v2040 = vld [vmem:[#allocation8 + $0x4] sm:$0xf]
        %v2041 = vld [vmem:[#allocation8 + $0x8] sm:$0xf]
        %v2042 = vld [vmem:[#allocation8 + $0xc] sm:$0xf]
        %v2043 = vld [vmem:[#allocation8 + $0x10] sm:$0xf]
        %v2044 = vld [vmem:[#allocation8 + $0x14] sm:$0xf]
        %v2045 = vld [vmem:[#allocation8 + $0x18] sm:$0xf]
        %v2046 = vld [vmem:[#allocation8 + $0x1c] sm:$0xf]
        %v2047 = vld [vmem:[#allocation8 + $0x20] sm:$0xf]
        %v2048 = vld [vmem:[#allocation8 + $0x24] sm:$0xf]
        %v2049 = vld [vmem:[#allocation8 + $0x28] sm:$0xf]
        %v2050 = vld [vmem:[#allocation8 + $0x2c] sm:$0xf]
        %v2051 = vld [vmem:[#allocation8 + $0x30] sm:$0xf]
        %v2052 = vld [vmem:[#allocation8 + $0x34] sm:$0xf]
        %v2053 = vld [vmem:[#allocation8 + $0x38] sm:$0xf]
        %v2054 = vld [vmem:[#allocation8 + $0x3c] sm:$0xf]
        %v2055 = vld [vmem:[#allocation8 + $0x40] sm:$0xf]
        %v2056 = vld [vmem:[#allocation8 + $0x44] sm:$0xf]
        %v2057 = vld [vmem:[#allocation8 + $0x48] sm:$0xf]
        %v2058 = vld [vmem:[#allocation8 + $0x4c] sm:$0xf]
        %v2059 = vld [vmem:[#allocation8 + $0x50] sm:$0xf]
        %v2060 = vld [vmem:[#allocation8 + $0x54] sm:$0xf]
        %v2061 = vld [vmem:[#allocation8 + $0x58] sm:$0xf]
        %v2062 = vld [vmem:[#allocation8 + $0x5c] sm:$0xf]
        %v2063 = vld [vmem:[#allocation8 + $0x60] sm:$0xf]
        %v2064 = vld [vmem:[#allocation8 + $0x64] sm:$0xf]
        %v2065 = vld [vmem:[#allocation8 + $0x68] sm:$0xf]
        %v2066 = vld [vmem:[#allocation8 + $0x6c] sm:$0xf]
        %v2067 = vld [vmem:[#allocation8 + $0x70] sm:$0xf]
        %v2068 = vld [vmem:[#allocation8 + $0x74] sm:$0xf]
        %v2069 = vld [vmem:[#allocation8 + $0x78] sm:$0xf]
        %v2070 = vld [vmem:[#allocation8 + $0x7c] sm:$0xf]
        %v2071 = vld [vmem:[%s5] sm:$0x1]
        %v2073 = vlaneseq
        %v2074 = vshrl.u32 %v2073, 7
        %v2075 = vsub.s32 0, %v2074
        %v2076 = vrot.slane %v2071, %v2075
        %v2110 = vunpack.c.l.b16 %v2039
        %v2111 = vunpack.c.l.b16 %v2040
        %v2112 = vunpack.c.l.b16 %v2041
        %v2113 = vunpack.c.l.b16 %v2042
        %v2114 = vunpack.c.l.b16 %v2043
        %v2115 = vunpack.c.l.b16 %v2044
        %v2116 = vunpack.c.l.b16 %v2045
        %v2117 = vunpack.c.l.b16 %v2046
        %v2118 = vunpack.c.l.b16 %v2047
        %v2119 = vunpack.c.l.b16 %v2048
        %v2120 = vunpack.c.l.b16 %v2049
        %v2121 = vunpack.c.l.b16 %v2050
        %v2122 = vunpack.c.l.b16 %v2051
        %v2123 = vunpack.c.l.b16 %v2052
        %v2124 = vunpack.c.l.b16 %v2053
        %v2125 = vunpack.c.l.b16 %v2054
        %v2126 = vunpack.c.l.b16 %v2055
        %v2127 = vunpack.c.l.b16 %v2056
        %v2128 = vunpack.c.l.b16 %v2057
        %v2129 = vunpack.c.l.b16 %v2058
        %v2130 = vunpack.c.l.b16 %v2059
        %v2131 = vunpack.c.l.b16 %v2060
        %v2132 = vunpack.c.l.b16 %v2061
        %v2133 = vunpack.c.l.b16 %v2062
        %v2134 = vunpack.c.l.b16 %v2063
        %v2135 = vunpack.c.l.b16 %v2064
        %v2136 = vunpack.c.l.b16 %v2065
        %v2137 = vunpack.c.l.b16 %v2066
        %v2138 = vunpack.c.l.b16 %v2067
        %v2139 = vunpack.c.l.b16 %v2068
        %v2140 = vunpack.c.l.b16 %v2069
        %v2141 = vunpack.c.l.b16 %v2070
        %v2142 = vpack.c.b16 %v2111, %v2110
        %v2143 = vpack.c.b16 %v2113, %v2112
        %v2144 = vpack.c.b16 %v2115, %v2114
        %v2145 = vpack.c.b16 %v2117, %v2116
        %v2146 = vpack.c.b16 %v2119, %v2118
        %v2147 = vpack.c.b16 %v2121, %v2120
        %v2148 = vpack.c.b16 %v2123, %v2122
        %v2149 = vpack.c.b16 %v2125, %v2124
        %v2150 = vpack.c.b16 %v2127, %v2126
        %v2151 = vpack.c.b16 %v2129, %v2128
        %v2152 = vpack.c.b16 %v2131, %v2130
        %v2153 = vpack.c.b16 %v2133, %v2132
        %v2154 = vpack.c.b16 %v2135, %v2134
        %v2155 = vpack.c.b16 %v2137, %v2136
        %v2156 = vpack.c.b16 %v2139, %v2138
        %v2157 = vpack.c.b16 %v2141, %v2140
        %2174 = vmatprep.subr.bf16.mxu0 0
        %2175 = vmatpush1.bf16.msra.mxu0 %v2142
        %2176 = vmatprep.subr.bf16.mxu0 0
        %2177 = vmatpush1.bf16.msra.mxu0 %v2143
        %2178 = vmatprep.subr.bf16.mxu0 0
        %2179 = vmatpush1.bf16.msra.mxu0 %v2144
        %2180 = vmatprep.subr.bf16.mxu0 0
        %2181 = vmatpush1.bf16.msra.mxu0 %v2145
        %2182 = vmatprep.subr.bf16.mxu0 0
        %2183 = vmatpush1.bf16.msra.mxu0 %v2146
        %2184 = vmatprep.subr.bf16.mxu0 0
        %2185 = vmatpush1.bf16.msra.mxu0 %v2147
        %2186 = vmatprep.subr.bf16.mxu0 0
        %2187 = vmatpush1.bf16.msra.mxu0 %v2148
        %2188 = vmatprep.subr.bf16.mxu0 0
        %2189 = vmatpush1.bf16.msra.mxu0 %v2149
        %2190 = vmatprep.subr.bf16.mxu0 0
        %2191 = vmatpush1.bf16.msra.mxu0 %v2150
        %2192 = vmatprep.subr.bf16.mxu0 0
        %2193 = vmatpush1.bf16.msra.mxu0 %v2151
        %2194 = vmatprep.subr.bf16.mxu0 0
        %2195 = vmatpush1.bf16.msra.mxu0 %v2152
        %2196 = vmatprep.subr.bf16.mxu0 0
        %2197 = vmatpush1.bf16.msra.mxu0 %v2153
        %2198 = vmatprep.subr.bf16.mxu0 0
        %2199 = vmatpush1.bf16.msra.mxu0 %v2154
        %2200 = vmatprep.subr.bf16.mxu0 0
        %2201 = vmatpush1.bf16.msra.mxu0 %v2155
        %2202 = vmatprep.subr.bf16.mxu0 0
        %2203 = vmatpush1.bf16.msra.mxu0 %v2156
        %2204 = vmatprep.subr.bf16.mxu0 0
        %2205 = vmatpush1.bf16.msra.mxu0 %v2157
        %2206 = vmatprep.mubr.bf16.mxu0 %v1912
        %2207 = vmatmul.mubr.bf16.gmra.mrb[0].mxu0 %v1911
        %v2208 = vpop.f32.mrb[0].mxu0
        %v2209 = vadd.f32 %v2076, %v2208
        %v2210 = vpop.f32.mrb[0].mxu0
        %v2211 = vpop.f32.mrb[0].mxu0
        %v2212 = vadd.f32 %v2076, %v2211
        %v2213 = vpop.f32.mrb[0].mxu0
        %2214 = vmatprep.mubr.bf16.mxu0 %v1914
        %2215 = vmatmul.mubr.bf16.gmra.mrb[0].mxu0 %v1913
        %v2216 = vpop.f32.mrb[0].mxu0
        %v2217 = vadd.f32 %v2076, %v2216
        %v2218 = vpop.f32.mrb[0].mxu0
        %v2219 = vpop.f32.mrb[0].mxu0
        %v2220 = vadd.f32 %v2076, %v2219
        %v2221 = vpop.f32.mrb[0].mxu0
        %2222 = vmatprep.mubr.bf16.mxu0 %v1916
        %2223 = vmatmul.mubr.bf16.gmra.mrb[0].mxu0 %v1915
        %v2224 = vpop.f32.mrb[0].mxu0
        %v2225 = vadd.f32 %v2076, %v2224
        %v2226 = vpop.f32.mrb[0].mxu0
        %v2227 = vpop.f32.mrb[0].mxu0
        %v2228 = vadd.f32 %v2076, %v2227
        %v2229 = vpop.f32.mrb[0].mxu0
        %2230 = vmatprep.mubr.bf16.mxu0 %v1918
        %2231 = vmatmul.mubr.bf16.gmra.mrb[0].mxu0 %v1917
        %v2232 = vpop.f32.mrb[0].mxu0
        %v2233 = vadd.f32 %v2076, %v2232
        %v2234 = vpop.f32.mrb[0].mxu0
        %v2235 = vpop.f32.mrb[0].mxu0
        %v2236 = vadd.f32 %v2076, %v2235
        %v2237 = vpop.f32.mrb[0].mxu0
        %2238 = vmatprep.mubr.bf16.mxu0 %v1920
        %2239 = vmatmul.mubr.bf16.gmra.mrb[0].mxu0 %v1919
        %v2240 = vpop.f32.mrb[0].mxu0
        %v2241 = vadd.f32 %v2076, %v2240
        %v2242 = vpop.f32.mrb[0].mxu0
        %v2243 = vpop.f32.mrb[0].mxu0
        %v2244 = vadd.f32 %v2076, %v2243
        %v2245 = vpop.f32.mrb[0].mxu0
        %2246 = vmatprep.mubr.bf16.mxu0 %v1922
        %2247 = vmatmul.mubr.bf16.gmra.mrb[0].mxu0 %v1921
        %v2248 = vpop.f32.mrb[0].mxu0
        %v2249 = vadd.f32 %v2076, %v2248
        %v2250 = vpop.f32.mrb[0].mxu0
        %v2251 = vpop.f32.mrb[0].mxu0
        %v2252 = vadd.f32 %v2076, %v2251
        %v2253 = vpop.f32.mrb[0].mxu0
        %2254 = vmatprep.mubr.bf16.mxu0 %v1924
        %2255 = vmatmul.mubr.bf16.gmra.mrb[0].mxu0 %v1923
        %v2256 = vpop.f32.mrb[0].mxu0
        %v2257 = vadd.f32 %v2076, %v2256
        %v2258 = vpop.f32.mrb[0].mxu0
        %v2259 = vpop.f32.mrb[0].mxu0
        %v2260 = vadd.f32 %v2076, %v2259
        %v2261 = vpop.f32.mrb[0].mxu0
        %2262 = vmatprep.mubr.bf16.mxu0 %v1926
        %2263 = vmatmul.mubr.bf16.gmra.mrb[0].mxu0 %v1925
        %v2264 = vpop.f32.mrb[0].mxu0
        %v2265 = vadd.f32 %v2076, %v2264
        %v2266 = vpop.f32.mrb[0].mxu0
        %v2267 = vpop.f32.mrb[0].mxu0
        %v2268 = vadd.f32 %v2076, %v2267
        %v2269 = vpop.f32.mrb[0].mxu0
        %2270 = vmatprep.mubr.bf16.mxu0 %v1928
        %2271 = vmatmul.mubr.bf16.gmra.mrb[0].mxu0 %v1927
        %v2272 = vpop.f32.mrb[0].mxu0
        %v2273 = vadd.f32 %v2076, %v2272
        %v2274 = vpop.f32.mrb[0].mxu0
        %v2275 = vpop.f32.mrb[0].mxu0
        %v2276 = vadd.f32 %v2076, %v2275
        %v2277 = vpop.f32.mrb[0].mxu0
        %2278 = vmatprep.mubr.bf16.mxu0 %v1930
        %2279 = vmatmul.mubr.bf16.gmra.mrb[0].mxu0 %v1929
        %v2280 = vpop.f32.mrb[0].mxu0
        %v2281 = vadd.f32 %v2076, %v2280
        %v2282 = vpop.f32.mrb[0].mxu0
        %v2283 = vpop.f32.mrb[0].mxu0
        %v2284 = vadd.f32 %v2076, %v2283
        %v2285 = vpop.f32.mrb[0].mxu0
        %2286 = vmatprep.mubr.bf16.mxu0 %v1932
        %2287 = vmatmul.mubr.bf16.gmra.mrb[0].mxu0 %v1931
        %v2288 = vpop.f32.mrb[0].mxu0
        %v2289 = vadd.f32 %v2076, %v2288
        %v2290 = vpop.f32.mrb[0].mxu0
        %v2291 = vpop.f32.mrb[0].mxu0
        %v2292 = vadd.f32 %v2076, %v2291
        %v2293 = vpop.f32.mrb[0].mxu0
        %2294 = vmatprep.mubr.bf16.mxu0 %v1934
        %2295 = vmatmul.mubr.bf16.gmra.mrb[0].mxu0 %v1933
        %v2296 = vpop.f32.mrb[0].mxu0
        %v2297 = vadd.f32 %v2076, %v2296
        %v2298 = vpop.f32.mrb[0].mxu0
        %v2299 = vpop.f32.mrb[0].mxu0
        %v2300 = vadd.f32 %v2076, %v2299
        %v2301 = vpop.f32.mrb[0].mxu0
        %2302 = vmatprep.mubr.bf16.mxu0 %v1936
        %2303 = vmatmul.mubr.bf16.gmra.mrb[0].mxu0 %v1935
        %v2304 = vpop.f32.mrb[0].mxu0
        %v2305 = vadd.f32 %v2076, %v2304
        %v2306 = vpop.f32.mrb[0].mxu0
        %v2307 = vpop.f32.mrb[0].mxu0
        %v2308 = vadd.f32 %v2076, %v2307
        %v2309 = vpop.f32.mrb[0].mxu0
        %2310 = vmatprep.mubr.bf16.mxu0 %v1938
        %2311 = vmatmul.mubr.bf16.gmra.mrb[0].mxu0 %v1937
        %v2312 = vpop.f32.mrb[0].mxu0
        %v2313 = vadd.f32 %v2076, %v2312
        %v2314 = vpop.f32.mrb[0].mxu0
        %v2315 = vpop.f32.mrb[0].mxu0
        %v2316 = vadd.f32 %v2076, %v2315
        %v2317 = vpop.f32.mrb[0].mxu0
        %2318 = vmatprep.mubr.bf16.mxu0 %v1940
        %2319 = vmatmul.mubr.bf16.gmra.mrb[0].mxu0 %v1939
        %v2320 = vpop.f32.mrb[0].mxu0
        %v2321 = vadd.f32 %v2076, %v2320
        %v2322 = vpop.f32.mrb[0].mxu0
        %v2323 = vpop.f32.mrb[0].mxu0
        %v2324 = vadd.f32 %v2076, %v2323
        %v2325 = vpop.f32.mrb[0].mxu0
        %2326 = vmatprep.mubr.bf16.mxu0 %v1942
        %2327 = vmatmul.mubr.bf16.gmra.mrb[0].mxu0 %v1941
        %v2328 = vpop.f32.mrb[0].mxu0
        %v2329 = vadd.f32 %v2076, %v2328
        %v2330 = vpop.f32.mrb[0].mxu0
        %v2331 = vpop.f32.mrb[0].mxu0
        %v2332 = vadd.f32 %v2076, %v2331
        %v2333 = vpop.f32.mrb[0].mxu0
        %2334 = vmatprep.mubr.bf16.mxu0 %v1944
        %2335 = vmatmul.mubr.bf16.gmra.mrb[0].mxu0 %v1943
        %v2336 = vpop.f32.mrb[0].mxu0
        %v2337 = vadd.f32 %v2076, %v2336
        %v2338 = vpop.f32.mrb[0].mxu0
        %v2339 = vpop.f32.mrb[0].mxu0
        %v2340 = vadd.f32 %v2076, %v2339
        %v2341 = vpop.f32.mrb[0].mxu0
        %2342 = vmatprep.mubr.bf16.mxu0 %v1946
        %2343 = vmatmul.mubr.bf16.gmra.mrb[0].mxu0 %v1945
        %v2344 = vpop.f32.mrb[0].mxu0
        %v2345 = vadd.f32 %v2076, %v2344
        %v2346 = vpop.f32.mrb[0].mxu0
        %v2347 = vpop.f32.mrb[0].mxu0
        %v2348 = vadd.f32 %v2076, %v2347
        %v2349 = vpop.f32.mrb[0].mxu0
        %2350 = vmatprep.mubr.bf16.mxu0 %v1948
        %2351 = vmatmul.mubr.bf16.gmra.mrb[0].mxu0 %v1947
        %v2352 = vpop.f32.mrb[0].mxu0
        %v2353 = vadd.f32 %v2076, %v2352
        %v2354 = vpop.f32.mrb[0].mxu0
        %v2355 = vpop.f32.mrb[0].mxu0
        %v2356 = vadd.f32 %v2076, %v2355
        %v2357 = vpop.f32.mrb[0].mxu0
        %2358 = vmatprep.mubr.bf16.mxu0 %v1950
        %2359 = vmatmul.mubr.bf16.gmra.mrb[0].mxu0 %v1949
        %v2360 = vpop.f32.mrb[0].mxu0
        %v2361 = vadd.f32 %v2076, %v2360
        %v2362 = vpop.f32.mrb[0].mxu0
        %v2363 = vpop.f32.mrb[0].mxu0
        %v2364 = vadd.f32 %v2076, %v2363
        %v2365 = vpop.f32.mrb[0].mxu0
        %2366 = vmatprep.mubr.bf16.mxu0 %v1952
        %2367 = vmatmul.mubr.bf16.gmra.mrb[0].mxu0 %v1951
        %v2368 = vpop.f32.mrb[0].mxu0
        %v2369 = vadd.f32 %v2076, %v2368
        %v2370 = vpop.f32.mrb[0].mxu0
        %v2371 = vpop.f32.mrb[0].mxu0
        %v2372 = vadd.f32 %v2076, %v2371
        %v2373 = vpop.f32.mrb[0].mxu0
        %2374 = vmatprep.mubr.bf16.mxu0 %v1954
        %2375 = vmatmul.mubr.bf16.gmra.mrb[0].mxu0 %v1953
        %v2376 = vpop.f32.mrb[0].mxu0
        %v2377 = vadd.f32 %v2076, %v2376
        %v2378 = vpop.f32.mrb[0].mxu0
        %v2379 = vpop.f32.mrb[0].mxu0
        %v2380 = vadd.f32 %v2076, %v2379
        %v2381 = vpop.f32.mrb[0].mxu0
        %2382 = vmatprep.mubr.bf16.mxu0 %v1956
        %2383 = vmatmul.mubr.bf16.gmra.mrb[0].mxu0 %v1955
        %v2384 = vpop.f32.mrb[0].mxu0
        %v2385 = vadd.f32 %v2076, %v2384
        %v2386 = vpop.f32.mrb[0].mxu0
        %v2387 = vpop.f32.mrb[0].mxu0
        %v2388 = vadd.f32 %v2076, %v2387
        %v2389 = vpop.f32.mrb[0].mxu0
        %2390 = vmatprep.mubr.bf16.mxu0 %v1958
        %2391 = vmatmul.mubr.bf16.gmra.mrb[0].mxu0 %v1957
        %v2392 = vpop.f32.mrb[0].mxu0
        %v2393 = vadd.f32 %v2076, %v2392
        %v2394 = vpop.f32.mrb[0].mxu0
        %v2395 = vpop.f32.mrb[0].mxu0
        %v2396 = vadd.f32 %v2076, %v2395
        %v2397 = vpop.f32.mrb[0].mxu0
        %2398 = vmatprep.mubr.bf16.mxu0 %v1960
        %2399 = vmatmul.mubr.bf16.gmra.mrb[0].mxu0 %v1959
        %v2400 = vpop.f32.mrb[0].mxu0
        %v2401 = vadd.f32 %v2076, %v2400
        %v2402 = vpop.f32.mrb[0].mxu0
        %v2403 = vpop.f32.mrb[0].mxu0
        %v2404 = vadd.f32 %v2076, %v2403
        %v2405 = vpop.f32.mrb[0].mxu0
        %2406 = vmatprep.mubr.bf16.mxu0 %v1962
        %2407 = vmatmul.mubr.bf16.gmra.mrb[0].mxu0 %v1961
        %v2408 = vpop.f32.mrb[0].mxu0
        %v2409 = vadd.f32 %v2076, %v2408
        %v2410 = vpop.f32.mrb[0].mxu0
        %v2411 = vpop.f32.mrb[0].mxu0
        %v2412 = vadd.f32 %v2076, %v2411
        %v2413 = vpop.f32.mrb[0].mxu0
        %2414 = vmatprep.mubr.bf16.mxu0 %v1964
        %2415 = vmatmul.mubr.bf16.gmra.mrb[0].mxu0 %v1963
        %v2416 = vpop.f32.mrb[0].mxu0
        %v2417 = vadd.f32 %v2076, %v2416
        %v2418 = vpop.f32.mrb[0].mxu0
        %v2419 = vpop.f32.mrb[0].mxu0
        %v2420 = vadd.f32 %v2076, %v2419
        %v2421 = vpop.f32.mrb[0].mxu0
        %2422 = vmatprep.mubr.bf16.mxu0 %v1966
        %2423 = vmatmul.mubr.bf16.gmra.mrb[0].mxu0 %v1965
        %v2424 = vpop.f32.mrb[0].mxu0
        %v2425 = vadd.f32 %v2076, %v2424
        %v2426 = vpop.f32.mrb[0].mxu0
        %v2427 = vpop.f32.mrb[0].mxu0
        %v2428 = vadd.f32 %v2076, %v2427
        %v2429 = vpop.f32.mrb[0].mxu0
        %2430 = vmatprep.mubr.bf16.mxu0 %v1968
        %2431 = vmatmul.mubr.bf16.gmra.mrb[0].mxu0 %v1967
        %v2432 = vpop.f32.mrb[0].mxu0
        %v2433 = vadd.f32 %v2076, %v2432
        %v2434 = vpop.f32.mrb[0].mxu0
        %v2435 = vpop.f32.mrb[0].mxu0
        %v2436 = vadd.f32 %v2076, %v2435
        %v2437 = vpop.f32.mrb[0].mxu0
        %2438 = vmatprep.mubr.bf16.mxu0 %v1970
        %2439 = vmatmul.mubr.bf16.gmra.mrb[0].mxu0 %v1969
        %v2440 = vpop.f32.mrb[0].mxu0
        %v2441 = vadd.f32 %v2076, %v2440
        %v2442 = vpop.f32.mrb[0].mxu0
        %v2443 = vpop.f32.mrb[0].mxu0
        %v2444 = vadd.f32 %v2076, %v2443
        %v2445 = vpop.f32.mrb[0].mxu0
        %2446 = vmatprep.mubr.bf16.mxu0 %v1972
        %2447 = vmatmul.mubr.bf16.gmra.mrb[0].mxu0 %v1971
        %v2448 = vpop.f32.mrb[0].mxu0
        %v2449 = vadd.f32 %v2076, %v2448
        %v2450 = vpop.f32.mrb[0].mxu0
        %v2451 = vpop.f32.mrb[0].mxu0
        %v2452 = vadd.f32 %v2076, %v2451
        %v2453 = vpop.f32.mrb[0].mxu0
        %2454 = vmatprep.mubr.bf16.mxu0 %v1974
        %2455 = vmatmul.mubr.bf16.gmra.mrb[0].mxu0 %v1973
        %v2456 = vpop.f32.mrb[0].mxu0
        %v2457 = vadd.f32 %v2076, %v2456
        %v2458 = vpop.f32.mrb[0].mxu0
        %v2459 = vpop.f32.mrb[0].mxu0
        %v2460 = vadd.f32 %v2076, %v2459
        %v2461 = vpop.f32.mrb[0].mxu0
        %2462 = vmatprep.mubr.bf16.mxu0 %v1976
        %2463 = vmatmul.mubr.bf16.gmra.mrb[0].mxu0 %v1975
        %v2464 = vpop.f32.mrb[0].mxu0
        %v2465 = vadd.f32 %v2076, %v2464
        %v2466 = vpop.f32.mrb[0].mxu0
        %v2467 = vpop.f32.mrb[0].mxu0
        %v2468 = vadd.f32 %v2076, %v2467
        %v2469 = vpop.f32.mrb[0].mxu0
        %2470 = vmatprep.mubr.bf16.mxu0 %v1978
        %2471 = vmatmul.mubr.bf16.gmra.mrb[0].mxu0 %v1977
        %v2472 = vpop.f32.mrb[0].mxu0
        %v2473 = vadd.f32 %v2076, %v2472
        %v2474 = vpop.f32.mrb[0].mxu0
        %v2475 = vpop.f32.mrb[0].mxu0
        %v2476 = vadd.f32 %v2076, %v2475
        %v2477 = vpop.f32.mrb[0].mxu0
        %2478 = vmatprep.mubr.bf16.mxu0 %v1980
        %2479 = vmatmul.mubr.bf16.gmra.mrb[0].mxu0 %v1979
        %v2480 = vpop.f32.mrb[0].mxu0
        %v2481 = vadd.f32 %v2076, %v2480
        %v2482 = vpop.f32.mrb[0].mxu0
        %v2483 = vpop.f32.mrb[0].mxu0
        %v2484 = vadd.f32 %v2076, %v2483
        %v2485 = vpop.f32.mrb[0].mxu0
        %2486 = vmatprep.mubr.bf16.mxu0 %v1982
        %2487 = vmatmul.mubr.bf16.gmra.mrb[0].mxu0 %v1981
        %v2488 = vpop.f32.mrb[0].mxu0
        %v2489 = vadd.f32 %v2076, %v2488
        %v2490 = vpop.f32.mrb[0].mxu0
        %v2491 = vpop.f32.mrb[0].mxu0
        %v2492 = vadd.f32 %v2076, %v2491
        %v2493 = vpop.f32.mrb[0].mxu0
        %2494 = vmatprep.mubr.bf16.mxu0 %v1984
        %2495 = vmatmul.mubr.bf16.gmra.mrb[0].mxu0 %v1983
        %v2496 = vpop.f32.mrb[0].mxu0
        %v2497 = vadd.f32 %v2076, %v2496
        %v2498 = vpop.f32.mrb[0].mxu0
        %v2499 = vpop.f32.mrb[0].mxu0
        %v2500 = vadd.f32 %v2076, %v2499
        %v2501 = vpop.f32.mrb[0].mxu0
        %2502 = vmatprep.mubr.bf16.mxu0 %v1986
        %2503 = vmatmul.mubr.bf16.gmra.mrb[0].mxu0 %v1985
        %v2504 = vpop.f32.mrb[0].mxu0
        %v2505 = vadd.f32 %v2076, %v2504
        %v2506 = vpop.f32.mrb[0].mxu0
        %v2507 = vpop.f32.mrb[0].mxu0
        %v2508 = vadd.f32 %v2076, %v2507
        %v2509 = vpop.f32.mrb[0].mxu0
        %2510 = vmatprep.mubr.bf16.mxu0 %v1988
        %2511 = vmatmul.mubr.bf16.gmra.mrb[0].mxu0 %v1987
        %v2512 = vpop.f32.mrb[0].mxu0
        %v2513 = vadd.f32 %v2076, %v2512
        %v2514 = vpop.f32.mrb[0].mxu0
        %v2515 = vpop.f32.mrb[0].mxu0
        %v2516 = vadd.f32 %v2076, %v2515
        %v2517 = vpop.f32.mrb[0].mxu0
        %2518 = vmatprep.mubr.bf16.mxu0 %v1990
        %2519 = vmatmul.mubr.bf16.gmra.mrb[0].mxu0 %v1989
        %v2520 = vpop.f32.mrb[0].mxu0
        %v2521 = vadd.f32 %v2076, %v2520
        %v2522 = vpop.f32.mrb[0].mxu0
        %v2523 = vpop.f32.mrb[0].mxu0
        %v2524 = vadd.f32 %v2076, %v2523
        %v2525 = vpop.f32.mrb[0].mxu0
        %2526 = vmatprep.mubr.bf16.mxu0 %v1992
        %2527 = vmatmul.mubr.bf16.gmra.mrb[0].mxu0 %v1991
        %v2528 = vpop.f32.mrb[0].mxu0
        %v2529 = vadd.f32 %v2076, %v2528
        %v2530 = vpop.f32.mrb[0].mxu0
        %v2531 = vpop.f32.mrb[0].mxu0
        %v2532 = vadd.f32 %v2076, %v2531
        %v2533 = vpop.f32.mrb[0].mxu0
        %2534 = vmatprep.mubr.bf16.mxu0 %v1994
        %2535 = vmatmul.mubr.bf16.gmra.mrb[0].mxu0 %v1993
        %v2536 = vpop.f32.mrb[0].mxu0
        %v2537 = vadd.f32 %v2076, %v2536
        %v2538 = vpop.f32.mrb[0].mxu0
        %v2539 = vpop.f32.mrb[0].mxu0
        %v2540 = vadd.f32 %v2076, %v2539
        %v2541 = vpop.f32.mrb[0].mxu0
        %2542 = vmatprep.mubr.bf16.mxu0 %v1996
        %2543 = vmatmul.mubr.bf16.gmra.mrb[0].mxu0 %v1995
        %v2544 = vpop.f32.mrb[0].mxu0
        %v2545 = vadd.f32 %v2076, %v2544
        %v2546 = vpop.f32.mrb[0].mxu0
        %v2547 = vpop.f32.mrb[0].mxu0
        %v2548 = vadd.f32 %v2076, %v2547
        %v2549 = vpop.f32.mrb[0].mxu0
        %2550 = vmatprep.mubr.bf16.mxu0 %v1998
        %2551 = vmatmul.mubr.bf16.gmra.mrb[0].mxu0 %v1997
        %v2552 = vpop.f32.mrb[0].mxu0
        %v2553 = vadd.f32 %v2076, %v2552
        %v2554 = vpop.f32.mrb[0].mxu0
        %v2555 = vpop.f32.mrb[0].mxu0
        %v2556 = vadd.f32 %v2076, %v2555
        %v2557 = vpop.f32.mrb[0].mxu0
        %2558 = vmatprep.mubr.bf16.mxu0 %v2000
        %2559 = vmatmul.mubr.bf16.gmra.mrb[0].mxu0 %v1999
        %v2560 = vpop.f32.mrb[0].mxu0
        %v2561 = vadd.f32 %v2076, %v2560
        %v2562 = vpop.f32.mrb[0].mxu0
        %v2563 = vpop.f32.mrb[0].mxu0
        %v2564 = vadd.f32 %v2076, %v2563
        %v2565 = vpop.f32.mrb[0].mxu0
        %2566 = vmatprep.mubr.bf16.mxu0 %v2002
        %2567 = vmatmul.mubr.bf16.gmra.mrb[0].mxu0 %v2001
        %v2568 = vpop.f32.mrb[0].mxu0
        %v2569 = vadd.f32 %v2076, %v2568
        %v2570 = vpop.f32.mrb[0].mxu0
        %v2571 = vpop.f32.mrb[0].mxu0
        %v2572 = vadd.f32 %v2076, %v2571
        %v2573 = vpop.f32.mrb[0].mxu0
        %2574 = vmatprep.mubr.bf16.mxu0 %v2004
        %2575 = vmatmul.mubr.bf16.gmra.mrb[0].mxu0 %v2003
        %v2576 = vpop.f32.mrb[0].mxu0
        %v2577 = vadd.f32 %v2076, %v2576
        %v2578 = vpop.f32.mrb[0].mxu0
        %v2579 = vpop.f32.mrb[0].mxu0
        %v2580 = vadd.f32 %v2076, %v2579
        %v2581 = vpop.f32.mrb[0].mxu0
        %2582 = vmatprep.mubr.bf16.mxu0 %v2006
        %2583 = vmatmul.mubr.bf16.gmra.mrb[0].mxu0 %v2005
        %v2584 = vpop.f32.mrb[0].mxu0
        %v2585 = vadd.f32 %v2076, %v2584
        %v2586 = vpop.f32.mrb[0].mxu0
        %v2587 = vpop.f32.mrb[0].mxu0
        %v2588 = vadd.f32 %v2076, %v2587
        %v2589 = vpop.f32.mrb[0].mxu0
        %2590 = vmatprep.mubr.bf16.mxu0 %v2008
        %2591 = vmatmul.mubr.bf16.gmra.mrb[0].mxu0 %v2007
        %v2592 = vpop.f32.mrb[0].mxu0
        %v2593 = vadd.f32 %v2076, %v2592
        %v2594 = vpop.f32.mrb[0].mxu0
        %v2595 = vpop.f32.mrb[0].mxu0
        %v2596 = vadd.f32 %v2076, %v2595
        %v2597 = vpop.f32.mrb[0].mxu0
        %2598 = vmatprep.mubr.bf16.mxu0 %v2010
        %2599 = vmatmul.mubr.bf16.gmra.mrb[0].mxu0 %v2009
        %v2600 = vpop.f32.mrb[0].mxu0
        %v2601 = vadd.f32 %v2076, %v2600
        %v2602 = vpop.f32.mrb[0].mxu0
        %v2603 = vpop.f32.mrb[0].mxu0
        %v2604 = vadd.f32 %v2076, %v2603
        %v2605 = vpop.f32.mrb[0].mxu0
        %2606 = vmatprep.mubr.bf16.mxu0 %v2012
        %2607 = vmatmul.mubr.bf16.gmra.mrb[0].mxu0 %v2011
        %v2608 = vpop.f32.mrb[0].mxu0
        %v2609 = vadd.f32 %v2076, %v2608
        %v2610 = vpop.f32.mrb[0].mxu0
        %v2611 = vpop.f32.mrb[0].mxu0
        %v2612 = vadd.f32 %v2076, %v2611
        %v2613 = vpop.f32.mrb[0].mxu0
        %2614 = vmatprep.mubr.bf16.mxu0 %v2014
        %2615 = vmatmul.mubr.bf16.gmra.mrb[0].mxu0 %v2013
        %v2616 = vpop.f32.mrb[0].mxu0
        %v2617 = vadd.f32 %v2076, %v2616
        %v2618 = vpop.f32.mrb[0].mxu0
        %v2619 = vpop.f32.mrb[0].mxu0
        %v2620 = vadd.f32 %v2076, %v2619
        %v2621 = vpop.f32.mrb[0].mxu0
        %2622 = vmatprep.mubr.bf16.mxu0 %v2016
        %2623 = vmatmul.mubr.bf16.gmra.mrb[0].mxu0 %v2015
        %v2624 = vpop.f32.mrb[0].mxu0
        %v2625 = vadd.f32 %v2076, %v2624
        %v2626 = vpop.f32.mrb[0].mxu0
        %v2627 = vpop.f32.mrb[0].mxu0
        %v2628 = vadd.f32 %v2076, %v2627
        %v2629 = vpop.f32.mrb[0].mxu0
        %2630 = vmatprep.mubr.bf16.mxu0 %v2018
        %2631 = vmatmul.mubr.bf16.gmra.mrb[0].mxu0 %v2017
        %v2632 = vpop.f32.mrb[0].mxu0
        %v2633 = vadd.f32 %v2076, %v2632
        %v2634 = vpop.f32.mrb[0].mxu0
        %v2635 = vpop.f32.mrb[0].mxu0
        %v2636 = vadd.f32 %v2076, %v2635
        %v2637 = vpop.f32.mrb[0].mxu0
        %2638 = vmatprep.mubr.bf16.mxu0 %v2020
        %2639 = vmatmul.mubr.bf16.gmra.mrb[0].mxu0 %v2019
        %v2640 = vpop.f32.mrb[0].mxu0
        %v2641 = vadd.f32 %v2076, %v2640
        %v2642 = vpop.f32.mrb[0].mxu0
        %v2643 = vpop.f32.mrb[0].mxu0
        %v2644 = vadd.f32 %v2076, %v2643
        %v2645 = vpop.f32.mrb[0].mxu0
        %2646 = vmatprep.mubr.bf16.mxu0 %v2022
        %2647 = vmatmul.mubr.bf16.gmra.mrb[0].mxu0 %v2021
        %v2648 = vpop.f32.mrb[0].mxu0
        %v2649 = vadd.f32 %v2076, %v2648
        %v2650 = vpop.f32.mrb[0].mxu0
        %v2651 = vpop.f32.mrb[0].mxu0
        %v2652 = vadd.f32 %v2076, %v2651
        %v2653 = vpop.f32.mrb[0].mxu0
        %2654 = vmatprep.mubr.bf16.mxu0 %v2024
        %2655 = vmatmul.mubr.bf16.gmra.mrb[0].mxu0 %v2023
        %v2656 = vpop.f32.mrb[0].mxu0
        %v2657 = vadd.f32 %v2076, %v2656
        %v2658 = vpop.f32.mrb[0].mxu0
        %v2659 = vpop.f32.mrb[0].mxu0
        %v2660 = vadd.f32 %v2076, %v2659
        %v2661 = vpop.f32.mrb[0].mxu0
        %2662 = vmatprep.mubr.bf16.mxu0 %v2026
        %2663 = vmatmul.mubr.bf16.gmra.mrb[0].mxu0 %v2025
        %v2664 = vpop.f32.mrb[0].mxu0
        %v2665 = vadd.f32 %v2076, %v2664
        %v2666 = vpop.f32.mrb[0].mxu0
        %v2667 = vpop.f32.mrb[0].mxu0
        %v2668 = vadd.f32 %v2076, %v2667
        %v2669 = vpop.f32.mrb[0].mxu0
        %2670 = vmatprep.mubr.bf16.mxu0 %v2028
        %2671 = vmatmul.mubr.bf16.gmra.mrb[0].mxu0 %v2027
        %v2672 = vpop.f32.mrb[0].mxu0
        %v2673 = vadd.f32 %v2076, %v2672
        %v2674 = vpop.f32.mrb[0].mxu0
        %v2675 = vpop.f32.mrb[0].mxu0
        %v2676 = vadd.f32 %v2076, %v2675
        %v2677 = vpop.f32.mrb[0].mxu0
        %2678 = vmatprep.mubr.bf16.mxu0 %v2030
        %2679 = vmatmul.mubr.bf16.gmra.mrb[0].mxu0 %v2029
        %v2680 = vpop.f32.mrb[0].mxu0
        %v2681 = vadd.f32 %v2076, %v2680
        %v2682 = vpop.f32.mrb[0].mxu0
        %v2683 = vpop.f32.mrb[0].mxu0
        %v2684 = vadd.f32 %v2076, %v2683
        %v2685 = vpop.f32.mrb[0].mxu0
        %2686 = vmatprep.mubr.bf16.mxu0 %v2032
        %2687 = vmatmul.mubr.bf16.gmra.mrb[0].mxu0 %v2031
        %v2688 = vpop.f32.mrb[0].mxu0
        %v2689 = vadd.f32 %v2076, %v2688
        %v2690 = vpop.f32.mrb[0].mxu0
        %v2691 = vpop.f32.mrb[0].mxu0
        %v2692 = vadd.f32 %v2076, %v2691
        %v2693 = vpop.f32.mrb[0].mxu0
        %2694 = vmatprep.mubr.bf16.mxu0 %v2034
        %2695 = vmatmul.mubr.bf16.gmra.mrb[0].mxu0 %v2033
        %v2696 = vpop.f32.mrb[0].mxu0
        %v2697 = vadd.f32 %v2076, %v2696
        %v2698 = vpop.f32.mrb[0].mxu0
        %v2699 = vpop.f32.mrb[0].mxu0
        %v2700 = vadd.f32 %v2076, %v2699
        %v2701 = vpop.f32.mrb[0].mxu0
        %2702 = vmatprep.mubr.bf16.mxu0 %v2036
        %2703 = vmatmul.mubr.bf16.gmra.mrb[0].mxu0 %v2035
        %v2704 = vpop.f32.mrb[0].mxu0
        %v2705 = vadd.f32 %v2076, %v2704
        %v2706 = vpop.f32.mrb[0].mxu0
        %v2707 = vpop.f32.mrb[0].mxu0
        %v2708 = vadd.f32 %v2076, %v2707
        %v2709 = vpop.f32.mrb[0].mxu0
        %2710 = vmatprep.mubr.bf16.mxu0 %v2038
        %2711 = vmatmul.mubr.bf16.gmra.mrb[0].mxu0 %v2037
        %v2712 = vpop.f32.mrb[0].mxu0
        %v2713 = vadd.f32 %v2076, %v2712
        %v2714 = vpop.f32.mrb[0].mxu0
        %v2715 = vpop.f32.mrb[0].mxu0
        %v2716 = vadd.f32 %v2076, %v2715
        %v2717 = vpop.f32.mrb[0].mxu0
        %2718 = vdwg.mxu0
        %v2719 = vld [vmem:[%s309] sm:$0xf]
        %v2720 = vld [vmem:[%s309 + $0x4] sm:$0xf]
        %v2721 = vld [vmem:[%s309 + $0x8] sm:$0xf]
        %v2722 = vld [vmem:[%s309 + $0xc] sm:$0xf]
        %v2723 = vld [vmem:[%s309 + $0x10] sm:$0xf]
        %v2724 = vld [vmem:[%s309 + $0x14] sm:$0xf]
        %v2725 = vld [vmem:[%s309 + $0x18] sm:$0xf]
        %v2726 = vld [vmem:[%s309 + $0x1c] sm:$0xf]
        %v2727 = vld [vmem:[%s309 + $0x20] sm:$0xf]
        %v2728 = vld [vmem:[%s309 + $0x24] sm:$0xf]
        %v2729 = vld [vmem:[%s309 + $0x28] sm:$0xf]
        %v2730 = vld [vmem:[%s309 + $0x2c] sm:$0xf]
        %v2731 = vld [vmem:[%s309 + $0x30] sm:$0xf]
        %v2732 = vld [vmem:[%s309 + $0x34] sm:$0xf]
        %v2733 = vld [vmem:[%s309 + $0x38] sm:$0xf]
        %v2734 = vld [vmem:[%s309 + $0x3c] sm:$0xf]
        %v2735 = vld [vmem:[%s309 + $0x40] sm:$0xf]
        %v2736 = vld [vmem:[%s309 + $0x44] sm:$0xf]
        %v2737 = vld [vmem:[%s309 + $0x48] sm:$0xf]
        %v2738 = vld [vmem:[%s309 + $0x4c] sm:$0xf]
        %v2739 = vld [vmem:[%s309 + $0x50] sm:$0xf]
        %v2740 = vld [vmem:[%s309 + $0x54] sm:$0xf]
        %v2741 = vld [vmem:[%s309 + $0x58] sm:$0xf]
        %v2742 = vld [vmem:[%s309 + $0x5c] sm:$0xf]
        %v2743 = vld [vmem:[%s309 + $0x60] sm:$0xf]
        %v2744 = vld [vmem:[%s309 + $0x64] sm:$0xf]
        %v2745 = vld [vmem:[%s309 + $0x68] sm:$0xf]
        %v2746 = vld [vmem:[%s309 + $0x6c] sm:$0xf]
        %v2747 = vld [vmem:[%s309 + $0x70] sm:$0xf]
        %v2748 = vld [vmem:[%s309 + $0x74] sm:$0xf]
        %v2749 = vld [vmem:[%s309 + $0x78] sm:$0xf]
        %v2750 = vld [vmem:[%s309 + $0x7c] sm:$0xf]
        %v2751 = vld [vmem:[%s309 + $0x80] sm:$0xf]
        %v2752 = vld [vmem:[%s309 + $0x84] sm:$0xf]
        %v2753 = vld [vmem:[%s309 + $0x88] sm:$0xf]
        %v2754 = vld [vmem:[%s309 + $0x8c] sm:$0xf]
        %v2755 = vld [vmem:[%s309 + $0x90] sm:$0xf]
        %v2756 = vld [vmem:[%s309 + $0x94] sm:$0xf]
        %v2757 = vld [vmem:[%s309 + $0x98] sm:$0xf]
        %v2758 = vld [vmem:[%s309 + $0x9c] sm:$0xf]
        %v2759 = vld [vmem:[%s309 + $0xa0] sm:$0xf]
        %v2760 = vld [vmem:[%s309 + $0xa4] sm:$0xf]
        %v2761 = vld [vmem:[%s309 + $0xa8] sm:$0xf]
        %v2762 = vld [vmem:[%s309 + $0xac] sm:$0xf]
        %v2763 = vld [vmem:[%s309 + $0xb0] sm:$0xf]
        %v2764 = vld [vmem:[%s309 + $0xb4] sm:$0xf]
        %v2765 = vld [vmem:[%s309 + $0xb8] sm:$0xf]
        %v2766 = vld [vmem:[%s309 + $0xbc] sm:$0xf]
        %v2767 = vld [vmem:[%s309 + $0xc0] sm:$0xf]
        %v2768 = vld [vmem:[%s309 + $0xc4] sm:$0xf]
        %v2769 = vld [vmem:[%s309 + $0xc8] sm:$0xf]
        %v2770 = vld [vmem:[%s309 + $0xcc] sm:$0xf]
        %v2771 = vld [vmem:[%s309 + $0xd0] sm:$0xf]
        %v2772 = vld [vmem:[%s309 + $0xd4] sm:$0xf]
        %v2773 = vld [vmem:[%s309 + $0xd8] sm:$0xf]
        %v2774 = vld [vmem:[%s309 + $0xdc] sm:$0xf]
        %v2775 = vld [vmem:[%s309 + $0xe0] sm:$0xf]
        %v2776 = vld [vmem:[%s309 + $0xe4] sm:$0xf]
        %v2777 = vld [vmem:[%s309 + $0xe8] sm:$0xf]
        %v2778 = vld [vmem:[%s309 + $0xec] sm:$0xf]
        %v2779 = vld [vmem:[%s309 + $0xf0] sm:$0xf]
        %v2780 = vld [vmem:[%s309 + $0xf4] sm:$0xf]
        %v2781 = vld [vmem:[%s309 + $0xf8] sm:$0xf]
        %v2782 = vld [vmem:[%s309 + $0xfc] sm:$0xf]
        %v2783 = vld [vmem:[%s309 + $0x100] sm:$0xf]
        %v2784 = vld [vmem:[%s309 + $0x104] sm:$0xf]
        %v2785 = vld [vmem:[%s309 + $0x108] sm:$0xf]
        %v2786 = vld [vmem:[%s309 + $0x10c] sm:$0xf]
        %v2787 = vld [vmem:[%s309 + $0x110] sm:$0xf]
        %v2788 = vld [vmem:[%s309 + $0x114] sm:$0xf]
        %v2789 = vld [vmem:[%s309 + $0x118] sm:$0xf]
        %v2790 = vld [vmem:[%s309 + $0x11c] sm:$0xf]
        %v2791 = vld [vmem:[%s309 + $0x120] sm:$0xf]
        %v2792 = vld [vmem:[%s309 + $0x124] sm:$0xf]
        %v2793 = vld [vmem:[%s309 + $0x128] sm:$0xf]
        %v2794 = vld [vmem:[%s309 + $0x12c] sm:$0xf]
        %v2795 = vld [vmem:[%s309 + $0x130] sm:$0xf]
        %v2796 = vld [vmem:[%s309 + $0x134] sm:$0xf]
        %v2797 = vld [vmem:[%s309 + $0x138] sm:$0xf]
        %v2798 = vld [vmem:[%s309 + $0x13c] sm:$0xf]
        %v2799 = vld [vmem:[%s309 + $0x140] sm:$0xf]
        %v2800 = vld [vmem:[%s309 + $0x144] sm:$0xf]
        %v2801 = vld [vmem:[%s309 + $0x148] sm:$0xf]
        %v2802 = vld [vmem:[%s309 + $0x14c] sm:$0xf]
        %v2803 = vld [vmem:[%s309 + $0x150] sm:$0xf]
        %v2804 = vld [vmem:[%s309 + $0x154] sm:$0xf]
        %v2805 = vld [vmem:[%s309 + $0x158] sm:$0xf]
        %v2806 = vld [vmem:[%s309 + $0x15c] sm:$0xf]
        %v2807 = vld [vmem:[%s309 + $0x160] sm:$0xf]
        %v2808 = vld [vmem:[%s309 + $0x164] sm:$0xf]
        %v2809 = vld [vmem:[%s309 + $0x168] sm:$0xf]
        %v2810 = vld [vmem:[%s309 + $0x16c] sm:$0xf]
        %v2811 = vld [vmem:[%s309 + $0x170] sm:$0xf]
        %v2812 = vld [vmem:[%s309 + $0x174] sm:$0xf]
        %v2813 = vld [vmem:[%s309 + $0x178] sm:$0xf]
        %v2814 = vld [vmem:[%s309 + $0x17c] sm:$0xf]
        %v2815 = vld [vmem:[%s309 + $0x180] sm:$0xf]
        %v2816 = vld [vmem:[%s309 + $0x184] sm:$0xf]
        %v2817 = vld [vmem:[%s309 + $0x188] sm:$0xf]
        %v2818 = vld [vmem:[%s309 + $0x18c] sm:$0xf]
        %v2819 = vld [vmem:[%s309 + $0x190] sm:$0xf]
        %v2820 = vld [vmem:[%s309 + $0x194] sm:$0xf]
        %v2821 = vld [vmem:[%s309 + $0x198] sm:$0xf]
        %v2822 = vld [vmem:[%s309 + $0x19c] sm:$0xf]
        %v2823 = vld [vmem:[%s309 + $0x1a0] sm:$0xf]
        %v2824 = vld [vmem:[%s309 + $0x1a4] sm:$0xf]
        %v2825 = vld [vmem:[%s309 + $0x1a8] sm:$0xf]
        %v2826 = vld [vmem:[%s309 + $0x1ac] sm:$0xf]
        %v2827 = vld [vmem:[%s309 + $0x1b0] sm:$0xf]
        %v2828 = vld [vmem:[%s309 + $0x1b4] sm:$0xf]
        %v2829 = vld [vmem:[%s309 + $0x1b8] sm:$0xf]
        %v2830 = vld [vmem:[%s309 + $0x1bc] sm:$0xf]
        %v2831 = vld [vmem:[%s309 + $0x1c0] sm:$0xf]
        %v2832 = vld [vmem:[%s309 + $0x1c4] sm:$0xf]
        %v2833 = vld [vmem:[%s309 + $0x1c8] sm:$0xf]
        %v2834 = vld [vmem:[%s309 + $0x1cc] sm:$0xf]
        %v2835 = vld [vmem:[%s309 + $0x1d0] sm:$0xf]
        %v2836 = vld [vmem:[%s309 + $0x1d4] sm:$0xf]
        %v2837 = vld [vmem:[%s309 + $0x1d8] sm:$0xf]
        %v2838 = vld [vmem:[%s309 + $0x1dc] sm:$0xf]
        %v2839 = vld [vmem:[%s309 + $0x1e0] sm:$0xf]
        %v2840 = vld [vmem:[%s309 + $0x1e4] sm:$0xf]
        %v2841 = vld [vmem:[%s309 + $0x1e8] sm:$0xf]
        %v2842 = vld [vmem:[%s309 + $0x1ec] sm:$0xf]
        %v2843 = vld [vmem:[%s309 + $0x1f0] sm:$0xf]
        %v2844 = vld [vmem:[%s309 + $0x1f4] sm:$0xf]
        %v2845 = vld [vmem:[%s309 + $0x1f8] sm:$0xf]
        %v2846 = vld [vmem:[%s309 + $0x1fc] sm:$0xf]
        %v2847 = vunpack.c.l.bf16 %v2719
        %v2848 = vunpack.c.l.bf16 %v2720
        %v2849 = vunpack.c.l.bf16 %v2721
        %v2850 = vunpack.c.l.bf16 %v2722
        %v2851 = vunpack.c.l.bf16 %v2723
        %v2852 = vunpack.c.l.bf16 %v2724
        %v2853 = vunpack.c.l.bf16 %v2725
        %v2854 = vunpack.c.l.bf16 %v2726
        %v2855 = vunpack.c.l.bf16 %v2727
        %v2856 = vunpack.c.l.bf16 %v2728
        %v2857 = vunpack.c.l.bf16 %v2729
        %v2858 = vunpack.c.l.bf16 %v2730
        %v2859 = vunpack.c.l.bf16 %v2731
        %v2860 = vunpack.c.l.bf16 %v2732
        %v2861 = vunpack.c.l.bf16 %v2733
        %v2862 = vunpack.c.l.bf16 %v2734
        %v2863 = vunpack.c.l.bf16 %v2735
        %v2864 = vunpack.c.l.bf16 %v2736
        %v2865 = vunpack.c.l.bf16 %v2737
        %v2866 = vunpack.c.l.bf16 %v2738
        %v2867 = vunpack.c.l.bf16 %v2739
        %v2868 = vunpack.c.l.bf16 %v2740
        %v2869 = vunpack.c.l.bf16 %v2741
        %v2870 = vunpack.c.l.bf16 %v2742
        %v2871 = vunpack.c.l.bf16 %v2743
        %v2872 = vunpack.c.l.bf16 %v2744
        %v2873 = vunpack.c.l.bf16 %v2745
        %v2874 = vunpack.c.l.bf16 %v2746
        %v2875 = vunpack.c.l.bf16 %v2747
        %v2876 = vunpack.c.l.bf16 %v2748
        %v2877 = vunpack.c.l.bf16 %v2749
        %v2878 = vunpack.c.l.bf16 %v2750
        %v2879 = vunpack.c.l.bf16 %v2751
        %v2880 = vunpack.c.l.bf16 %v2752
        %v2881 = vunpack.c.l.bf16 %v2753
        %v2882 = vunpack.c.l.bf16 %v2754
        %v2883 = vunpack.c.l.bf16 %v2755
        %v2884 = vunpack.c.l.bf16 %v2756
        %v2885 = vunpack.c.l.bf16 %v2757
        %v2886 = vunpack.c.l.bf16 %v2758
        %v2887 = vunpack.c.l.bf16 %v2759
        %v2888 = vunpack.c.l.bf16 %v2760
        %v2889 = vunpack.c.l.bf16 %v2761
        %v2890 = vunpack.c.l.bf16 %v2762
        %v2891 = vunpack.c.l.bf16 %v2763
        %v2892 = vunpack.c.l.bf16 %v2764
        %v2893 = vunpack.c.l.bf16 %v2765
        %v2894 = vunpack.c.l.bf16 %v2766
        %v2895 = vunpack.c.l.bf16 %v2767
        %v2896 = vunpack.c.l.bf16 %v2768
        %v2897 = vunpack.c.l.bf16 %v2769
        %v2898 = vunpack.c.l.bf16 %v2770
        %v2899 = vunpack.c.l.bf16 %v2771
        %v2900 = vunpack.c.l.bf16 %v2772
        %v2901 = vunpack.c.l.bf16 %v2773
        %v2902 = vunpack.c.l.bf16 %v2774
        %v2903 = vunpack.c.l.bf16 %v2775
        %v2904 = vunpack.c.l.bf16 %v2776
        %v2905 = vunpack.c.l.bf16 %v2777
        %v2906 = vunpack.c.l.bf16 %v2778
        %v2907 = vunpack.c.l.bf16 %v2779
        %v2908 = vunpack.c.l.bf16 %v2780
        %v2909 = vunpack.c.l.bf16 %v2781
        %v2910 = vunpack.c.l.bf16 %v2782
        %v2911 = vunpack.c.l.bf16 %v2783
        %v2912 = vunpack.c.l.bf16 %v2784
        %v2913 = vunpack.c.l.bf16 %v2785
        %v2914 = vunpack.c.l.bf16 %v2786
        %v2915 = vunpack.c.l.bf16 %v2787
        %v2916 = vunpack.c.l.bf16 %v2788
        %v2917 = vunpack.c.l.bf16 %v2789
        %v2918 = vunpack.c.l.bf16 %v2790
        %v2919 = vunpack.c.l.bf16 %v2791
        %v2920 = vunpack.c.l.bf16 %v2792
        %v2921 = vunpack.c.l.bf16 %v2793
        %v2922 = vunpack.c.l.bf16 %v2794
        %v2923 = vunpack.c.l.bf16 %v2795
        %v2924 = vunpack.c.l.bf16 %v2796
        %v2925 = vunpack.c.l.bf16 %v2797
        %v2926 = vunpack.c.l.bf16 %v2798
        %v2927 = vunpack.c.l.bf16 %v2799
        %v2928 = vunpack.c.l.bf16 %v2800
        %v2929 = vunpack.c.l.bf16 %v2801
        %v2930 = vunpack.c.l.bf16 %v2802
        %v2931 = vunpack.c.l.bf16 %v2803
        %v2932 = vunpack.c.l.bf16 %v2804
        %v2933 = vunpack.c.l.bf16 %v2805
        %v2934 = vunpack.c.l.bf16 %v2806
        %v2935 = vunpack.c.l.bf16 %v2807
        %v2936 = vunpack.c.l.bf16 %v2808
        %v2937 = vunpack.c.l.bf16 %v2809
        %v2938 = vunpack.c.l.bf16 %v2810
        %v2939 = vunpack.c.l.bf16 %v2811
        %v2940 = vunpack.c.l.bf16 %v2812
        %v2941 = vunpack.c.l.bf16 %v2813
        %v2942 = vunpack.c.l.bf16 %v2814
        %v2943 = vunpack.c.l.bf16 %v2815
        %v2944 = vunpack.c.l.bf16 %v2816
        %v2945 = vunpack.c.l.bf16 %v2817
        %v2946 = vunpack.c.l.bf16 %v2818
        %v2947 = vunpack.c.l.bf16 %v2819
        %v2948 = vunpack.c.l.bf16 %v2820
        %v2949 = vunpack.c.l.bf16 %v2821
        %v2950 = vunpack.c.l.bf16 %v2822
        %v2951 = vunpack.c.l.bf16 %v2823
        %v2952 = vunpack.c.l.bf16 %v2824
        %v2953 = vunpack.c.l.bf16 %v2825
        %v2954 = vunpack.c.l.bf16 %v2826
        %v2955 = vunpack.c.l.bf16 %v2827
        %v2956 = vunpack.c.l.bf16 %v2828
        %v2957 = vunpack.c.l.bf16 %v2829
        %v2958 = vunpack.c.l.bf16 %v2830
        %v2959 = vunpack.c.l.bf16 %v2831
        %v2960 = vunpack.c.l.bf16 %v2832
        %v2961 = vunpack.c.l.bf16 %v2833
        %v2962 = vunpack.c.l.bf16 %v2834
        %v2963 = vunpack.c.l.bf16 %v2835
        %v2964 = vunpack.c.l.bf16 %v2836
        %v2965 = vunpack.c.l.bf16 %v2837
        %v2966 = vunpack.c.l.bf16 %v2838
        %v2967 = vunpack.c.l.bf16 %v2839
        %v2968 = vunpack.c.l.bf16 %v2840
        %v2969 = vunpack.c.l.bf16 %v2841
        %v2970 = vunpack.c.l.bf16 %v2842
        %v2971 = vunpack.c.l.bf16 %v2843
        %v2972 = vunpack.c.l.bf16 %v2844
        %v2973 = vunpack.c.l.bf16 %v2845
        %v2974 = vunpack.c.l.bf16 %v2846
        %v2975 = vsub.f32 %v2209, %v2847
        %v2976 = vsub.f32 %v2212, %v2848
        %v2977 = vsub.f32 %v2217, %v2849
        %v2978 = vsub.f32 %v2220, %v2850
        %v2979 = vsub.f32 %v2225, %v2851
        %v2980 = vsub.f32 %v2228, %v2852
        %v2981 = vsub.f32 %v2233, %v2853
        %v2982 = vsub.f32 %v2236, %v2854
        %v2983 = vsub.f32 %v2241, %v2855
        %v2984 = vsub.f32 %v2244, %v2856
        %v2985 = vsub.f32 %v2249, %v2857
        %v2986 = vsub.f32 %v2252, %v2858
        %v2987 = vsub.f32 %v2257, %v2859
        %v2988 = vsub.f32 %v2260, %v2860
        %v2989 = vsub.f32 %v2265, %v2861
        %v2990 = vsub.f32 %v2268, %v2862
        %v2991 = vsub.f32 %v2273, %v2863
        %v2992 = vsub.f32 %v2276, %v2864
        %v2993 = vsub.f32 %v2281, %v2865
        %v2994 = vsub.f32 %v2284, %v2866
        %v2995 = vsub.f32 %v2289, %v2867
        %v2996 = vsub.f32 %v2292, %v2868
        %v2997 = vsub.f32 %v2297, %v2869
        %v2998 = vsub.f32 %v2300, %v2870
        %v2999 = vsub.f32 %v2305, %v2871
        %v3000 = vsub.f32 %v2308, %v2872
        %v3001 = vsub.f32 %v2313, %v2873
        %v3002 = vsub.f32 %v2316, %v2874
        %v3003 = vsub.f32 %v2321, %v2875
        %v3004 = vsub.f32 %v2324, %v2876
        %v3005 = vsub.f32 %v2329, %v2877
        %v3006 = vsub.f32 %v2332, %v2878
        %v3007 = vsub.f32 %v2337, %v2879
        %v3008 = vsub.f32 %v2340, %v2880
        %v3009 = vsub.f32 %v2345, %v2881
        %v3010 = vsub.f32 %v2348, %v2882
        %v3011 = vsub.f32 %v2353, %v2883
        %v3012 = vsub.f32 %v2356, %v2884
        %v3013 = vsub.f32 %v2361, %v2885
        %v3014 = vsub.f32 %v2364, %v2886
        %v3015 = vsub.f32 %v2369, %v2887
        %v3016 = vsub.f32 %v2372, %v2888
        %v3017 = vsub.f32 %v2377, %v2889
        %v3018 = vsub.f32 %v2380, %v2890
        %v3019 = vsub.f32 %v2385, %v2891
        %v3020 = vsub.f32 %v2388, %v2892
        %v3021 = vsub.f32 %v2393, %v2893
        %v3022 = vsub.f32 %v2396, %v2894
        %v3023 = vsub.f32 %v2401, %v2895
        %v3024 = vsub.f32 %v2404, %v2896
        %v3025 = vsub.f32 %v2409, %v2897
        %v3026 = vsub.f32 %v2412, %v2898
        %v3027 = vsub.f32 %v2417, %v2899
        %v3028 = vsub.f32 %v2420, %v2900
        %v3029 = vsub.f32 %v2425, %v2901
        %v3030 = vsub.f32 %v2428, %v2902
        %v3031 = vsub.f32 %v2433, %v2903
        %v3032 = vsub.f32 %v2436, %v2904
        %v3033 = vsub.f32 %v2441, %v2905
        %v3034 = vsub.f32 %v2444, %v2906
        %v3035 = vsub.f32 %v2449, %v2907
        %v3036 = vsub.f32 %v2452, %v2908
        %v3037 = vsub.f32 %v2457, %v2909
        %v3038 = vsub.f32 %v2460, %v2910
        %v3039 = vsub.f32 %v2465, %v2911
        %v3040 = vsub.f32 %v2468, %v2912
        %v3041 = vsub.f32 %v2473, %v2913
        %v3042 = vsub.f32 %v2476, %v2914
        %v3043 = vsub.f32 %v2481, %v2915
        %v3044 = vsub.f32 %v2484, %v2916
        %v3045 = vsub.f32 %v2489, %v2917
        %v3046 = vsub.f32 %v2492, %v2918
        %v3047 = vsub.f32 %v2497, %v2919
        %v3048 = vsub.f32 %v2500, %v2920
        %v3049 = vsub.f32 %v2505, %v2921
        %v3050 = vsub.f32 %v2508, %v2922
        %v3051 = vsub.f32 %v2513, %v2923
        %v3052 = vsub.f32 %v2516, %v2924
        %v3053 = vsub.f32 %v2521, %v2925
        %v3054 = vsub.f32 %v2524, %v2926
        %v3055 = vsub.f32 %v2529, %v2927
        %v3056 = vsub.f32 %v2532, %v2928
        %v3057 = vsub.f32 %v2537, %v2929
        %v3058 = vsub.f32 %v2540, %v2930
        %v3059 = vsub.f32 %v2545, %v2931
        %v3060 = vsub.f32 %v2548, %v2932
        %v3061 = vsub.f32 %v2553, %v2933
        %v3062 = vsub.f32 %v2556, %v2934
        %v3063 = vsub.f32 %v2561, %v2935
        %v3064 = vsub.f32 %v2564, %v2936
        %v3065 = vsub.f32 %v2569, %v2937
        %v3066 = vsub.f32 %v2572, %v2938
        %v3067 = vsub.f32 %v2577, %v2939
        %v3068 = vsub.f32 %v2580, %v2940
        %v3069 = vsub.f32 %v2585, %v2941
        %v3070 = vsub.f32 %v2588, %v2942
        %v3071 = vsub.f32 %v2593, %v2943
        %v3072 = vsub.f32 %v2596, %v2944
        %v3073 = vsub.f32 %v2601, %v2945
        %v3074 = vsub.f32 %v2604, %v2946
        %v3075 = vsub.f32 %v2609, %v2947
        %v3076 = vsub.f32 %v2612, %v2948
        %v3077 = vsub.f32 %v2617, %v2949
        %v3078 = vsub.f32 %v2620, %v2950
        %v3079 = vsub.f32 %v2625, %v2951
        %v3080 = vsub.f32 %v2628, %v2952
        %v3081 = vsub.f32 %v2633, %v2953
        %v3082 = vsub.f32 %v2636, %v2954
        %v3083 = vsub.f32 %v2641, %v2955
        %v3084 = vsub.f32 %v2644, %v2956
        %v3085 = vsub.f32 %v2649, %v2957
        %v3086 = vsub.f32 %v2652, %v2958
        %v3087 = vsub.f32 %v2657, %v2959
        %v3088 = vsub.f32 %v2660, %v2960
        %v3089 = vsub.f32 %v2665, %v2961
        %v3090 = vsub.f32 %v2668, %v2962
        %v3091 = vsub.f32 %v2673, %v2963
        %v3092 = vsub.f32 %v2676, %v2964
        %v3093 = vsub.f32 %v2681, %v2965
        %v3094 = vsub.f32 %v2684, %v2966
        %v3095 = vsub.f32 %v2689, %v2967
        %v3096 = vsub.f32 %v2692, %v2968
        %v3097 = vsub.f32 %v2697, %v2969
        %v3098 = vsub.f32 %v2700, %v2970
        %v3099 = vsub.f32 %v2705, %v2971
        %v3100 = vsub.f32 %v2708, %v2972
        %v3101 = vsub.f32 %v2713, %v2973
        %v3102 = vsub.f32 %v2716, %v2974
        %v3103 = vlaneseq
        %v3104 = vshrl.u32 %v3103, 7
        %v3105 = vadd.s32 %v3104, 8
        %v3106 = vadd.s32 %v3104, 16
        %v3107 = vadd.s32 %v3104, 24
        %v3108 = vadd.s32 %v3104, 32
        %v3109 = vadd.s32 %v3104, 40
        %v3110 = vadd.s32 %v3104, 48
        %v3111 = vadd.s32 %v3104, 56
        %v3112 = vadd.s32 %v3104, 64
        %v3113 = vadd.s32 %v3104, 72
        %v3114 = vadd.s32 %v3104, 80
        %v3115 = vadd.s32 %v3104, 88
        %v3116 = vadd.s32 %v3104, 96
        %v3117 = vadd.s32 %v3104, 104
        %v3118 = vadd.s32 %v3104, 112
        %v3119 = vadd.s32 %v3104, 120
        %v3120 = vadd.s32 %v3104, 128
        %v3121 = vadd.s32 %v3104, 136
        %v3122 = vadd.s32 %v3104, 144
        %v3123 = vadd.s32 %v3104, 152
        %v3124 = vadd.s32 %v3104, 160
        %v3125 = vadd.s32 %v3104, 168
        %v3126 = vadd.s32 %v3104, 176
        %v3127 = vadd.s32 %v3104, 184
        %v3128 = vadd.s32 %v3104, 192
        %v3129 = vadd.s32 %v3104, 200
        %v3130 = vadd.s32 %v3104, 208
        %v3131 = vadd.s32 %v3104, 216
        %v3132 = vadd.s32 %v3104, 224
        %v3133 = vadd.s32 %v3104, 232
        %v3134 = vadd.s32 %v3104, 240
        %v3135 = vadd.s32 %v3104, 248
        %v3136 = vadd.s32 %v3104, 256
        %v3137 = vadd.s32 %v3104, 264
        %v3138 = vadd.s32 %v3104, 272
        %v3139 = vadd.s32 %v3104, 280
        %v3140 = vadd.s32 %v3104, 288
        %v3141 = vadd.s32 %v3104, 296
        %v3142 = vadd.s32 %v3104, 304
        %v3143 = vadd.s32 %v3104, 312
        %v3144 = vadd.s32 %v3104, 320
        %v3145 = vadd.s32 %v3104, 328
        %v3146 = vadd.s32 %v3104, 336
        %v3147 = vadd.s32 %v3104, 344
        %v3148 = vadd.s32 %v3104, 352
        %v3149 = vadd.s32 %v3104, 360
        %v3150 = vadd.s32 %v3104, 368
        %v3151 = vadd.s32 %v3104, 376
        %v3152 = vadd.s32 %v3104, 384
        %v3153 = vadd.s32 %v3104, 392
        %v3154 = vadd.s32 %v3104, 400
        %v3155 = vadd.s32 %v3104, 408
        %v3156 = vadd.s32 %v3104, 416
        %v3157 = vadd.s32 %v3104, 424
        %v3158 = vadd.s32 %v3104, 432
        %v3159 = vadd.s32 %v3104, 440
        %v3160 = vadd.s32 %v3104, 448
        %v3161 = vadd.s32 %v3104, 456
        %v3162 = vadd.s32 %v3104, 464
        %v3163 = vadd.s32 %v3104, 472
        %v3164 = vadd.s32 %v3104, 480
        %v3165 = vadd.s32 %v3104, 488
        %v3166 = vadd.s32 %v3104, 496
        %v3167 = vadd.s32 %v3104, 504
        %v3168 = vadd.s32 %v3104, 512
        %v3169 = vadd.s32 %v3104, 520
        %v3170 = vadd.s32 %v3104, 528
        %v3171 = vadd.s32 %v3104, 536
        %v3172 = vadd.s32 %v3104, 544
        %v3173 = vadd.s32 %v3104, 552
        %v3174 = vadd.s32 %v3104, 560
        %v3175 = vadd.s32 %v3104, 568
        %v3176 = vadd.s32 %v3104, 576
        %v3177 = vadd.s32 %v3104, 584
        %v3178 = vadd.s32 %v3104, 592
        %v3179 = vadd.s32 %v3104, 600
        %v3180 = vadd.s32 %v3104, 608
        %v3181 = vadd.s32 %v3104, 616
        %v3182 = vadd.s32 %v3104, 624
        %v3183 = vadd.s32 %v3104, 632
        %v3184 = vadd.s32 %v3104, 640
        %v3185 = vadd.s32 %v3104, 648
        %v3186 = vadd.s32 %v3104, 656
        %v3187 = vadd.s32 %v3104, 664
        %v3188 = vadd.s32 %v3104, 672
        %v3189 = vadd.s32 %v3104, 680
        %v3190 = vadd.s32 %v3104, 688
        %v3191 = vadd.s32 %v3104, 696
        %v3192 = vadd.s32 %v3104, 704
        %v3193 = vadd.s32 %v3104, 712
        %v3194 = vadd.s32 %v3104, 720
        %v3195 = vadd.s32 %v3104, 728
        %v3196 = vadd.s32 %v3104, 736
        %v3197 = vadd.s32 %v3104, 744
        %v3198 = vadd.s32 %v3104, 752
        %v3199 = vadd.s32 %v3104, 760
        %v3200 = vadd.s32 %v3104, 768
        %v3201 = vadd.s32 %v3104, 776
        %v3202 = vadd.s32 %v3104, 784
        %v3203 = vadd.s32 %v3104, 792
        %v3204 = vadd.s32 %v3104, 800
        %v3205 = vadd.s32 %v3104, 808
        %v3206 = vadd.s32 %v3104, 816
        %v3207 = vadd.s32 %v3104, 824
        %v3208 = vadd.s32 %v3104, 832
        %v3209 = vadd.s32 %v3104, 840
        %v3210 = vadd.s32 %v3104, 848
        %v3211 = vadd.s32 %v3104, 856
        %v3212 = vadd.s32 %v3104, 864
        %v3213 = vadd.s32 %v3104, 872
        %v3214 = vadd.s32 %v3104, 880
        %v3215 = vadd.s32 %v3104, 888
        %v3216 = vadd.s32 %v3104, 896
        %v3217 = vadd.s32 %v3104, 904
        %v3218 = vadd.s32 %v3104, 912
        %v3219 = vadd.s32 %v3104, 920
        %v3220 = vadd.s32 %v3104, 928
        %v3221 = vadd.s32 %v3104, 936
        %v3222 = vadd.s32 %v3104, 944
        %v3223 = vadd.s32 %v3104, 952
        %v3224 = vadd.s32 %v3104, 960
        %v3225 = vadd.s32 %v3104, 968
        %v3226 = vadd.s32 %v3104, 976
        %v3227 = vadd.s32 %v3104, 984
        %v3228 = vadd.s32 %v3104, 992
        %v3229 = vadd.s32 %v3104, 1000
        %v3230 = vadd.s32 %v3104, 1008
        %v3231 = vadd.s32 %v3104, 1016
        %s3232 = smul.u32 %s27, 1024
        %v3233 = vstv %s3232
        %v3234 = vadd.s32 %v3104, %v3233
        %v3235 = vadd.s32 %v3105, %v3233
        %v3236 = vadd.s32 %v3106, %v3233
        %v3237 = vadd.s32 %v3107, %v3233
        %v3238 = vadd.s32 %v3108, %v3233
        %v3239 = vadd.s32 %v3109, %v3233
        %v3240 = vadd.s32 %v3110, %v3233
        %v3241 = vadd.s32 %v3111, %v3233
        %v3242 = vadd.s32 %v3112, %v3233
        %v3243 = vadd.s32 %v3113, %v3233
        %v3244 = vadd.s32 %v3114, %v3233
        %v3245 = vadd.s32 %v3115, %v3233
        %v3246 = vadd.s32 %v3116, %v3233
        %v3247 = vadd.s32 %v3117, %v3233
        %v3248 = vadd.s32 %v3118, %v3233
        %v3249 = vadd.s32 %v3119, %v3233
        %v3250 = vadd.s32 %v3120, %v3233
        %v3251 = vadd.s32 %v3121, %v3233
        %v3252 = vadd.s32 %v3122, %v3233
        %v3253 = vadd.s32 %v3123, %v3233
        %v3254 = vadd.s32 %v3124, %v3233
        %v3255 = vadd.s32 %v3125, %v3233
        %v3256 = vadd.s32 %v3126, %v3233
        %v3257 = vadd.s32 %v3127, %v3233
        %v3258 = vadd.s32 %v3128, %v3233
        %v3259 = vadd.s32 %v3129, %v3233
        %v3260 = vadd.s32 %v3130, %v3233
        %v3261 = vadd.s32 %v3131, %v3233
        %v3262 = vadd.s32 %v3132, %v3233
        %v3263 = vadd.s32 %v3133, %v3233
        %v3264 = vadd.s32 %v3134, %v3233
        %v3265 = vadd.s32 %v3135, %v3233
        %v3266 = vadd.s32 %v3136, %v3233
        %v3267 = vadd.s32 %v3137, %v3233
        %v3268 = vadd.s32 %v3138, %v3233
        %v3269 = vadd.s32 %v3139, %v3233
        %v3270 = vadd.s32 %v3140, %v3233
        %v3271 = vadd.s32 %v3141, %v3233
        %v3272 = vadd.s32 %v3142, %v3233
        %v3273 = vadd.s32 %v3143, %v3233
        %v3274 = vadd.s32 %v3144, %v3233
        %v3275 = vadd.s32 %v3145, %v3233
        %v3276 = vadd.s32 %v3146, %v3233
        %v3277 = vadd.s32 %v3147, %v3233
        %v3278 = vadd.s32 %v3148, %v3233
        %v3279 = vadd.s32 %v3149, %v3233
        %v3280 = vadd.s32 %v3150, %v3233
        %v3281 = vadd.s32 %v3151, %v3233
        %v3282 = vadd.s32 %v3152, %v3233
        %v3283 = vadd.s32 %v3153, %v3233
        %v3284 = vadd.s32 %v3154, %v3233
        %v3285 = vadd.s32 %v3155, %v3233
        %v3286 = vadd.s32 %v3156, %v3233
        %v3287 = vadd.s32 %v3157, %v3233
        %v3288 = vadd.s32 %v3158, %v3233
        %v3289 = vadd.s32 %v3159, %v3233
        %v3290 = vadd.s32 %v3160, %v3233
        %v3291 = vadd.s32 %v3161, %v3233
        %v3292 = vadd.s32 %v3162, %v3233
        %v3293 = vadd.s32 %v3163, %v3233
        %v3294 = vadd.s32 %v3164, %v3233
        %v3295 = vadd.s32 %v3165, %v3233
        %v3296 = vadd.s32 %v3166, %v3233
        %v3297 = vadd.s32 %v3167, %v3233
        %v3298 = vadd.s32 %v3168, %v3233
        %v3299 = vadd.s32 %v3169, %v3233
        %v3300 = vadd.s32 %v3170, %v3233
        %v3301 = vadd.s32 %v3171, %v3233
        %v3302 = vadd.s32 %v3172, %v3233
        %v3303 = vadd.s32 %v3173, %v3233
        %v3304 = vadd.s32 %v3174, %v3233
        %v3305 = vadd.s32 %v3175, %v3233
        %v3306 = vadd.s32 %v3176, %v3233
        %v3307 = vadd.s32 %v3177, %v3233
        %v3308 = vadd.s32 %v3178, %v3233
        %v3309 = vadd.s32 %v3179, %v3233
        %v3310 = vadd.s32 %v3180, %v3233
        %v3311 = vadd.s32 %v3181, %v3233
        %v3312 = vadd.s32 %v3182, %v3233
        %v3313 = vadd.s32 %v3183, %v3233
        %v3314 = vadd.s32 %v3184, %v3233
        %v3315 = vadd.s32 %v3185, %v3233
        %v3316 = vadd.s32 %v3186, %v3233
        %v3317 = vadd.s32 %v3187, %v3233
        %v3318 = vadd.s32 %v3188, %v3233
        %v3319 = vadd.s32 %v3189, %v3233
        %v3320 = vadd.s32 %v3190, %v3233
        %v3321 = vadd.s32 %v3191, %v3233
        %v3322 = vadd.s32 %v3192, %v3233
        %v3323 = vadd.s32 %v3193, %v3233
        %v3324 = vadd.s32 %v3194, %v3233
        %v3325 = vadd.s32 %v3195, %v3233
        %v3326 = vadd.s32 %v3196, %v3233
        %v3327 = vadd.s32 %v3197, %v3233
        %v3328 = vadd.s32 %v3198, %v3233
        %v3329 = vadd.s32 %v3199, %v3233
        %v3330 = vadd.s32 %v3200, %v3233
        %v3331 = vadd.s32 %v3201, %v3233
        %v3332 = vadd.s32 %v3202, %v3233
        %v3333 = vadd.s32 %v3203, %v3233
        %v3334 = vadd.s32 %v3204, %v3233
        %v3335 = vadd.s32 %v3205, %v3233
        %v3336 = vadd.s32 %v3206, %v3233
        %v3337 = vadd.s32 %v3207, %v3233
        %v3338 = vadd.s32 %v3208, %v3233
        %v3339 = vadd.s32 %v3209, %v3233
        %v3340 = vadd.s32 %v3210, %v3233
        %v3341 = vadd.s32 %v3211, %v3233
        %v3342 = vadd.s32 %v3212, %v3233
        %v3343 = vadd.s32 %v3213, %v3233
        %v3344 = vadd.s32 %v3214, %v3233
        %v3345 = vadd.s32 %v3215, %v3233
        %v3346 = vadd.s32 %v3216, %v3233
        %v3347 = vadd.s32 %v3217, %v3233
        %v3348 = vadd.s32 %v3218, %v3233
        %v3349 = vadd.s32 %v3219, %v3233
        %v3350 = vadd.s32 %v3220, %v3233
        %v3351 = vadd.s32 %v3221, %v3233
        %v3352 = vadd.s32 %v3222, %v3233
        %v3353 = vadd.s32 %v3223, %v3233
        %v3354 = vadd.s32 %v3224, %v3233
        %v3355 = vadd.s32 %v3225, %v3233
        %v3356 = vadd.s32 %v3226, %v3233
        %v3357 = vadd.s32 %v3227, %v3233
        %v3358 = vadd.s32 %v3228, %v3233
        %v3359 = vadd.s32 %v3229, %v3233
        %v3360 = vadd.s32 %v3230, %v3233
        %v3361 = vadd.s32 %v3231, %v3233
        %vm3362 = vcmp.lt.s32.totalorder %v3234, 1200
        %vm3363 = vcmp.lt.s32.totalorder %v3235, 1200
        %vm3364 = vcmp.lt.s32.totalorder %v3236, 1200
        %vm3365 = vcmp.lt.s32.totalorder %v3237, 1200
        %vm3366 = vcmp.lt.s32.totalorder %v3238, 1200
        %vm3367 = vcmp.lt.s32.totalorder %v3239, 1200
        %vm3368 = vcmp.lt.s32.totalorder %v3240, 1200
        %vm3369 = vcmp.lt.s32.totalorder %v3241, 1200
        %vm3370 = vcmp.lt.s32.totalorder %v3242, 1200
        %vm3371 = vcmp.lt.s32.totalorder %v3243, 1200
        %vm3372 = vcmp.lt.s32.totalorder %v3244, 1200
        %vm3373 = vcmp.lt.s32.totalorder %v3245, 1200
        %vm3374 = vcmp.lt.s32.totalorder %v3246, 1200
        %vm3375 = vcmp.lt.s32.totalorder %v3247, 1200
        %vm3376 = vcmp.lt.s32.totalorder %v3248, 1200
        %vm3377 = vcmp.lt.s32.totalorder %v3249, 1200
        %vm3378 = vcmp.lt.s32.totalorder %v3250, 1200
        %vm3379 = vcmp.lt.s32.totalorder %v3251, 1200
        %vm3380 = vcmp.lt.s32.totalorder %v3252, 1200
        %vm3381 = vcmp.lt.s32.totalorder %v3253, 1200
        %vm3382 = vcmp.lt.s32.totalorder %v3254, 1200
        %vm3383 = vcmp.lt.s32.totalorder %v3255, 1200
        %vm3384 = vcmp.lt.s32.totalorder %v3256, 1200
        %vm3385 = vcmp.lt.s32.totalorder %v3257, 1200
        %vm3386 = vcmp.lt.s32.totalorder %v3258, 1200
        %vm3387 = vcmp.lt.s32.totalorder %v3259, 1200
        %vm3388 = vcmp.lt.s32.totalorder %v3260, 1200
        %vm3389 = vcmp.lt.s32.totalorder %v3261, 1200
        %vm3390 = vcmp.lt.s32.totalorder %v3262, 1200
        %vm3391 = vcmp.lt.s32.totalorder %v3263, 1200
        %vm3392 = vcmp.lt.s32.totalorder %v3264, 1200
        %vm3393 = vcmp.lt.s32.totalorder %v3265, 1200
        %vm3394 = vcmp.lt.s32.totalorder %v3266, 1200
        %vm3395 = vcmp.lt.s32.totalorder %v3267, 1200
        %vm3396 = vcmp.lt.s32.totalorder %v3268, 1200
        %vm3397 = vcmp.lt.s32.totalorder %v3269, 1200
        %vm3398 = vcmp.lt.s32.totalorder %v3270, 1200
        %vm3399 = vcmp.lt.s32.totalorder %v3271, 1200
        %vm3400 = vcmp.lt.s32.totalorder %v3272, 1200
        %vm3401 = vcmp.lt.s32.totalorder %v3273, 1200
        %vm3402 = vcmp.lt.s32.totalorder %v3274, 1200
        %vm3403 = vcmp.lt.s32.totalorder %v3275, 1200
        %vm3404 = vcmp.lt.s32.totalorder %v3276, 1200
        %vm3405 = vcmp.lt.s32.totalorder %v3277, 1200
        %vm3406 = vcmp.lt.s32.totalorder %v3278, 1200
        %vm3407 = vcmp.lt.s32.totalorder %v3279, 1200
        %vm3408 = vcmp.lt.s32.totalorder %v3280, 1200
        %vm3409 = vcmp.lt.s32.totalorder %v3281, 1200
        %vm3410 = vcmp.lt.s32.totalorder %v3282, 1200
        %vm3411 = vcmp.lt.s32.totalorder %v3283, 1200
        %vm3412 = vcmp.lt.s32.totalorder %v3284, 1200
        %vm3413 = vcmp.lt.s32.totalorder %v3285, 1200
        %vm3414 = vcmp.lt.s32.totalorder %v3286, 1200
        %vm3415 = vcmp.lt.s32.totalorder %v3287, 1200
        %vm3416 = vcmp.lt.s32.totalorder %v3288, 1200
        %vm3417 = vcmp.lt.s32.totalorder %v3289, 1200
        %vm3418 = vcmp.lt.s32.totalorder %v3290, 1200
        %vm3419 = vcmp.lt.s32.totalorder %v3291, 1200
        %vm3420 = vcmp.lt.s32.totalorder %v3292, 1200
        %vm3421 = vcmp.lt.s32.totalorder %v3293, 1200
        %vm3422 = vcmp.lt.s32.totalorder %v3294, 1200
        %vm3423 = vcmp.lt.s32.totalorder %v3295, 1200
        %vm3424 = vcmp.lt.s32.totalorder %v3296, 1200
        %vm3425 = vcmp.lt.s32.totalorder %v3297, 1200
        %vm3426 = vcmp.lt.s32.totalorder %v3298, 1200
        %vm3427 = vcmp.lt.s32.totalorder %v3299, 1200
        %vm3428 = vcmp.lt.s32.totalorder %v3300, 1200
        %vm3429 = vcmp.lt.s32.totalorder %v3301, 1200
        %vm3430 = vcmp.lt.s32.totalorder %v3302, 1200
        %vm3431 = vcmp.lt.s32.totalorder %v3303, 1200
        %vm3432 = vcmp.lt.s32.totalorder %v3304, 1200
        %vm3433 = vcmp.lt.s32.totalorder %v3305, 1200
        %vm3434 = vcmp.lt.s32.totalorder %v3306, 1200
        %vm3435 = vcmp.lt.s32.totalorder %v3307, 1200
        %vm3436 = vcmp.lt.s32.totalorder %v3308, 1200
        %vm3437 = vcmp.lt.s32.totalorder %v3309, 1200
        %vm3438 = vcmp.lt.s32.totalorder %v3310, 1200
        %vm3439 = vcmp.lt.s32.totalorder %v3311, 1200
        %vm3440 = vcmp.lt.s32.totalorder %v3312, 1200
        %vm3441 = vcmp.lt.s32.totalorder %v3313, 1200
        %vm3442 = vcmp.lt.s32.totalorder %v3314, 1200
        %vm3443 = vcmp.lt.s32.totalorder %v3315, 1200
        %vm3444 = vcmp.lt.s32.totalorder %v3316, 1200
        %vm3445 = vcmp.lt.s32.totalorder %v3317, 1200
        %vm3446 = vcmp.lt.s32.totalorder %v3318, 1200
        %vm3447 = vcmp.lt.s32.totalorder %v3319, 1200
        %vm3448 = vcmp.lt.s32.totalorder %v3320, 1200
        %vm3449 = vcmp.lt.s32.totalorder %v3321, 1200
        %vm3450 = vcmp.lt.s32.totalorder %v3322, 1200
        %vm3451 = vcmp.lt.s32.totalorder %v3323, 1200
        %vm3452 = vcmp.lt.s32.totalorder %v3324, 1200
        %vm3453 = vcmp.lt.s32.totalorder %v3325, 1200
        %vm3454 = vcmp.lt.s32.totalorder %v3326, 1200
        %vm3455 = vcmp.lt.s32.totalorder %v3327, 1200
        %vm3456 = vcmp.lt.s32.totalorder %v3328, 1200
        %vm3457 = vcmp.lt.s32.totalorder %v3329, 1200
        %vm3458 = vcmp.lt.s32.totalorder %v3330, 1200
        %vm3459 = vcmp.lt.s32.totalorder %v3331, 1200
        %vm3460 = vcmp.lt.s32.totalorder %v3332, 1200
        %vm3461 = vcmp.lt.s32.totalorder %v3333, 1200
        %vm3462 = vcmp.lt.s32.totalorder %v3334, 1200
        %vm3463 = vcmp.lt.s32.totalorder %v3335, 1200
        %vm3464 = vcmp.lt.s32.totalorder %v3336, 1200
        %vm3465 = vcmp.lt.s32.totalorder %v3337, 1200
        %vm3466 = vcmp.lt.s32.totalorder %v3338, 1200
        %vm3467 = vcmp.lt.s32.totalorder %v3339, 1200
        %vm3468 = vcmp.lt.s32.totalorder %v3340, 1200
        %vm3469 = vcmp.lt.s32.totalorder %v3341, 1200
        %vm3470 = vcmp.lt.s32.totalorder %v3342, 1200
        %vm3471 = vcmp.lt.s32.totalorder %v3343, 1200
        %vm3472 = vcmp.lt.s32.totalorder %v3344, 1200
        %vm3473 = vcmp.lt.s32.totalorder %v3345, 1200
        %vm3474 = vcmp.lt.s32.totalorder %v3346, 1200
        %vm3475 = vcmp.lt.s32.totalorder %v3347, 1200
        %vm3476 = vcmp.lt.s32.totalorder %v3348, 1200
        %vm3477 = vcmp.lt.s32.totalorder %v3349, 1200
        %vm3478 = vcmp.lt.s32.totalorder %v3350, 1200
        %vm3479 = vcmp.lt.s32.totalorder %v3351, 1200
        %vm3480 = vcmp.lt.s32.totalorder %v3352, 1200
        %vm3481 = vcmp.lt.s32.totalorder %v3353, 1200
        %vm3482 = vcmp.lt.s32.totalorder %v3354, 1200
        %vm3483 = vcmp.lt.s32.totalorder %v3355, 1200
        %vm3484 = vcmp.lt.s32.totalorder %v3356, 1200
        %vm3485 = vcmp.lt.s32.totalorder %v3357, 1200
        %vm3486 = vcmp.lt.s32.totalorder %v3358, 1200
        %vm3487 = vcmp.lt.s32.totalorder %v3359, 1200
        %vm3488 = vcmp.lt.s32.totalorder %v3360, 1200
        %vm3489 = vcmp.lt.s32.totalorder %v3361, 1200
        %v3490 = vsel %vm3362, %v2975, 0.0
        %v3491 = vsel %vm3363, %v2976, 0.0
        %v3492 = vsel %vm3364, %v2977, 0.0
        %v3493 = vsel %vm3365, %v2978, 0.0
        %v3494 = vsel %vm3366, %v2979, 0.0
        %v3495 = vsel %vm3367, %v2980, 0.0
        %v3496 = vsel %vm3368, %v2981, 0.0
        %v3497 = vsel %vm3369, %v2982, 0.0
        %v3498 = vsel %vm3370, %v2983, 0.0
        %v3499 = vsel %vm3371, %v2984, 0.0
        %v3500 = vsel %vm3372, %v2985, 0.0
        %v3501 = vsel %vm3373, %v2986, 0.0
        %v3502 = vsel %vm3374, %v2987, 0.0
        %v3503 = vsel %vm3375, %v2988, 0.0
        %v3504 = vsel %vm3376, %v2989, 0.0
        %v3505 = vsel %vm3377, %v2990, 0.0
        %v3506 = vsel %vm3378, %v2991, 0.0
        %v3507 = vsel %vm3379, %v2992, 0.0
        %v3508 = vsel %vm3380, %v2993, 0.0
        %v3509 = vsel %vm3381, %v2994, 0.0
        %v3510 = vsel %vm3382, %v2995, 0.0
        %v3511 = vsel %vm3383, %v2996, 0.0
        %v3512 = vsel %vm3384, %v2997, 0.0
        %v3513 = vsel %vm3385, %v2998, 0.0
        %v3514 = vsel %vm3386, %v2999, 0.0
        %v3515 = vsel %vm3387, %v3000, 0.0
        %v3516 = vsel %vm3388, %v3001, 0.0
        %v3517 = vsel %vm3389, %v3002, 0.0
        %v3518 = vsel %vm3390, %v3003, 0.0
        %v3519 = vsel %vm3391, %v3004, 0.0
        %v3520 = vsel %vm3392, %v3005, 0.0
        %v3521 = vsel %vm3393, %v3006, 0.0
        %v3522 = vsel %vm3394, %v3007, 0.0
        %v3523 = vsel %vm3395, %v3008, 0.0
        %v3524 = vsel %vm3396, %v3009, 0.0
        %v3525 = vsel %vm3397, %v3010, 0.0
        %v3526 = vsel %vm3398, %v3011, 0.0
        %v3527 = vsel %vm3399, %v3012, 0.0
        %v3528 = vsel %vm3400, %v3013, 0.0
        %v3529 = vsel %vm3401, %v3014, 0.0
        %v3530 = vsel %vm3402, %v3015, 0.0
        %v3531 = vsel %vm3403, %v3016, 0.0
        %v3532 = vsel %vm3404, %v3017, 0.0
        %v3533 = vsel %vm3405, %v3018, 0.0
        %v3534 = vsel %vm3406, %v3019, 0.0
        %v3535 = vsel %vm3407, %v3020, 0.0
        %v3536 = vsel %vm3408, %v3021, 0.0
        %v3537 = vsel %vm3409, %v3022, 0.0
        %v3538 = vsel %vm3410, %v3023, 0.0
        %v3539 = vsel %vm3411, %v3024, 0.0
        %v3540 = vsel %vm3412, %v3025, 0.0
        %v3541 = vsel %vm3413, %v3026, 0.0
        %v3542 = vsel %vm3414, %v3027, 0.0
        %v3543 = vsel %vm3415, %v3028, 0.0
        %v3544 = vsel %vm3416, %v3029, 0.0
        %v3545 = vsel %vm3417, %v3030, 0.0
        %v3546 = vsel %vm3418, %v3031, 0.0
        %v3547 = vsel %vm3419, %v3032, 0.0
        %v3548 = vsel %vm3420, %v3033, 0.0
        %v3549 = vsel %vm3421, %v3034, 0.0
        %v3550 = vsel %vm3422, %v3035, 0.0
        %v3551 = vsel %vm3423, %v3036, 0.0
        %v3552 = vsel %vm3424, %v3037, 0.0
        %v3553 = vsel %vm3425, %v3038, 0.0
        %v3554 = vsel %vm3426, %v3039, 0.0
        %v3555 = vsel %vm3427, %v3040, 0.0
        %v3556 = vsel %vm3428, %v3041, 0.0
        %v3557 = vsel %vm3429, %v3042, 0.0
        %v3558 = vsel %vm3430, %v3043, 0.0
        %v3559 = vsel %vm3431, %v3044, 0.0
        %v3560 = vsel %vm3432, %v3045, 0.0
        %v3561 = vsel %vm3433, %v3046, 0.0
        %v3562 = vsel %vm3434, %v3047, 0.0
        %v3563 = vsel %vm3435, %v3048, 0.0
        %v3564 = vsel %vm3436, %v3049, 0.0
        %v3565 = vsel %vm3437, %v3050, 0.0
        %v3566 = vsel %vm3438, %v3051, 0.0
        %v3567 = vsel %vm3439, %v3052, 0.0
        %v3568 = vsel %vm3440, %v3053, 0.0
        %v3569 = vsel %vm3441, %v3054, 0.0
        %v3570 = vsel %vm3442, %v3055, 0.0
        %v3571 = vsel %vm3443, %v3056, 0.0
        %v3572 = vsel %vm3444, %v3057, 0.0
        %v3573 = vsel %vm3445, %v3058, 0.0
        %v3574 = vsel %vm3446, %v3059, 0.0
        %v3575 = vsel %vm3447, %v3060, 0.0
        %v3576 = vsel %vm3448, %v3061, 0.0
        %v3577 = vsel %vm3449, %v3062, 0.0
        %v3578 = vsel %vm3450, %v3063, 0.0
        %v3579 = vsel %vm3451, %v3064, 0.0
        %v3580 = vsel %vm3452, %v3065, 0.0
        %v3581 = vsel %vm3453, %v3066, 0.0
        %v3582 = vsel %vm3454, %v3067, 0.0
        %v3583 = vsel %vm3455, %v3068, 0.0
        %v3584 = vsel %vm3456, %v3069, 0.0
        %v3585 = vsel %vm3457, %v3070, 0.0
        %v3586 = vsel %vm3458, %v3071, 0.0
        %v3587 = vsel %vm3459, %v3072, 0.0
        %v3588 = vsel %vm3460, %v3073, 0.0
        %v3589 = vsel %vm3461, %v3074, 0.0
        %v3590 = vsel %vm3462, %v3075, 0.0
        %v3591 = vsel %vm3463, %v3076, 0.0
        %v3592 = vsel %vm3464, %v3077, 0.0
        %v3593 = vsel %vm3465, %v3078, 0.0
        %v3594 = vsel %vm3466, %v3079, 0.0
        %v3595 = vsel %vm3467, %v3080, 0.0
        %v3596 = vsel %vm3468, %v3081, 0.0
        %v3597 = vsel %vm3469, %v3082, 0.0
        %v3598 = vsel %vm3470, %v3083, 0.0
        %v3599 = vsel %vm3471, %v3084, 0.0
        %v3600 = vsel %vm3472, %v3085, 0.0
        %v3601 = vsel %vm3473, %v3086, 0.0
        %v3602 = vsel %vm3474, %v3087, 0.0
        %v3603 = vsel %vm3475, %v3088, 0.0
        %v3604 = vsel %vm3476, %v3089, 0.0
        %v3605 = vsel %vm3477, %v3090, 0.0
        %v3606 = vsel %vm3478, %v3091, 0.0
        %v3607 = vsel %vm3479, %v3092, 0.0
        %v3608 = vsel %vm3480, %v3093, 0.0
        %v3609 = vsel %vm3481, %v3094, 0.0
        %v3610 = vsel %vm3482, %v3095, 0.0
        %v3611 = vsel %vm3483, %v3096, 0.0
        %v3612 = vsel %vm3484, %v3097, 0.0
        %v3613 = vsel %vm3485, %v3098, 0.0
        %v3614 = vsel %vm3486, %v3099, 0.0
        %v3615 = vsel %vm3487, %v3100, 0.0
        %v3616 = vsel %vm3488, %v3101, 0.0
        %v3617 = vsel %vm3489, %v3102, 0.0
        %v3618 = vmul.f32 %v3490, %v3490
        %v3619 = vmul.f32 %v3491, %v3491
        %v3620 = vmul.f32 %v3492, %v3492
        %v3621 = vmul.f32 %v3493, %v3493
        %v3622 = vmul.f32 %v3494, %v3494
        %v3623 = vmul.f32 %v3495, %v3495
        %v3624 = vmul.f32 %v3496, %v3496
        %v3625 = vmul.f32 %v3497, %v3497
        %v3626 = vmul.f32 %v3498, %v3498
        %v3627 = vmul.f32 %v3499, %v3499
        %v3628 = vmul.f32 %v3500, %v3500
        %v3629 = vmul.f32 %v3501, %v3501
        %v3630 = vmul.f32 %v3502, %v3502
        %v3631 = vmul.f32 %v3503, %v3503
        %v3632 = vmul.f32 %v3504, %v3504
        %v3633 = vmul.f32 %v3505, %v3505
        %v3634 = vmul.f32 %v3506, %v3506
        %v3635 = vmul.f32 %v3507, %v3507
        %v3636 = vmul.f32 %v3508, %v3508
        %v3637 = vmul.f32 %v3509, %v3509
        %v3638 = vmul.f32 %v3510, %v3510
        %v3639 = vmul.f32 %v3511, %v3511
        %v3640 = vmul.f32 %v3512, %v3512
        %v3641 = vmul.f32 %v3513, %v3513
        %v3642 = vmul.f32 %v3514, %v3514
        %v3643 = vmul.f32 %v3515, %v3515
        %v3644 = vmul.f32 %v3516, %v3516
        %v3645 = vmul.f32 %v3517, %v3517
        %v3646 = vmul.f32 %v3518, %v3518
        %v3647 = vmul.f32 %v3519, %v3519
        %v3648 = vmul.f32 %v3520, %v3520
        %v3649 = vmul.f32 %v3521, %v3521
        %v3650 = vmul.f32 %v3522, %v3522
        %v3651 = vmul.f32 %v3523, %v3523
        %v3652 = vmul.f32 %v3524, %v3524
        %v3653 = vmul.f32 %v3525, %v3525
        %v3654 = vmul.f32 %v3526, %v3526
        %v3655 = vmul.f32 %v3527, %v3527
        %v3656 = vmul.f32 %v3528, %v3528
        %v3657 = vmul.f32 %v3529, %v3529
        %v3658 = vmul.f32 %v3530, %v3530
        %v3659 = vmul.f32 %v3531, %v3531
        %v3660 = vmul.f32 %v3532, %v3532
        %v3661 = vmul.f32 %v3533, %v3533
        %v3662 = vmul.f32 %v3534, %v3534
        %v3663 = vmul.f32 %v3535, %v3535
        %v3664 = vmul.f32 %v3536, %v3536
        %v3665 = vmul.f32 %v3537, %v3537
        %v3666 = vmul.f32 %v3538, %v3538
        %v3667 = vmul.f32 %v3539, %v3539
        %v3668 = vmul.f32 %v3540, %v3540
        %v3669 = vmul.f32 %v3541, %v3541
        %v3670 = vmul.f32 %v3542, %v3542
        %v3671 = vmul.f32 %v3543, %v3543
        %v3672 = vmul.f32 %v3544, %v3544
        %v3673 = vmul.f32 %v3545, %v3545
        %v3674 = vmul.f32 %v3546, %v3546
        %v3675 = vmul.f32 %v3547, %v3547
        %v3676 = vmul.f32 %v3548, %v3548
        %v3677 = vmul.f32 %v3549, %v3549
        %v3678 = vmul.f32 %v3550, %v3550
        %v3679 = vmul.f32 %v3551, %v3551
        %v3680 = vmul.f32 %v3552, %v3552
        %v3681 = vmul.f32 %v3553, %v3553
        %v3682 = vmul.f32 %v3554, %v3554
        %v3683 = vmul.f32 %v3555, %v3555
        %v3684 = vmul.f32 %v3556, %v3556
        %v3685 = vmul.f32 %v3557, %v3557
        %v3686 = vmul.f32 %v3558, %v3558
        %v3687 = vmul.f32 %v3559, %v3559
        %v3688 = vmul.f32 %v3560, %v3560
        %v3689 = vmul.f32 %v3561, %v3561
        %v3690 = vmul.f32 %v3562, %v3562
        %v3691 = vmul.f32 %v3563, %v3563
        %v3692 = vmul.f32 %v3564, %v3564
        %v3693 = vmul.f32 %v3565, %v3565
        %v3694 = vmul.f32 %v3566, %v3566
        %v3695 = vmul.f32 %v3567, %v3567
        %v3696 = vmul.f32 %v3568, %v3568
        %v3697 = vmul.f32 %v3569, %v3569
        %v3698 = vmul.f32 %v3570, %v3570
        %v3699 = vmul.f32 %v3571, %v3571
        %v3700 = vmul.f32 %v3572, %v3572
        %v3701 = vmul.f32 %v3573, %v3573
        %v3702 = vmul.f32 %v3574, %v3574
        %v3703 = vmul.f32 %v3575, %v3575
        %v3704 = vmul.f32 %v3576, %v3576
        %v3705 = vmul.f32 %v3577, %v3577
        %v3706 = vmul.f32 %v3578, %v3578
        %v3707 = vmul.f32 %v3579, %v3579
        %v3708 = vmul.f32 %v3580, %v3580
        %v3709 = vmul.f32 %v3581, %v3581
        %v3710 = vmul.f32 %v3582, %v3582
        %v3711 = vmul.f32 %v3583, %v3583
        %v3712 = vmul.f32 %v3584, %v3584
        %v3713 = vmul.f32 %v3585, %v3585
        %v3714 = vmul.f32 %v3586, %v3586
        %v3715 = vmul.f32 %v3587, %v3587
        %v3716 = vmul.f32 %v3588, %v3588
        %v3717 = vmul.f32 %v3589, %v3589
        %v3718 = vmul.f32 %v3590, %v3590
        %v3719 = vmul.f32 %v3591, %v3591
        %v3720 = vmul.f32 %v3592, %v3592
        %v3721 = vmul.f32 %v3593, %v3593
        %v3722 = vmul.f32 %v3594, %v3594
        %v3723 = vmul.f32 %v3595, %v3595
        %v3724 = vmul.f32 %v3596, %v3596
        %v3725 = vmul.f32 %v3597, %v3597
        %v3726 = vmul.f32 %v3598, %v3598
        %v3727 = vmul.f32 %v3599, %v3599
        %v3728 = vmul.f32 %v3600, %v3600
        %v3729 = vmul.f32 %v3601, %v3601
        %v3730 = vmul.f32 %v3602, %v3602
        %v3731 = vmul.f32 %v3603, %v3603
        %v3732 = vmul.f32 %v3604, %v3604
        %v3733 = vmul.f32 %v3605, %v3605
        %v3734 = vmul.f32 %v3606, %v3606
        %v3735 = vmul.f32 %v3607, %v3607
        %v3736 = vmul.f32 %v3608, %v3608
        %v3737 = vmul.f32 %v3609, %v3609
        %v3738 = vmul.f32 %v3610, %v3610
        %v3739 = vmul.f32 %v3611, %v3611
        %v3740 = vmul.f32 %v3612, %v3612
        %v3741 = vmul.f32 %v3613, %v3613
        %v3742 = vmul.f32 %v3614, %v3614
        %v3743 = vmul.f32 %v3615, %v3615
        %v3744 = vmul.f32 %v3616, %v3616
        %v3745 = vmul.f32 %v3617, %v3617
        %v3746 = vadd.f32 %v3618, %v3619
        %v3747 = vadd.f32 %v3746, %v3620
        %v3748 = vadd.f32 %v3747, %v3621
        %v3749 = vadd.f32 %v3748, %v3622
        %v3750 = vadd.f32 %v3749, %v3623
        %v3751 = vadd.f32 %v3750, %v3624
        %v3752 = vadd.f32 %v3751, %v3625
        %v3753 = vadd.f32 %v3752, %v3626
        %v3754 = vadd.f32 %v3753, %v3627
        %v3755 = vadd.f32 %v3754, %v3628
        %v3756 = vadd.f32 %v3755, %v3629
        %v3757 = vadd.f32 %v3756, %v3630
        %v3758 = vadd.f32 %v3757, %v3631
        %v3759 = vadd.f32 %v3758, %v3632
        %v3760 = vadd.f32 %v3759, %v3633
        %v3761 = vadd.f32 %v3760, %v3634
        %v3762 = vadd.f32 %v3761, %v3635
        %v3763 = vadd.f32 %v3762, %v3636
        %v3764 = vadd.f32 %v3763, %v3637
        %v3765 = vadd.f32 %v3764, %v3638
        %v3766 = vadd.f32 %v3765, %v3639
        %v3767 = vadd.f32 %v3766, %v3640
        %v3768 = vadd.f32 %v3767, %v3641
        %v3769 = vadd.f32 %v3768, %v3642
        %v3770 = vadd.f32 %v3769, %v3643
        %v3771 = vadd.f32 %v3770, %v3644
        %v3772 = vadd.f32 %v3771, %v3645
        %v3773 = vadd.f32 %v3772, %v3646
        %v3774 = vadd.f32 %v3773, %v3647
        %v3775 = vadd.f32 %v3774, %v3648
        %v3776 = vadd.f32 %v3775, %v3649
        %v3777 = vadd.f32 %v3776, %v3650
        %v3778 = vadd.f32 %v3777, %v3651
        %v3779 = vadd.f32 %v3778, %v3652
        %v3780 = vadd.f32 %v3779, %v3653
        %v3781 = vadd.f32 %v3780, %v3654
        %v3782 = vadd.f32 %v3781, %v3655
        %v3783 = vadd.f32 %v3782, %v3656
        %v3784 = vadd.f32 %v3783, %v3657
        %v3785 = vadd.f32 %v3784, %v3658
        %v3786 = vadd.f32 %v3785, %v3659
        %v3787 = vadd.f32 %v3786, %v3660
        %v3788 = vadd.f32 %v3787, %v3661
        %v3789 = vadd.f32 %v3788, %v3662
        %v3790 = vadd.f32 %v3789, %v3663
        %v3791 = vadd.f32 %v3790, %v3664
        %v3792 = vadd.f32 %v3791, %v3665
        %v3793 = vadd.f32 %v3792, %v3666
        %v3794 = vadd.f32 %v3793, %v3667
        %v3795 = vadd.f32 %v3794, %v3668
        %v3796 = vadd.f32 %v3795, %v3669
        %v3797 = vadd.f32 %v3796, %v3670
        %v3798 = vadd.f32 %v3797, %v3671
        %v3799 = vadd.f32 %v3798, %v3672
        %v3800 = vadd.f32 %v3799, %v3673
        %v3801 = vadd.f32 %v3800, %v3674
        %v3802 = vadd.f32 %v3801, %v3675
        %v3803 = vadd.f32 %v3802, %v3676
        %v3804 = vadd.f32 %v3803, %v3677
        %v3805 = vadd.f32 %v3804, %v3678
        %v3806 = vadd.f32 %v3805, %v3679
        %v3807 = vadd.f32 %v3806, %v3680
        %v3808 = vadd.f32 %v3807, %v3681
        %v3809 = vadd.f32 %v3808, %v3682
        %v3810 = vadd.f32 %v3809, %v3683
        %v3811 = vadd.f32 %v3810, %v3684
        %v3812 = vadd.f32 %v3811, %v3685
        %v3813 = vadd.f32 %v3812, %v3686
        %v3814 = vadd.f32 %v3813, %v3687
        %v3815 = vadd.f32 %v3814, %v3688
        %v3816 = vadd.f32 %v3815, %v3689
        %v3817 = vadd.f32 %v3816, %v3690
        %v3818 = vadd.f32 %v3817, %v3691
        %v3819 = vadd.f32 %v3818, %v3692
        %v3820 = vadd.f32 %v3819, %v3693
        %v3821 = vadd.f32 %v3820, %v3694
        %v3822 = vadd.f32 %v3821, %v3695
        %v3823 = vadd.f32 %v3822, %v3696
        %v3824 = vadd.f32 %v3823, %v3697
        %v3825 = vadd.f32 %v3824, %v3698
        %v3826 = vadd.f32 %v3825, %v3699
        %v3827 = vadd.f32 %v3826, %v3700
        %v3828 = vadd.f32 %v3827, %v3701
        %v3829 = vadd.f32 %v3828, %v3702
        %v3830 = vadd.f32 %v3829, %v3703
        %v3831 = vadd.f32 %v3830, %v3704
        %v3832 = vadd.f32 %v3831, %v3705
        %v3833 = vadd.f32 %v3832, %v3706
        %v3834 = vadd.f32 %v3833, %v3707
        %v3835 = vadd.f32 %v3834, %v3708
        %v3836 = vadd.f32 %v3835, %v3709
        %v3837 = vadd.f32 %v3836, %v3710
        %v3838 = vadd.f32 %v3837, %v3711
        %v3839 = vadd.f32 %v3838, %v3712
        %v3840 = vadd.f32 %v3839, %v3713
        %v3841 = vadd.f32 %v3840, %v3714
        %v3842 = vadd.f32 %v3841, %v3715
        %v3843 = vadd.f32 %v3842, %v3716
        %v3844 = vadd.f32 %v3843, %v3717
        %v3845 = vadd.f32 %v3844, %v3718
        %v3846 = vadd.f32 %v3845, %v3719
        %v3847 = vadd.f32 %v3846, %v3720
        %v3848 = vadd.f32 %v3847, %v3721
        %v3849 = vadd.f32 %v3848, %v3722
        %v3850 = vadd.f32 %v3849, %v3723
        %v3851 = vadd.f32 %v3850, %v3724
        %v3852 = vadd.f32 %v3851, %v3725
        %v3853 = vadd.f32 %v3852, %v3726
        %v3854 = vadd.f32 %v3853, %v3727
        %v3855 = vadd.f32 %v3854, %v3728
        %v3856 = vadd.f32 %v3855, %v3729
        %v3857 = vadd.f32 %v3856, %v3730
        %v3858 = vadd.f32 %v3857, %v3731
        %v3859 = vadd.f32 %v3858, %v3732
        %v3860 = vadd.f32 %v3859, %v3733
        %v3861 = vadd.f32 %v3860, %v3734
        %v3862 = vadd.f32 %v3861, %v3735
        %v3863 = vadd.f32 %v3862, %v3736
        %v3864 = vadd.f32 %v3863, %v3737
        %v3865 = vadd.f32 %v3864, %v3738
        %v3866 = vadd.f32 %v3865, %v3739
        %v3867 = vadd.f32 %v3866, %v3740
        %v3868 = vadd.f32 %v3867, %v3741
        %v3869 = vadd.f32 %v3868, %v3742
        %v3870 = vadd.f32 %v3869, %v3743
        %v3871 = vadd.f32 %v3870, %v3744
        %v3872 = vadd.f32 %v3871, %v3745
        %v3873 = vrot.slane %v3872, 4
        %v3874 = vadd.f32 %v3872, %v3873
        %v3875 = vrot.slane %v3874, 2
        %v3876 = vadd.f32 %v3874, %v3875
        %v3877 = vrot.slane %v3876, 1
        %v3878 = vadd.f32 %v3876, %v3877
        %vm3879 = vcmp.eq.s32.totalorder %v3104, 0
        %v3880 = vsel %vm3879, %v3878, 0.0
        %3881 = vst [vmem:[%s350] sm:$0xff] %v3880
        %s3882 = sand.u32 %s171, 1
        %s3883 = scalar_lea.sflag [#allocation4], %s3882
        %s3884 = sand.u32 %s171, 1
        %s3885 = smul.addr %s3884, 8
        %s3886 = scalar_lea.vmem [#allocation10], %s3885
        // Predicated region
        $region61: #{tpu_custom_call.1} parent=43 // pred_check
          %p3887 = pneg %p181
        $region62: #{tpu_custom_call.1} parent=43 // pred_check_branch
          %3889 = sbr.rel (%p3887) target = $region64
        $region63: #{tpu_custom_call.1} parent=43 // pred_region
          %s3891 = ssub.s32 128, 128
          %3892 = vsyncadd %s3883, %s3891
          %s3893 = smul.addr %s27, 128
          %s3894 = scalar_lea.hbm %s6, %s3893
          %s3896 = sshll.u32 %s3886, 4
          %s3897 = int_to_ptr.vmem [resolvable:$true] %s3896
          %3899 = dma.vmem_to_hbm [thread:$0]  %s3897, 128, %s3894, %s3883
        $region64: #{tpu_custom_call.1} parent=43 // pred_fallthru
          _
      $region44: #{tpu_custom_call.1} parent=5 // pred_fallthru
        _
      %p3900 = scmp.le.s32.totalorder 2, %s22
      // Predicated region
      $region65: #{tpu_custom_call.1} parent=5 // pred_check
        %p3901 = pneg %p3900
      $region66: #{tpu_custom_call.1} parent=5 // pred_check_branch
        %3903 = sbr.rel (%p3901) target = $region68
      $region67: #{tpu_custom_call.1} parent=5 // pred_region
        %s3904 = ssub.s32 %s22, 2
        // Predicated region
        $region69: #{tpu_custom_call.1} parent=67 // pred_check
          %p3905 = pneg %p187
        $region70: #{tpu_custom_call.1} parent=67 // pred_check_branch
          %3907 = sbr.rel (%p3905) target = $region72
        $region71: #{tpu_custom_call.1} parent=67 // pred_region
          %s3908 = sand.u32 %s172, 1
          %s3909 = scalar_lea.sflag [#allocation4], %s3908
          %s3910 = sand.u32 %s172, 1
          %s3911 = smul.addr %s3910, 8
          %s3912 = scalar_lea.vmem [#allocation10], %s3911
          %3913 = dma.done %s3909, 128
        $region72: #{tpu_custom_call.1} parent=67 // pred_fallthru
          _
      $region68: #{tpu_custom_call.1} parent=5 // pred_fallthru
        _
    $region6: #{tpu_custom_call.1} parent=1 // loop_footer
      %s26 = sadd.s32 1, %s22
    $region7: #{tpu_custom_call.1} parent=1 // loop_footer_branch
      %21 = sbr.rel target = $region3
    $region8: #{tpu_custom_call.1} parent=1 // loop_exit
      _
    %3914 = vsyncpa [#allocation3], 1
    %s3915 = scalar_lea.sflag [#allocation3], 1
    %3916 = vsyncpa %s3915, 1
    %3917 = vsyncpa [#allocation6], 1
    %s3918 = scalar_lea.sflag [#allocation6], 1
    %3919 = vsyncpa %s3918, 1
    %3920 = vsyncpa [#allocation9], 1
    %3921 = vsyncpa [#allocation4], 1
    %s3922 = scalar_lea.sflag [#allocation4], 1
    %3923 = vsyncpa %s3922, 1

</llo_original>
